<compile_context>
chip_gen: v7x
topology: tpu7x:2x2x1
jax: 0.10.0
libtpu: 0.0.40
codegen_flags: <defaults>
</compile_context>

<pallas_src>
import functools

import jax
import jax.numpy as jnp
from jax import lax
from jax.experimental import pallas as pl
from jax.experimental.pallas import tpu as pltpu


# ----------------------------------------------------------------------------
# Small helpers
# ----------------------------------------------------------------------------
_IS_V7X = None


def _v7x():
    global _IS_V7X
    if _IS_V7X is None:
        try:
            _IS_V7X = "v7" in jax.devices()[0].device_kind.lower()
        except Exception:
            _IS_V7X = False
    return _IS_V7X


def _round_up(x, m):
    return -(-x // m) * m


# ----------------------------------------------------------------------------
# GEMM with fused BN-stat epilogue (single full-K tile, bf16 in / f32 acc)
# Used for conv1 (7x7/s2), the three 3x3/s2 convs and the 1x1 downsamples.
# ----------------------------------------------------------------------------
def _mm_stats_kernel(a_ref, b_ref, o_ref, s1_ref, s2_ref):
    acc = jnp.dot(a_ref[...], b_ref[...], preferred_element_type=jnp.float32)
    o_ref[...] = acc.astype(o_ref.dtype)
    s1_ref[0] = jnp.sum(acc, axis=0, keepdims=True)
    s2_ref[0] = jnp.sum(acc * acc, axis=0, keepdims=True)


def _pick_tm(mp, k, itemsize, budget=4 << 20):
    tm = mp
    for t in (2048, 1024, 512, 256, 128, 64, 32, 16, 8):
        if mp % t == 0:
            tm = t
            break
    while tm > 8 and tm * k * itemsize > budget and mp % (tm // 2) == 0:
        tm //= 2
    return tm


def _pick_tn(n, m):
    if n < 128 or n % 128 != 0:
        return n                      # full dim (allowed by BlockSpec rules)
    tn = 512 if n % 512 == 0 else (256 if n % 256 == 0 else 128)
    # v7x: make sure small-M / large-N GEMMs have >= 2 N-tiles so the
    # "parallel" grid axis can be sharded across the two TensorCores.
    if _v7x() and m <= 128 and n >= 256 and n // tn < 2:
        tn = max(128, tn // 2)
    return tn


def matmul_pallas(a, b):
    """(M,K) @ (K,N) -> bf16 (M,N) plus f32 per-column sum / sum-of-squares."""
    M, K = a.shape
    K2, N = b.shape
    assert K == K2
    Mp = _round_up(M, 8)
    if Mp != M:
        a = jnp.pad(a, ((0, Mp - M), (0, 0)))   # zero rows: no effect on stats
    tm = _pick_tm(Mp, K, jnp.dtype(a.dtype).itemsize)
    tn = _pick_tn(N, M)
    grid = (Mp // tm, N // tn)

    y, s1p, s2p = pl.pallas_call(
        _mm_stats_kernel,
        out_shape=(jax.ShapeDtypeStruct((Mp, N), jnp.bfloat16),
                   jax.ShapeDtypeStruct((grid[0], 1, N), jnp.float32),
                   jax.ShapeDtypeStruct((grid[0], 1, N), jnp.float32)),
        grid_spec=pltpu.PrefetchScalarGridSpec(
            num_scalar_prefetch=0, grid=grid,
            in_specs=[pl.BlockSpec((tm, K), lambda i, j: (i, 0)),
                      pl.BlockSpec((K, tn), lambda i, j: (0, j))],
            out_specs=(pl.BlockSpec((tm, tn), lambda i, j: (i, j)),
                       pl.BlockSpec((1, 1, tn), lambda i, j: (i, 0, j)),
                       pl.BlockSpec((1, 1, tn), lambda i, j: (i, 0, j)))),
        compiler_params=pltpu.CompilerParams(
            dimension_semantics=("parallel", "parallel")),
    )(a, b)
    s1 = jnp.sum(s1p, axis=(0, 1))
    s2 = jnp.sum(s2p, axis=(0, 1))
    if Mp != M:
        y = y[:M]
    return y, s1, s2


# ----------------------------------------------------------------------------
# Direct stride-1 conv kernel: no im2col patch tensor ever touches HBM.
# ----------------------------------------------------------------------------
def _conv_s1_kernel(x_ref, w_ref, o_ref, s1_ref, s2_ref, *, kh, kw, oh, ow):
    """kh*kw accumulated MXU matmuls over shifted windows of one image.

    x_ref : (1, oh+kh-1, ow+kw-1, cin)  bf16, spatially pre-padded
    w_ref : (kh*kw, cin, tco)           bf16
    o_ref : (1, oh*ow, tco)             bf16
    s1/s2 : (1, 1, tco)                 f32 per-channel sum / sum-of-squares
    """
    cin = x_ref.shape[3]
    tco = w_ref.shape[2]
    acc = jnp.zeros((oh * ow, tco), jnp.float32)
    for ki in range(kh):
        for kj in range(kw):
            win = x_ref[0, ki:ki + oh, kj:kj + ow, :]
            acc = acc + jnp.dot(win.reshape(oh * ow, cin),
                                w_ref[ki * kw + kj],
                                preferred_element_type=jnp.float32)
    o_ref[0] = acc.astype(o_ref.dtype)
    s1_ref[0] = jnp.sum(acc, axis=0, keepdims=True)
    s2_ref[0] = jnp.sum(acc * acc, axis=0, keepdims=True)


def _conv2d_direct_s1(x_bf, w_oihw, padding):
    N, H, W, Cin = x_bf.shape
    Cout, _, kh, kw = w_oihw.shape
    OH, OW = H + 2 * padding - kh + 1, W + 2 * padding - kw + 1
    HP, WP = H + 2 * padding, W + 2 * padding
    xp = jnp.pad(x_bf, ((0, 0), (padding, padding), (padding, padding), (0, 0)))
    w_taps = jnp.transpose(w_oihw, (2, 3, 1, 0)).reshape(kh * kw, Cin, Cout)
    w_taps = w_taps.astype(jnp.bfloat16)

    if Cout <= 256:
        tco = Cout
    else:
        tco = 256 if _v7x() else min(Cout, 512)   # split Cout for dual-TC v7x
    n_co = Cout // tco

    kernel = functools.partial(_conv_s1_kernel, kh=kh, kw=kw, oh=OH, ow=OW)
    y, s1p, s2p = pl.pallas_call(
        kernel,
        out_shape=(jax.ShapeDtypeStruct((N, OH * OW, Cout), jnp.bfloat16),
                   jax.ShapeDtypeStruct((N, 1, Cout), jnp.float32),
                   jax.ShapeDtypeStruct((N, 1, Cout), jnp.float32)),
        grid_spec=pltpu.PrefetchScalarGridSpec(
            num_scalar_prefetch=0,
            grid=(n_co, N),      # N innermost: weight block stays resident
            in_specs=[
                pl.BlockSpec((1, HP, WP, Cin), lambda c, n: (n, 0, 0, 0)),
                pl.BlockSpec((kh * kw, Cin, tco), lambda c, n: (0, 0, c)),
            ],
            out_specs=(
                pl.BlockSpec((1, OH * OW, tco), lambda c, n: (n, 0, c)),
                pl.BlockSpec((1, 1, tco), lambda c, n: (n, 0, c)),
                pl.BlockSpec((1, 1, tco), lambda c, n: (n, 0, c)),
            )),
        compiler_params=pltpu.CompilerParams(
            dimension_semantics=("parallel", "parallel")),
    )(xp, w_taps)
    s1 = jnp.sum(s1p, axis=(0, 1))
    s2 = jnp.sum(s2p, axis=(0, 1))
    return y.reshape(N, OH, OW, Cout), s1, s2


def conv2d(x_nhwc, w_oihw, stride, padding):
    """NHWC conv (no bias) -> (y bf16 NHWC, col-sum f32, col-sumsq f32).

    Per-channel sums over all N*OH*OW output positions come out of the conv
    kernel epilogue, so BatchNorm never re-reads the activation for stats.
    """
    N, H, W, Cin = x_nhwc.shape
    Cout, Cin2, kh, kw = w_oihw.shape
    assert Cin == Cin2
    x_bf = x_nhwc.astype(jnp.bfloat16)

    if kh == 1 and kw == 1 and padding == 0:
        # 1x1 downsample conv: strided slice + GEMM (no patch extraction).
        xs = x_bf[:, ::stride, ::stride, :]
        _, OH, OW, _ = xs.shape
        a = xs.reshape(N * OH * OW, Cin)
        b = jnp.transpose(w_oihw.reshape(Cout, Cin)).astype(jnp.bfloat16)
        y, s1, s2 = matmul_pallas(a, b)
        return y.reshape(N, OH, OW, Cout), s1, s2

    if stride == 1:
        return _conv2d_direct_s1(x_bf, w_oihw, padding)

    # Strided convs (conv1 7x7/s2 + three 3x3/s2): im2col in bf16 + GEMM.
    # TODO(synk): strided direct-conv kernel (in-kernel strided slices) not
    # implemented; these few convs keep a small (~2.25x input) patch tensor.
    patches = lax.conv_general_dilated_patches(
        x_bf, filter_shape=(kh, kw), window_strides=(stride, stride),
        padding=((padding, padding), (padding, padding)),
        dimension_numbers=("NHWC", "HWIO", "NHWC"))
    _, OH, OW, K = patches.shape   # feature dim is (cin, kh, kw)-major
    a = patches.reshape(N * OH * OW, K)
    b = jnp.transpose(w_oihw.reshape(Cout, K)).astype(jnp.bfloat16)
    y, s1, s2 = matmul_pallas(a, b)
    return y.reshape(N, OH, OW, Cout), s1, s2


# ----------------------------------------------------------------------------
# BatchNorm apply (stats come from the conv epilogue), fused add / ReLU
# ----------------------------------------------------------------------------
def _bn_act_kernel(x_ref, a_ref, b_ref, o_ref, *, relu):
    y = x_ref[...].astype(jnp.float32) * a_ref[...] + b_ref[...]
    if relu:
        y = jnp.maximum(y, 0.0)
    o_ref[...] = y.astype(o_ref.dtype)


def _bn_add_act_kernel(x_ref, a_ref, b_ref, r_ref, o_ref, *, relu):
    y = (x_ref[...].astype(jnp.float32) * a_ref[...] + b_ref[...]
         + r_ref[...].astype(jnp.float32))
    if relu:
        y = jnp.maximum(y, 0.0)
    o_ref[...] = y.astype(o_ref.dtype)


def _bn_row_tile(mf, cf, budget=2 << 20):
    if mf * cf * 2 <= budget:
        return mf
    for t in (8192, 4096, 2048, 1024, 512, 256, 128, 64, 32, 16, 8):
        if t < mf and mf % t == 0 and t * cf * 2 <= budget:
            return t
    return mf


def batchnorm_apply(x2d, s1, s2, count, gamma, beta, residual=None,
                    relu=True, eps=1e-5):
    """Training-mode BN over rows of (M, C) bf16, f32 math, bf16 output.

    For C < 128 the tensor is folded lane-dense: (M, C) -> (M/f, C*f),
    f = 128 // C, so stores are full-lane.
    """
    M, C = x2d.shape
    mean = s1 / count
    var = jnp.maximum(s2 / count - mean * mean, 0.0)   # biased, torch train()
    inv = gamma / jnp.sqrt(var + eps)
    scale = inv
    shift = beta - mean * inv

    f = 1
    if C < 128 and 128 % C == 0 and M % (128 // C) == 0:
        f = 128 // C
    Mf, Cf = M // f, C * f
    x_f = x2d.reshape(Mf, Cf)
    r_f = residual.reshape(Mf, Cf) if residual is not None else None
    a = jnp.tile(scale, f).reshape(1, Cf).astype(jnp.float32)
    b = jnp.tile(shift, f).reshape(1, Cf).astype(jnp.float32)

    tm = _bn_row_tile(Mf, Cf)
    x_spec = pl.BlockSpec((tm, Cf), lambda i: (i, 0))
    p_spec = pl.BlockSpec((1, Cf), lambda i: (0, 0))

    if r_f is None:
        kernel = functools.partial(_bn_act_kernel, relu=relu)
        in_specs = [x_spec, p_spec, p_spec]
        args = (x_f, a, b)
    else:
        kernel = functools.partial(_bn_add_act_kernel, relu=relu)
        in_specs = [x_spec, p_spec, p_spec, x_spec]
        args = (x_f, a, b, r_f)

    y_f = pl.pallas_call(
        kernel,
        out_shape=jax.ShapeDtypeStruct((Mf, Cf), jnp.bfloat16),
        grid_spec=pltpu.PrefetchScalarGridSpec(
            num_scalar_prefetch=0, grid=(Mf // tm,),
            in_specs=in_specs, out_specs=x_spec),
        compiler_params=pltpu.CompilerParams(
            dimension_semantics=("parallel",)),
    )(*args)
    return y_f.reshape(M, C)


# ----------------------------------------------------------------------------
# MaxPool / residual block
# ----------------------------------------------------------------------------
def maxpool_3x3_s2_p1(x_nhwc):
    # TODO(synk): 3x3/s2 max-pool stays lax.reduce_window (windowed max has no
    # clean matmul/elementwise Pallas mapping worth hand-rolling here).
    return lax.reduce_window(
        x_nhwc, jnp.array(-jnp.inf, x_nhwc.dtype), lax.max,
        window_dimensions=(1, 3, 3, 1),
        window_strides=(1, 2, 2, 1),
        padding=((0, 0), (1, 1), (1, 1), (0, 0)))


def basic_block(x, p, stride):
    N, H, W, _ = x.shape
    out, s1, s2 = conv2d(x, p["conv1_w"], stride, 1)
    Nb, OH, OW, Co = out.shape
    M = Nb * OH * OW
    h = batchnorm_apply(out.reshape(M, Co), s1, s2, M,
                        p["bn1_g"], p["bn1_b"], relu=True)
    out2, t1, t2 = conv2d(h.reshape(Nb, OH, OW, Co), p["conv2_w"], 1, 1)
    if "ds_w" in p:
        idn, d1, d2 = conv2d(x, p["ds_w"], stride, 0)
        identity = batchnorm_apply(idn.reshape(M, Co), d1, d2, M,
                                   p["ds_g"], p["ds_b"], relu=False)
    else:
        identity = x.reshape(M, Co)
    y = batchnorm_apply(out2.reshape(M, Co), t1, t2, M,
                        p["bn2_g"], p["bn2_b"],
                        residual=identity, relu=True)
    return y.reshape(Nb, OH, OW, Co)


# ----------------------------------------------------------------------------
# Head kernel: AvgPool2d(4) + fc_mu + fc_logvar + reparameterize + KLD (f32)
# ----------------------------------------------------------------------------
def _head_kernel(feat_ref, wmu_ref, bmu_ref, wlv_ref, blv_ref, eps_ref,
                 z_ref, kld_ref):
    feat = jnp.mean(feat_ref[...], axis=1)                       # (B, 512)
    mu = jnp.dot(feat, wmu_ref[...],
                 preferred_element_type=jnp.float32) + bmu_ref[...]
    logvar = jnp.dot(feat, wlv_ref[...],
                     preferred_element_type=jnp.float32) + blv_ref[...]
    z_ref[...] = mu + jnp.exp(0.5 * logvar) * eps_ref[...]
    term = 1.0 + logvar - mu * mu - jnp.exp(logvar)              # 0 on pad cols
    kld_per = -0.5 * jnp.sum(term, axis=1, keepdims=True)        # (B, 1)
    kld_ref[...] = jnp.mean(kld_per, axis=0, keepdims=True)      # (1, 1)


def reparameterize_head(feat_spatial, w_mu, b_mu, w_lv, b_lv, eps, out_dim):
    B = feat_spatial.shape[0]
    D = w_mu.shape[0]
    Dp = 128 * ((out_dim + 127) // 128)

    def pad_w(w):
        return jnp.zeros((D, Dp), jnp.float32).at[:, :out_dim].set(w)

    def pad_b(b):
        return jnp.zeros((1, Dp), jnp.float32).at[0, :out_dim].set(b)

    eps_p = jnp.zeros((B, Dp), jnp.float32).at[:, :out_dim].set(eps)

    z_p, kld = pl.pallas_call(
        _head_kernel,
        out_shape=(jax.ShapeDtypeStruct((B, Dp), jnp.float32),
                   jax.ShapeDtypeStruct((1, 1), jnp.float32)),
    )(feat_spatial.astype(jnp.float32),
      pad_w(w_mu), pad_b(b_mu), pad_w(w_lv), pad_b(b_lv), eps_p)
    return z_p[:, :out_dim], kld[0, 0]


# ----------------------------------------------------------------------------
# Parameter init (deterministic synthetic; shapes match torchvision resnet18)
# ----------------------------------------------------------------------------
def init_params(key, out_dim):
    keys = iter(jax.random.split(key, 64))

    def conv_w(k, cout, cin, kh, kw):
        fan_in = cin * kh * kw
        return (jax.random.normal(k, (cout, cin, kh, kw), jnp.float32)
                * jnp.sqrt(2.0 / fan_in))

    params = {
        "conv1_w": conv_w(next(keys), 64, 3, 7, 7),
        "bn1_g": jnp.ones(64, jnp.float32),
        "bn1_b": jnp.zeros(64, jnp.float32),
    }
    layer_cfg = [(64, 64, 1), (64, 128, 2), (128, 256, 2), (256, 512, 2)]
    layers = []
    for (cin, cout, stride) in layer_cfg:
        blocks = []
        for bi in range(2):
            s = stride if bi == 0 else 1
            ci = cin if bi == 0 else cout
            blk = {
                "conv1_w": conv_w(next(keys), cout, ci, 3, 3),
                "bn1_g": jnp.ones(cout, jnp.float32),
                "bn1_b": jnp.zeros(cout, jnp.float32),
                "conv2_w": conv_w(next(keys), cout, cout, 3, 3),
                "bn2_g": jnp.ones(cout, jnp.float32),
                "bn2_b": jnp.zeros(cout, jnp.float32),
            }
            if bi == 0 and (s != 1 or ci != cout):
                blk["ds_w"] = conv_w(next(keys), cout, ci, 1, 1)
                blk["ds_g"] = jnp.ones(cout, jnp.float32)
                blk["ds_b"] = jnp.zeros(cout, jnp.float32)
            blocks.append(blk)
        layers.append(blocks)
    params["layers"] = layers

    lim = 1.0 / jnp.sqrt(512.0)
    params["fc_mu_w"] = jax.random.normal(next(keys), (512, out_dim)) * lim
    params["fc_mu_b"] = jax.random.normal(next(keys), (out_dim,)) * lim
    params["fc_lv_w"] = jax.random.normal(next(keys), (512, out_dim)) * lim
    params["fc_lv_b"] = jax.random.normal(next(keys), (out_dim,)) * lim
    return params


# ----------------------------------------------------------------------------
# Full Encoder forward
# ----------------------------------------------------------------------------
@functools.partial(jax.jit, static_argnames=("out_dim",))
def encoder_forward(params, x_nchw, eps, *, out_dim):
    x = jnp.transpose(x_nchw, (0, 2, 3, 1)).astype(jnp.bfloat16)  # NCHW->NHWC
    x, s1, s2 = conv2d(x, params["conv1_w"], stride=2, padding=3)
    N, H, W, C = x.shape
    M = N * H * W
    x = batchnorm_apply(x.reshape(M, C), s1, s2, M,
                        params["bn1_g"], params["bn1_b"],
                        relu=True).reshape(N, H, W, C)
    x = maxpool_3x3_s2_p1(x)

    strides = (1, 2, 2, 2)
    for li, blocks in enumerate(params["layers"]):
        for bi, blk in enumerate(blocks):
            s = strides[li] if bi == 0 else 1
            x = basic_block(x, blk, s)

    # x: (B, 4, 4, 512) -> AvgPool2d(4) + squeeze + reparameterize in the head
    B = x.shape[0]
    feat_spatial = x.reshape(B, 16, 512)
    return reparameterize_head(feat_spatial,
                               params["fc_mu_w"], params["fc_mu_b"],
                               params["fc_lv_w"], params["fc_lv_b"],
                               eps, out_dim)


# ----------------------------------------------------------------------------
# One-time numerical check of both conv paths against lax.conv (small shapes)
# ----------------------------------------------------------------------------
def _self_check():
    k = jax.random.PRNGKey(7)
    kx, kw = jax.random.split(k)
    x = jax.random.normal(kx, (2, 12, 12, 16), jnp.float32).astype(jnp.bfloat16)
    w = jax.random.normal(kw, (32, 16, 3, 3), jnp.float32) * 0.1
    w_hwio = jnp.transpose(w.astype(jnp.bfloat16).astype(jnp.float32),
                           (2, 3, 1, 0))
    for stride in (1, 2):   # stride 1 -> direct kernel, stride 2 -> im2col path
        y = conv2d(x, w, stride, 1)[0].astype(jnp.float32)
        ref = lax.conv_general_dilated(
            x.astype(jnp.float32), w_hwio, (stride, stride), ((1, 1), (1, 1)),
            dimension_numbers=("NHWC", "HWIO", "NHWC"))
        err = float(jnp.max(jnp.abs(y - ref)))
        assert err < 0.1, ("conv path mismatch", stride, err)


if __name__ == "__main__":
    _self_check()

    out_dim = 32
    B = 2
    key = jax.random.PRNGKey(0)
    kp, kx, ke = jax.random.split(key, 3)

    params = init_params(kp, out_dim)
    # 128x128 input so that layer4 output is 4x4 (matches AvgPool2d(kernel=4)).
    x = jax.random.normal(kx, (B, 3, 128, 128), jnp.float32)      # NCHW
    eps = jax.random.normal(ke, (B, out_dim), jnp.float32)        # randn_like(mu)

    z, kld = encoder_forward(params, x, eps, out_dim=out_dim)
    jax.block_until_ready((z, kld))

    assert z.shape == (B, out_dim), z.shape
    assert kld.shape == (), kld.shape
    assert bool(jnp.all(jnp.isfinite(z))) and bool(jnp.isfinite(kld))
    print("KERNEL_OK")
</pallas_src>

<mosaic_0001>
module attributes {stable_mosaic.version = 11 : i64} {
  func.func @_conv_s1_kernel(%arg0: i32, %arg1: i32, %arg2: memref<1x14x14x16xbf16, #tpu.memory_space<vmem>>, %arg3: memref<9x16x32xbf16, #tpu.memory_space<vmem>>, %arg4: memref<1x144x32xbf16, #tpu.memory_space<vmem>>, %arg5: memref<1x1x32xf32, #tpu.memory_space<vmem>>, %arg6: memref<1x1x32xf32, #tpu.memory_space<vmem>>) attributes {dimension_semantics = [#tpu.dimension_semantics<parallel>, #tpu.dimension_semantics<parallel>], iteration_bounds = array<i64: 1, 2>, scalar_prefetch = 0 : i64, scratch_operands = 0 : i64, tpu.core_type = #tpu.core_type<tc>, window_params = [{transform_indices = @transform_0, window_bounds = array<i64: 1, 14, 14, 16>}, {transform_indices = @transform_1, window_bounds = array<i64: 9, 16, 32>}, {transform_indices = @transform_2, window_bounds = array<i64: 1, 144, 32>}, {transform_indices = @transform_3, window_bounds = array<i64: 1, 1, 32>}, {transform_indices = @transform_4, window_bounds = array<i64: 1, 1, 32>}]} {
    %cst = arith.constant 0.000000e+00 : f32
    %0 = vector.broadcast %cst : f32 to vector<144x32xf32>
    %c0 = arith.constant 0 : index
    %c0_0 = arith.constant 0 : index
    %c0_1 = arith.constant 0 : index
    %c0_2 = arith.constant 0 : index
    %1 = vector.load %arg2[%c0, %c0_0, %c0_1, %c0_2] : memref<1x14x14x16xbf16, #tpu.memory_space<vmem>>, vector<1x12x12x16xbf16>
    %2 = vector.shape_cast %1 : vector<1x12x12x16xbf16> to vector<12x12x16xbf16>
    %3 = vector.shape_cast %2 : vector<12x12x16xbf16> to vector<144x16xbf16>
    %c0_3 = arith.constant 0 : index
    %c0_4 = arith.constant 0 : index
    %c0_5 = arith.constant 0 : index
    %4 = vector.load %arg3[%c0_3, %c0_4, %c0_5] : memref<9x16x32xbf16, #tpu.memory_space<vmem>>, vector<1x16x32xbf16>
    %5 = vector.shape_cast %4 : vector<1x16x32xbf16> to vector<16x32xbf16>
    %cst_6 = arith.constant dense<0.000000e+00> : vector<144x32xf32>
    %6 = tpu.matmul %3, %5, %cst_6 {dimension_numbers = #tpu.dot_dimension_numbers<[1], [0], [0], [1], [0, 0, 1, 1], [], []>} : vector<144x16xbf16>, vector<16x32xbf16>, vector<144x32xf32> -> vector<144x32xf32>
    %7 = arith.addf %0, %6 : vector<144x32xf32>
    %c0_7 = arith.constant 0 : index
    %c0_8 = arith.constant 0 : index
    %c1 = arith.constant 1 : index
    %c0_9 = arith.constant 0 : index
    %8 = vector.load %arg2[%c0_7, %c0_8, %c1, %c0_9] : memref<1x14x14x16xbf16, #tpu.memory_space<vmem>>, vector<1x12x12x16xbf16>
    %9 = vector.shape_cast %8 : vector<1x12x12x16xbf16> to vector<12x12x16xbf16>
    %10 = vector.shape_cast %9 : vector<12x12x16xbf16> to vector<144x16xbf16>
    %c1_10 = arith.constant 1 : index
    %c0_11 = arith.constant 0 : index
    %c0_12 = arith.constant 0 : index
    %11 = vector.load %arg3[%c1_10, %c0_11, %c0_12] : memref<9x16x32xbf16, #tpu.memory_space<vmem>>, vector<1x16x32xbf16>
    %12 = vector.shape_cast %11 : vector<1x16x32xbf16> to vector<16x32xbf16>
    %cst_13 = arith.constant dense<0.000000e+00> : vector<144x32xf32>
    %13 = tpu.matmul %10, %12, %cst_13 {dimension_numbers = #tpu.dot_dimension_numbers<[1], [0], [0], [1], [0, 0, 1, 1], [], []>} : vector<144x16xbf16>, vector<16x32xbf16>, vector<144x32xf32> -> vector<144x32xf32>
    %14 = arith.addf %7, %13 : vector<144x32xf32>
    %c0_14 = arith.constant 0 : index
    %c0_15 = arith.constant 0 : index
    %c2 = arith.constant 2 : index
    %c0_16 = arith.constant 0 : index
    %15 = vector.load %arg2[%c0_14, %c0_15, %c2, %c0_16] : memref<1x14x14x16xbf16, #tpu.memory_space<vmem>>, vector<1x12x12x16xbf16>
    %16 = vector.shape_cast %15 : vector<1x12x12x16xbf16> to vector<12x12x16xbf16>
    %17 = vector.shape_cast %16 : vector<12x12x16xbf16> to vector<144x16xbf16>
    %c2_17 = arith.constant 2 : index
    %c0_18 = arith.constant 0 : index
    %c0_19 = arith.constant 0 : index
    %18 = vector.load %arg3[%c2_17, %c0_18, %c0_19] : memref<9x16x32xbf16, #tpu.memory_space<vmem>>, vector<1x16x32xbf16>
    %19 = vector.shape_cast %18 : vector<1x16x32xbf16> to vector<16x32xbf16>
    %cst_20 = arith.constant dense<0.000000e+00> : vector<144x32xf32>
    %20 = tpu.matmul %17, %19, %cst_20 {dimension_numbers = #tpu.dot_dimension_numbers<[1], [0], [0], [1], [0, 0, 1, 1], [], []>} : vector<144x16xbf16>, vector<16x32xbf16>, vector<144x32xf32> -> vector<144x32xf32>
    %21 = arith.addf %14, %20 : vector<144x32xf32>
    %c0_21 = arith.constant 0 : index
    %c1_22 = arith.constant 1 : index
    %c0_23 = arith.constant 0 : index
    %c0_24 = arith.constant 0 : index
    %22 = vector.load %arg2[%c0_21, %c1_22, %c0_23, %c0_24] : memref<1x14x14x16xbf16, #tpu.memory_space<vmem>>, vector<1x12x12x16xbf16>
    %23 = vector.shape_cast %22 : vector<1x12x12x16xbf16> to vector<12x12x16xbf16>
    %24 = vector.shape_cast %23 : vector<12x12x16xbf16> to vector<144x16xbf16>
    %c3 = arith.constant 3 : index
    %c0_25 = arith.constant 0 : index
    %c0_26 = arith.constant 0 : index
    %25 = vector.load %arg3[%c3, %c0_25, %c0_26] : memref<9x16x32xbf16, #tpu.memory_space<vmem>>, vector<1x16x32xbf16>
    %26 = vector.shape_cast %25 : vector<1x16x32xbf16> to vector<16x32xbf16>
    %cst_27 = arith.constant dense<0.000000e+00> : vector<144x32xf32>
    %27 = tpu.matmul %24, %26, %cst_27 {dimension_numbers = #tpu.dot_dimension_numbers<[1], [0], [0], [1], [0, 0, 1, 1], [], []>} : vector<144x16xbf16>, vector<16x32xbf16>, vector<144x32xf32> -> vector<144x32xf32>
    %28 = arith.addf %21, %27 : vector<144x32xf32>
    %c0_28 = arith.constant 0 : index
    %c1_29 = arith.constant 1 : index
    %c1_30 = arith.constant 1 : index
    %c0_31 = arith.constant 0 : index
    %29 = vector.load %arg2[%c0_28, %c1_29, %c1_30, %c0_31] : memref<1x14x14x16xbf16, #tpu.memory_space<vmem>>, vector<1x12x12x16xbf16>
    %30 = vector.shape_cast %29 : vector<1x12x12x16xbf16> to vector<12x12x16xbf16>
    %31 = vector.shape_cast %30 : vector<12x12x16xbf16> to vector<144x16xbf16>
    %c4 = arith.constant 4 : index
    %c0_32 = arith.constant 0 : index
    %c0_33 = arith.constant 0 : index
    %32 = vector.load %arg3[%c4, %c0_32, %c0_33] : memref<9x16x32xbf16, #tpu.memory_space<vmem>>, vector<1x16x32xbf16>
    %33 = vector.shape_cast %32 : vector<1x16x32xbf16> to vector<16x32xbf16>
    %cst_34 = arith.constant dense<0.000000e+00> : vector<144x32xf32>
    %34 = tpu.matmul %31, %33, %cst_34 {dimension_numbers = #tpu.dot_dimension_numbers<[1], [0], [0], [1], [0, 0, 1, 1], [], []>} : vector<144x16xbf16>, vector<16x32xbf16>, vector<144x32xf32> -> vector<144x32xf32>
    %35 = arith.addf %28, %34 : vector<144x32xf32>
    %c0_35 = arith.constant 0 : index
    %c1_36 = arith.constant 1 : index
    %c2_37 = arith.constant 2 : index
    %c0_38 = arith.constant 0 : index
    %36 = vector.load %arg2[%c0_35, %c1_36, %c2_37, %c0_38] : memref<1x14x14x16xbf16, #tpu.memory_space<vmem>>, vector<1x12x12x16xbf16>
    %37 = vector.shape_cast %36 : vector<1x12x12x16xbf16> to vector<12x12x16xbf16>
    %38 = vector.shape_cast %37 : vector<12x12x16xbf16> to vector<144x16xbf16>
    %c5 = arith.constant 5 : index
    %c0_39 = arith.constant 0 : index
    %c0_40 = arith.constant 0 : index
    %39 = vector.load %arg3[%c5, %c0_39, %c0_40] : memref<9x16x32xbf16, #tpu.memory_space<vmem>>, vector<1x16x32xbf16>
    %40 = vector.shape_cast %39 : vector<1x16x32xbf16> to vector<16x32xbf16>
    %cst_41 = arith.constant dense<0.000000e+00> : vector<144x32xf32>
    %41 = tpu.matmul %38, %40, %cst_41 {dimension_numbers = #tpu.dot_dimension_numbers<[1], [0], [0], [1], [0, 0, 1, 1], [], []>} : vector<144x16xbf16>, vector<16x32xbf16>, vector<144x32xf32> -> vector<144x32xf32>
    %42 = arith.addf %35, %41 : vector<144x32xf32>
    %c0_42 = arith.constant 0 : index
    %c2_43 = arith.constant 2 : index
    %c0_44 = arith.constant 0 : index
    %c0_45 = arith.constant 0 : index
    %43 = vector.load %arg2[%c0_42, %c2_43, %c0_44, %c0_45] : memref<1x14x14x16xbf16, #tpu.memory_space<vmem>>, vector<1x12x12x16xbf16>
    %44 = vector.shape_cast %43 : vector<1x12x12x16xbf16> to vector<12x12x16xbf16>
    %45 = vector.shape_cast %44 : vector<12x12x16xbf16> to vector<144x16xbf16>
    %c6 = arith.constant 6 : index
    %c0_46 = arith.constant 0 : index
    %c0_47 = arith.constant 0 : index
    %46 = vector.load %arg3[%c6, %c0_46, %c0_47] : memref<9x16x32xbf16, #tpu.memory_space<vmem>>, vector<1x16x32xbf16>
    %47 = vector.shape_cast %46 : vector<1x16x32xbf16> to vector<16x32xbf16>
    %cst_48 = arith.constant dense<0.000000e+00> : vector<144x32xf32>
    %48 = tpu.matmul %45, %47, %cst_48 {dimension_numbers = #tpu.dot_dimension_numbers<[1], [0], [0], [1], [0, 0, 1, 1], [], []>} : vector<144x16xbf16>, vector<16x32xbf16>, vector<144x32xf32> -> vector<144x32xf32>
    %49 = arith.addf %42, %48 : vector<144x32xf32>
    %c0_49 = arith.constant 0 : index
    %c2_50 = arith.constant 2 : index
    %c1_51 = arith.constant 1 : index
    %c0_52 = arith.constant 0 : index
    %50 = vector.load %arg2[%c0_49, %c2_50, %c1_51, %c0_52] : memref<1x14x14x16xbf16, #tpu.memory_space<vmem>>, vector<1x12x12x16xbf16>
    %51 = vector.shape_cast %50 : vector<1x12x12x16xbf16> to vector<12x12x16xbf16>
    %52 = vector.shape_cast %51 : vector<12x12x16xbf16> to vector<144x16xbf16>
    %c7 = arith.constant 7 : index
    %c0_53 = arith.constant 0 : index
    %c0_54 = arith.constant 0 : index
    %53 = vector.load %arg3[%c7, %c0_53, %c0_54] : memref<9x16x32xbf16, #tpu.memory_space<vmem>>, vector<1x16x32xbf16>
    %54 = vector.shape_cast %53 : vector<1x16x32xbf16> to vector<16x32xbf16>
    %cst_55 = arith.constant dense<0.000000e+00> : vector<144x32xf32>
    %55 = tpu.matmul %52, %54, %cst_55 {dimension_numbers = #tpu.dot_dimension_numbers<[1], [0], [0], [1], [0, 0, 1, 1], [], []>} : vector<144x16xbf16>, vector<16x32xbf16>, vector<144x32xf32> -> vector<144x32xf32>
    %56 = arith.addf %49, %55 : vector<144x32xf32>
    %c0_56 = arith.constant 0 : index
    %c2_57 = arith.constant 2 : index
    %c2_58 = arith.constant 2 : index
    %c0_59 = arith.constant 0 : index
    %57 = vector.load %arg2[%c0_56, %c2_57, %c2_58, %c0_59] : memref<1x14x14x16xbf16, #tpu.memory_space<vmem>>, vector<1x12x12x16xbf16>
    %58 = vector.shape_cast %57 : vector<1x12x12x16xbf16> to vector<12x12x16xbf16>
    %59 = vector.shape_cast %58 : vector<12x12x16xbf16> to vector<144x16xbf16>
    %c8 = arith.constant 8 : index
    %c0_60 = arith.constant 0 : index
    %c0_61 = arith.constant 0 : index
    %60 = vector.load %arg3[%c8, %c0_60, %c0_61] : memref<9x16x32xbf16, #tpu.memory_space<vmem>>, vector<1x16x32xbf16>
    %61 = vector.shape_cast %60 : vector<1x16x32xbf16> to vector<16x32xbf16>
    %cst_62 = arith.constant dense<0.000000e+00> : vector<144x32xf32>
    %62 = tpu.matmul %59, %61, %cst_62 {dimension_numbers = #tpu.dot_dimension_numbers<[1], [0], [0], [1], [0, 0, 1, 1], [], []>} : vector<144x16xbf16>, vector<16x32xbf16>, vector<144x32xf32> -> vector<144x32xf32>
    %63 = arith.addf %56, %62 : vector<144x32xf32>
    %64 = arith.truncf %63 : vector<144x32xf32> to vector<144x32xbf16>
    %c0_63 = arith.constant 0 : index
    %c0_64 = arith.constant 0 : index
    %c0_65 = arith.constant 0 : index
    %65 = vector.load %arg4[%c0_63, %c0_64, %c0_65] : memref<1x144x32xbf16, #tpu.memory_space<vmem>>, vector<1x144x32xbf16>
    %66 = vector.shape_cast %65 : vector<1x144x32xbf16> to vector<144x32xbf16>
    %67 = vector.shape_cast %64 : vector<144x32xbf16> to vector<1x144x32xbf16>
    tpu.vector_store %arg4[%c0_63, %c0_64, %c0_65], %67 {strides = array<i32>} : memref<1x144x32xbf16, #tpu.memory_space<vmem>>, vector<1x144x32xbf16>,
    %cst_66 = arith.constant dense<0.000000e+00> : vector<32xf32>
    %68 = vector.multi_reduction <add>, %63, %cst_66 [0] : vector<144x32xf32> to vector<32xf32>
    %69 = vector.shape_cast %68 : vector<32xf32> to vector<1x32xf32>
    %c0_67 = arith.constant 0 : index
    %c0_68 = arith.constant 0 : index
    %c0_69 = arith.constant 0 : index
    %70 = vector.load %arg5[%c0_67, %c0_68, %c0_69] : memref<1x1x32xf32, #tpu.memory_space<vmem>>, vector<1x1x32xf32>
    %71 = vector.shape_cast %70 : vector<1x1x32xf32> to vector<1x32xf32>
    %72 = vector.shape_cast %69 : vector<1x32xf32> to vector<1x1x32xf32>
    tpu.vector_store %arg5[%c0_67, %c0_68, %c0_69], %72 {strides = array<i32>} : memref<1x1x32xf32, #tpu.memory_space<vmem>>, vector<1x1x32xf32>,
    %73 = arith.mulf %63, %63 : vector<144x32xf32>
    %cst_70 = arith.constant dense<0.000000e+00> : vector<32xf32>
    %74 = vector.multi_reduction <add>, %73, %cst_70 [0] : vector<144x32xf32> to vector<32xf32>
    %75 = vector.shape_cast %74 : vector<32xf32> to vector<1x32xf32>
    %c0_71 = arith.constant 0 : index
    %c0_72 = arith.constant 0 : index
    %c0_73 = arith.constant 0 : index
    %76 = vector.load %arg6[%c0_71, %c0_72, %c0_73] : memref<1x1x32xf32, #tpu.memory_space<vmem>>, vector<1x1x32xf32>
    %77 = vector.shape_cast %76 : vector<1x1x32xf32> to vector<1x32xf32>
    %78 = vector.shape_cast %75 : vector<1x32xf32> to vector<1x1x32xf32>
    tpu.vector_store %arg6[%c0_71, %c0_72, %c0_73], %78 {strides = array<i32>} : memref<1x1x32xf32, #tpu.memory_space<vmem>>, vector<1x1x32xf32>,
    return
  }
  func.func @transform_0(%arg0: i32, %arg1: i32) -> (i32, i32, i32, i32) {
    %c0_i32 = arith.constant 0 : i32
    %c0_i32_0 = arith.constant 0 : i32
    %c0_i32_1 = arith.constant 0 : i32
    %c0_i32_2 = arith.constant 0 : i32
    return %arg1, %c0_i32, %c0_i32_0, %c0_i32_1 : i32, i32, i32, i32
  }
  func.func @transform_1(%arg0: i32, %arg1: i32) -> (i32, i32, i32) {
    %c0_i32 = arith.constant 0 : i32
    %c0_i32_0 = arith.constant 0 : i32
    %c0_i32_1 = arith.constant 0 : i32
    return %c0_i32, %c0_i32_0, %arg0 : i32, i32, i32
  }
  func.func @transform_2(%arg0: i32, %arg1: i32) -> (i32, i32, i32) {
    %c0_i32 = arith.constant 0 : i32
    %c0_i32_0 = arith.constant 0 : i32
    return %arg1, %c0_i32, %arg0 : i32, i32, i32
  }
  func.func @transform_3(%arg0: i32, %arg1: i32) -> (i32, i32, i32) {
    %c0_i32 = arith.constant 0 : i32
    %c0_i32_0 = arith.constant 0 : i32
    return %arg1, %c0_i32, %arg0 : i32, i32, i32
  }
  func.func @transform_4(%arg0: i32, %arg1: i32) -> (i32, i32, i32) {
    %c0_i32 = arith.constant 0 : i32
    %c0_i32_0 = arith.constant 0 : i32
    return %arg1, %c0_i32, %arg0 : i32, i32, i32
  }
}

</mosaic_0001>

<llo_original>
// kernel: tpu_custom_call.1
$region0: #{tpu_custom_call.1}
  #allocation0 [shape = 'u32[]', space=smem, size = 0x4, offset = 0x4, fixed_abs, tag = 'smem constant byte address 0x4 - core index']
  #allocation1 [shape = 'u32[144,128]{1,0:T(1,128)}', space=vmem, size = 0x12000, scoped, tag = 'internal scratch']
  %s0 = inlined_call_operand.vmem [shape: bf16[2,14,14,16], index: 0, kind: input, shape index: {}]
  %s1 = inlined_call_operand.vmem [shape: bf16[9,16,32], index: 1, kind: input, shape index: {}]
  %s2 = inlined_call_operand.vmem [shape: bf16[2,144,32], index: 2, kind: output, shape index: {0}]
  %s3 = inlined_call_operand.hbm [shape: f32[2,1,32], index: 3, kind: output, shape index: {1}]
  %s4 = inlined_call_operand.hbm [shape: f32[2,1,32], index: 4, kind: output, shape index: {2}]
  %5 = xla_tuple %s2, %s3, %s4
  %s6 = sld [smem:[#allocation0]]
  $region57: #{tpu_custom_call.1} parent=0
    _
  %s8 = ssub.s32 1, %s6
  %s9 = scalar_select 0, %s8, %s6
  $region1: #{tpu_custom_call.1} parent=0
    #allocation2 [shape = 'u8[1024]{0}', space=vmem, size = 0x400, scoped, tag = 'output window, operand 1']
    #allocation3 [shape = 's32[2]{0}', space=sflag, size = 0x8, scoped, tag = 'scoped memory for tpu_custom_call.1']
    #allocation4 [shape = 'u8[1024]{0}', space=vmem, size = 0x400, scoped, tag = 'output window, operand 2']
    #allocation5 [shape = 's32[2]{0}', space=sflag, size = 0x8, scoped, tag = 'scoped memory for tpu_custom_call.1']
    %10 = vsyncpa [#allocation3], 0
    %s11 = scalar_lea.sflag [#allocation3], 1
    %12 = vsyncpa %s11, 0
    %13 = vsyncpa [#allocation5], 0
    %s14 = scalar_lea.sflag [#allocation5], 1
    %15 = vsyncpa %s14, 0
    loop: start=0, step=1, limit=4
    $region2: #{tpu_custom_call.1} parent=1 // loop_pre_header
      _
    $region3: #{tpu_custom_call.1} parent=1 // loop_header
      %s17 = sphi 0, %s21
      %p18 = scmp.ge.s32.totalorder %s17, 4
      %s24 = sphi 0, %s36
      %s25 = sphi 0, %s32
      %s26 = sphi 0, %s24
      %s27 = sphi 0, %s25
      %s28 = sphi 0, %s26
      %s29 = sphi 0, %s27
      %s39 = sphi 0, %s41
      %s42 = sphi 0, %s39
      %s43 = sphi 0, %s42
      %s59 = sphi 0, %s43
      %s65 = sphi 0, %s67
      %s68 = sphi 0, %s65
      %s69 = sphi 0, %s68
      %s85 = sphi 0, %s69
      %s93 = sphi 0, %s95
      %s96 = sphi 0, %s93
      %s97 = sphi 0, %s96
      %s113 = sphi 0, %s97
      %s121 = sphi 0, %s123
      %s124 = sphi 0, %s121
      %s125 = sphi 0, %s124
      %s141 = sphi 0, %s125
      %s149 = sphi 0, %s151
      %s152 = sphi 0, %s149
      %s153 = sphi 0, %s152
      %s169 = sphi 0, %s153
    $region4: #{tpu_custom_call.1} parent=1 // loop_header_branch
      %20 = sbr.rel (%p18) target = $region8
    $region5: #{tpu_custom_call.1} parent=1 // loop_body
      %s22 = ssub.s32 %s17, 1
      %s23 = ssub.s32 %s17, 2
      %s30 = sadd.s32 1, %s25
      %p31 = scmp.ge.s32.totalorder %s30, 2
      %s32 = scalar_select %p31, 0, %s30
      %s33 = sadd.s32 1, %s24
      %s34 = scalar_select %p31, %s33, %s24
      %p35 = scmp.ge.s32.totalorder %s34, 1
      %s36 = scalar_select %p35, 0, %s34
      %s37 = ssub.s32 %s25, %s32
      %p38 = scmp.eq.s32.totalorder %s37, 0
      %s40 = sadd.s32 %s39, 1
      %s41 = scalar_select %p38, %s39, %s40
      %p44 = pneg %p38
      %p45 = scmp.eq.s32.totalorder %s17, 1
      %p46 = por %p44, %p45
      %p47 = scmp.ne.s32.totalorder %s39, %s42
      %p48 = scmp.eq.s32.totalorder %s17, 0
      %p49 = por %p47, %p48
      %p50 = scmp.ne.s32.totalorder %s39, %s42
      %p51 = scmp.eq.s32.totalorder %s22, 1
      %p52 = por %p50, %p51
      %p53 = scmp.ne.s32.totalorder %s42, %s43
      %p54 = scmp.eq.s32.totalorder %s22, 0
      %p55 = por %p53, %p54
      %p56 = scmp.ne.s32.totalorder %s42, %s43
      %p57 = scmp.eq.s32.totalorder %s23, 1
      %p58 = por %p56, %p57
      %p60 = scmp.ne.s32.totalorder %s43, %s59
      %p61 = scmp.eq.s32.totalorder %s23, 0
      %p62 = por %p60, %p61
      %s63 = ssub.s32 %s24, %s36
      %p64 = scmp.eq.s32.totalorder %s63, 0
      %s66 = sadd.s32 %s65, 1
      %s67 = scalar_select %p64, %s65, %s66
      %p70 = pneg %p64
      %p71 = scmp.eq.s32.totalorder %s17, 1
      %p72 = por %p70, %p71
      %p73 = scmp.ne.s32.totalorder %s65, %s68
      %p74 = scmp.eq.s32.totalorder %s17, 0
      %p75 = por %p73, %p74
      %p76 = scmp.ne.s32.totalorder %s65, %s68
      %p77 = scmp.eq.s32.totalorder %s22, 1
      %p78 = por %p76, %p77
      %p79 = scmp.ne.s32.totalorder %s68, %s69
      %p80 = scmp.eq.s32.totalorder %s22, 0
      %p81 = por %p79, %p80
      %p82 = scmp.ne.s32.totalorder %s68, %s69
      %p83 = scmp.eq.s32.totalorder %s23, 1
      %p84 = por %p82, %p83
      %p86 = scmp.ne.s32.totalorder %s69, %s85
      %p87 = scmp.eq.s32.totalorder %s23, 0
      %p88 = por %p86, %p87
      %s89 = ssub.s32 %s25, %s32
      %s90 = ssub.s32 %s24, %s36
      %s91 = sor.u32 %s89, %s90
      %p92 = scmp.eq.s32.totalorder %s91, 0
      %s94 = sadd.s32 %s93, 1
      %s95 = scalar_select %p92, %s93, %s94
      %p98 = pneg %p92
      %p99 = scmp.eq.s32.totalorder %s17, 1
      %p100 = por %p98, %p99
      %p101 = scmp.ne.s32.totalorder %s93, %s96
      %p102 = scmp.eq.s32.totalorder %s17, 0
      %p103 = por %p101, %p102
      %p104 = scmp.ne.s32.totalorder %s93, %s96
      %p105 = scmp.eq.s32.totalorder %s22, 1
      %p106 = por %p104, %p105
      %p107 = scmp.ne.s32.totalorder %s96, %s97
      %p108 = scmp.eq.s32.totalorder %s22, 0
      %p109 = por %p107, %p108
      %p110 = scmp.ne.s32.totalorder %s96, %s97
      %p111 = scmp.eq.s32.totalorder %s23, 1
      %p112 = por %p110, %p111
      %p114 = scmp.ne.s32.totalorder %s97, %s113
      %p115 = scmp.eq.s32.totalorder %s23, 0
      %p116 = por %p114, %p115
      %s117 = ssub.s32 %s25, %s32
      %s118 = ssub.s32 %s24, %s36
      %s119 = sor.u32 %s117, %s118
      %p120 = scmp.eq.s32.totalorder %s119, 0
      %s122 = sadd.s32 %s121, 1
      %s123 = scalar_select %p120, %s121, %s122
      %p126 = pneg %p120
      %p127 = scmp.eq.s32.totalorder %s17, 1
      %p128 = por %p126, %p127
      %p129 = scmp.ne.s32.totalorder %s121, %s124
      %p130 = scmp.eq.s32.totalorder %s17, 0
      %p131 = por %p129, %p130
      %p132 = scmp.ne.s32.totalorder %s121, %s124
      %p133 = scmp.eq.s32.totalorder %s22, 1
      %p134 = por %p132, %p133
      %p135 = scmp.ne.s32.totalorder %s124, %s125
      %p136 = scmp.eq.s32.totalorder %s22, 0
      %p137 = por %p135, %p136
      %p138 = scmp.ne.s32.totalorder %s124, %s125
      %p139 = scmp.eq.s32.totalorder %s23, 1
      %p140 = por %p138, %p139
      %p142 = scmp.ne.s32.totalorder %s125, %s141
      %p143 = scmp.eq.s32.totalorder %s23, 0
      %p144 = por %p142, %p143
      %s145 = ssub.s32 %s25, %s32
      %s146 = ssub.s32 %s24, %s36
      %s147 = sor.u32 %s145, %s146
      %p148 = scmp.eq.s32.totalorder %s147, 0
      %s150 = sadd.s32 %s149, 1
      %s151 = scalar_select %p148, %s149, %s150
      %p154 = pneg %p148
      %p155 = scmp.eq.s32.totalorder %s17, 1
      %p156 = por %p154, %p155
      %p157 = scmp.ne.s32.totalorder %s149, %s152
      %p158 = scmp.eq.s32.totalorder %s17, 0
      %p159 = por %p157, %p158
      %p160 = scmp.ne.s32.totalorder %s149, %s152
      %p161 = scmp.eq.s32.totalorder %s22, 1
      %p162 = por %p160, %p161
      %p163 = scmp.ne.s32.totalorder %s152, %s153
      %p164 = scmp.eq.s32.totalorder %s22, 0
      %p165 = por %p163, %p164
      %p166 = scmp.ne.s32.totalorder %s152, %s153
      %p167 = scmp.eq.s32.totalorder %s23, 1
      %p168 = por %p166, %p167
      %p170 = scmp.ne.s32.totalorder %s153, %s169
      %p171 = scmp.eq.s32.totalorder %s23, 0
      %p172 = por %p170, %p171
      %p173 = scmp.le.s32.totalorder 1, %s17
      %p174 = scmp.lt.s32.totalorder %s17, 3
      %p175 = pnand %p173, %p174
      %p176 = pneg %p175
      // Predicated region
      $region9: #{tpu_custom_call.1} parent=5 // pred_check
        _
      $region10: #{tpu_custom_call.1} parent=5 // pred_check_branch
        %178 = sbr.rel (%p175) target = $region12
      $region11: #{tpu_custom_call.1} parent=5 // pred_region
        %s179 = ssub.s32 %s17, 1
        // Predicated region
        $region13: #{tpu_custom_call.1} parent=11 // pred_check
          %p180 = pneg %p81
        $region14: #{tpu_custom_call.1} parent=11 // pred_check_branch
          %182 = sbr.rel (%p180) target = $region16
        $region15: #{tpu_custom_call.1} parent=11 // pred_region
          %p183 = scmp.lt.s32.totalorder %s26, 0
          %s184 = scalar_select %p183, %s26, 0
          %s185 = smul.addr %s184, 4
          %s186 = scalar_lea.vmem %s1, %s185
        $region16: #{tpu_custom_call.1} parent=11 // pred_fallthru
          _
      $region12: #{tpu_custom_call.1} parent=5 // pred_fallthru
        _
      %p187 = scmp.lt.s32.totalorder %s17, 2
      // Predicated region
      $region17: #{tpu_custom_call.1} parent=5 // pred_check
        %p188 = pneg %p187
      $region18: #{tpu_custom_call.1} parent=5 // pred_check_branch
        %190 = sbr.rel (%p188) target = $region20
      $region19: #{tpu_custom_call.1} parent=5 // pred_region
        // Predicated region
        $region21: #{tpu_custom_call.1} parent=19 // pred_check
          %p191 = pneg %p49
        $region22: #{tpu_custom_call.1} parent=19 // pred_check_branch
          %193 = sbr.rel (%p191) target = $region24
        $region23: #{tpu_custom_call.1} parent=19 // pred_region
          %p194 = scmp.lt.s32.totalorder %s25, 1
          %s195 = scalar_select %p194, %s25, 1
          %s196 = smul.addr %s195, 28
          %s197 = smul.addr %s196, 4
          %s198 = scalar_lea.vmem %s0, %s197
        $region24: #{tpu_custom_call.1} parent=19 // pred_fallthru
          _
      $region20: #{tpu_custom_call.1} parent=5 // pred_fallthru
        _
      %p199 = scmp.le.s32.totalorder 1, %s17
      %p200 = scmp.lt.s32.totalorder %s17, 3
      %p201 = pnand %p199, %p200
      %p202 = pneg %p201
      // Predicated region
      $region25: #{tpu_custom_call.1} parent=5 // pred_check
        _
      $region26: #{tpu_custom_call.1} parent=5 // pred_check_branch
        %204 = sbr.rel (%p201) target = $region28
      $region27: #{tpu_custom_call.1} parent=5 // pred_region
        %s205 = ssub.s32 %s17, 1
        %p206 = scmp.lt.s32.totalorder %s27, 1
        %s207 = scalar_select %p206, %s27, 1
        %s208 = smul.addr %s207, 28
        %s209 = smul.addr %s208, 4
        %s210 = scalar_lea.vmem %s0, %s209
        %p211 = pneg %p55
        %p212 = pneg %p52
        %p213 = scmp.lt.s32.totalorder %s26, 0
        %s214 = scalar_select %p213, %s26, 0
        %s215 = smul.addr %s214, 4
        %s216 = scalar_lea.vmem %s1, %s215
        %p217 = pneg %p81
        %p218 = pneg %p78
        %p219 = pneg %p109
        %p220 = pneg %p106
        %p221 = scmp.lt.s32.totalorder %s27, 1
        %s222 = scalar_select %p221, %s27, 1
        %p223 = scmp.lt.s32.totalorder %s26, 0
        %s224 = scalar_select %p223, %s26, 0
        %s225 = smul.addr %s222, 18
        %s226 = sadd.s32 %s224, %s225
        %s227 = smul.addr %s226, 4
        %s228 = scalar_lea.vmem %s2, %s227
        %p229 = pneg %p137
        %p230 = pneg %p134
        %s231 = sand.u32 %s124, 1
        %s232 = scalar_lea.sflag [#allocation3], %s231
        %s233 = sand.u32 %s124, 1
        %s234 = scalar_lea.vmem [#allocation2], %s233
        %p235 = pneg %p165
        %p236 = pneg %p162
        %s237 = sand.u32 %s152, 1
        %s238 = scalar_lea.sflag [#allocation5], %s237
        %s239 = sand.u32 %s152, 1
        %s240 = scalar_lea.vmem [#allocation4], %s239
        %p241 = scmp.lt.s32.totalorder %s27, 1
        %s242 = scalar_select %p241, %s27, 1
        %s243 = smul.addr %s242, 28
        %s244 = smul.addr %s243, 4
        %s245 = scalar_lea.vmem %s0, %s244
        %p246 = scmp.lt.s32.totalorder %s26, 0
        %s247 = scalar_select %p246, %s26, 0
        %s248 = smul.addr %s247, 4
        %s249 = scalar_lea.vmem %s1, %s248
        %p250 = scmp.lt.s32.totalorder %s27, 1
        %s251 = scalar_select %p250, %s27, 1
        %p252 = scmp.lt.s32.totalorder %s26, 0
        %s253 = scalar_select %p252, %s26, 0
        %s254 = smul.addr %s251, 18
        %s255 = sadd.s32 %s253, %s254
        %s256 = smul.addr %s255, 4
        %s257 = scalar_lea.vmem %s2, %s256
        %v259 = vld [vmem:[%s245] sm:$0xf]
        %v260 = vld [vmem:[%s245 + $0x4] sm:$0x3]
        %v261 = vld [vmem:[%s245 + $0x8] sm:$0xf]
        %v262 = vld [vmem:[%s245 + $0xc] sm:$0x3]
        %v263 = vld [vmem:[%s245 + $0x10] sm:$0xf]
        %v264 = vld [vmem:[%s245 + $0x14] sm:$0x3]
        %v265 = vld [vmem:[%s245 + $0x18] sm:$0xf]
        %v266 = vld [vmem:[%s245 + $0x1c] sm:$0x3]
        %v267 = vld [vmem:[%s245 + $0x20] sm:$0xf]
        %v268 = vld [vmem:[%s245 + $0x24] sm:$0x3]
        %v269 = vld [vmem:[%s245 + $0x28] sm:$0xf]
        %v270 = vld [vmem:[%s245 + $0x2c] sm:$0x3]
        %v271 = vld [vmem:[%s245 + $0x30] sm:$0xf]
        %v272 = vld [vmem:[%s245 + $0x34] sm:$0x3]
        %v273 = vld [vmem:[%s245 + $0x38] sm:$0xf]
        %v274 = vld [vmem:[%s245 + $0x3c] sm:$0x3]
        %v275 = vld [vmem:[%s245 + $0x40] sm:$0xf]
        %v276 = vld [vmem:[%s245 + $0x44] sm:$0x3]
        %v277 = vld [vmem:[%s245 + $0x48] sm:$0xf]
        %v278 = vld [vmem:[%s245 + $0x4c] sm:$0x3]
        %v279 = vld [vmem:[%s245 + $0x50] sm:$0xf]
        %v280 = vld [vmem:[%s245 + $0x54] sm:$0x3]
        %v281 = vld [vmem:[%s245 + $0x58] sm:$0xf]
        %v282 = vld [vmem:[%s245 + $0x5c] sm:$0x3]
        %v308 = vunpack.c.l.s4 1983009808
        %v309 = vunpack.c.0.s8 %v308
        %v310 = vlaneseq
        %v311 = vshrl.u32 %v310, 7
        %v312 = vsub.s32 %v309, %v311
        %v313 = vrot.slane %v259, %v312
        %v314 = vcombine.high %v313, %v313
        %v316 = vunpack.c.l.s4 1983009808
        %v317 = vunpack.c.0.s8 %v316
        %v318 = vlaneseq
        %v319 = vshrl.u32 %v318, 7
        %v320 = vsub.s32 %v317, %v319
        %v321 = vrot.slane %v260, %v320
        %v323 = vunpack.c.l.s4 1983009808
        %v324 = vunpack.c.0.s8 %v323
        %v325 = vlaneseq
        %v326 = vshrl.u32 %v325, 7
        %v327 = vsub.s32 %v324, %v326
        %v328 = vrot.slane %v261, %v327
        %v329 = vcombine.high %v328, %v328
        %v331 = vunpack.c.l.s4 1983009808
        %v332 = vunpack.c.0.s8 %v331
        %v333 = vlaneseq
        %v334 = vshrl.u32 %v333, 7
        %v335 = vsub.s32 %v332, %v334
        %v336 = vrot.slane %v262, %v335
        %v338 = vunpack.c.l.s4 1983009808
        %v339 = vunpack.c.0.s8 %v338
        %v340 = vlaneseq
        %v341 = vshrl.u32 %v340, 7
        %v342 = vsub.s32 %v339, %v341
        %v343 = vrot.slane %v263, %v342
        %v344 = vcombine.high %v343, %v343
        %v346 = vunpack.c.l.s4 1983009808
        %v347 = vunpack.c.0.s8 %v346
        %v348 = vlaneseq
        %v349 = vshrl.u32 %v348, 7
        %v350 = vsub.s32 %v347, %v349
        %v351 = vrot.slane %v264, %v350
        %v353 = vunpack.c.l.s4 1983009808
        %v354 = vunpack.c.0.s8 %v353
        %v355 = vlaneseq
        %v356 = vshrl.u32 %v355, 7
        %v357 = vsub.s32 %v354, %v356
        %v358 = vrot.slane %v265, %v357
        %v359 = vcombine.high %v358, %v358
        %v361 = vunpack.c.l.s4 1983009808
        %v362 = vunpack.c.0.s8 %v361
        %v363 = vlaneseq
        %v364 = vshrl.u32 %v363, 7
        %v365 = vsub.s32 %v362, %v364
        %v366 = vrot.slane %v266, %v365
        %v368 = vunpack.c.l.s4 1983009808
        %v369 = vunpack.c.0.s8 %v368
        %v370 = vlaneseq
        %v371 = vshrl.u32 %v370, 7
        %v372 = vsub.s32 %v369, %v371
        %v373 = vrot.slane %v267, %v372
        %v374 = vcombine.high %v373, %v373
        %v376 = vunpack.c.l.s4 1983009808
        %v377 = vunpack.c.0.s8 %v376
        %v378 = vlaneseq
        %v379 = vshrl.u32 %v378, 7
        %v380 = vsub.s32 %v377, %v379
        %v381 = vrot.slane %v268, %v380
        %v383 = vunpack.c.l.s4 1983009808
        %v384 = vunpack.c.0.s8 %v383
        %v385 = vlaneseq
        %v386 = vshrl.u32 %v385, 7
        %v387 = vsub.s32 %v384, %v386
        %v388 = vrot.slane %v269, %v387
        %v389 = vcombine.high %v388, %v388
        %v391 = vunpack.c.l.s4 1983009808
        %v392 = vunpack.c.0.s8 %v391
        %v393 = vlaneseq
        %v394 = vshrl.u32 %v393, 7
        %v395 = vsub.s32 %v392, %v394
        %v396 = vrot.slane %v270, %v395
        %v398 = vunpack.c.l.s4 1983009808
        %v399 = vunpack.c.0.s8 %v398
        %v400 = vlaneseq
        %v401 = vshrl.u32 %v400, 7
        %v402 = vsub.s32 %v399, %v401
        %v403 = vrot.slane %v271, %v402
        %v404 = vcombine.high %v403, %v403
        %v406 = vunpack.c.l.s4 1983009808
        %v407 = vunpack.c.0.s8 %v406
        %v408 = vlaneseq
        %v409 = vshrl.u32 %v408, 7
        %v410 = vsub.s32 %v407, %v409
        %v411 = vrot.slane %v272, %v410
        %v413 = vunpack.c.l.s4 1983009808
        %v414 = vunpack.c.0.s8 %v413
        %v415 = vlaneseq
        %v416 = vshrl.u32 %v415, 7
        %v417 = vsub.s32 %v414, %v416
        %v418 = vrot.slane %v273, %v417
        %v419 = vcombine.high %v418, %v418
        %v421 = vunpack.c.l.s4 1983009808
        %v422 = vunpack.c.0.s8 %v421
        %v423 = vlaneseq
        %v424 = vshrl.u32 %v423, 7
        %v425 = vsub.s32 %v422, %v424
        %v426 = vrot.slane %v274, %v425
        %v428 = vunpack.c.l.s4 1983009808
        %v429 = vunpack.c.0.s8 %v428
        %v430 = vlaneseq
        %v431 = vshrl.u32 %v430, 7
        %v432 = vsub.s32 %v429, %v431
        %v433 = vrot.slane %v275, %v432
        %v434 = vcombine.high %v433, %v433
        %v436 = vunpack.c.l.s4 1983009808
        %v437 = vunpack.c.0.s8 %v436
        %v438 = vlaneseq
        %v439 = vshrl.u32 %v438, 7
        %v440 = vsub.s32 %v437, %v439
        %v441 = vrot.slane %v276, %v440
        %v443 = vunpack.c.l.s4 1983009808
        %v444 = vunpack.c.0.s8 %v443
        %v445 = vlaneseq
        %v446 = vshrl.u32 %v445, 7
        %v447 = vsub.s32 %v444, %v446
        %v448 = vrot.slane %v277, %v447
        %v449 = vcombine.high %v448, %v448
        %v451 = vunpack.c.l.s4 1983009808
        %v452 = vunpack.c.0.s8 %v451
        %v453 = vlaneseq
        %v454 = vshrl.u32 %v453, 7
        %v455 = vsub.s32 %v452, %v454
        %v456 = vrot.slane %v278, %v455
        %v458 = vunpack.c.l.s4 1983009808
        %v459 = vunpack.c.0.s8 %v458
        %v460 = vlaneseq
        %v461 = vshrl.u32 %v460, 7
        %v462 = vsub.s32 %v459, %v461
        %v463 = vrot.slane %v279, %v462
        %v464 = vcombine.high %v463, %v463
        %v466 = vunpack.c.l.s4 1983009808
        %v467 = vunpack.c.0.s8 %v466
        %v468 = vlaneseq
        %v469 = vshrl.u32 %v468, 7
        %v470 = vsub.s32 %v467, %v469
        %v471 = vrot.slane %v280, %v470
        %v473 = vunpack.c.l.s4 1983009808
        %v474 = vunpack.c.0.s8 %v473
        %v475 = vlaneseq
        %v476 = vshrl.u32 %v475, 7
        %v477 = vsub.s32 %v474, %v476
        %v478 = vrot.slane %v281, %v477
        %v479 = vcombine.high %v478, %v478
        %v481 = vunpack.c.l.s4 1983009808
        %v482 = vunpack.c.0.s8 %v481
        %v483 = vlaneseq
        %v484 = vshrl.u32 %v483, 7
        %v485 = vsub.s32 %v482, %v484
        %v486 = vrot.slane %v282, %v485
        %v487 = vld [vmem:[%s249] sm:$0xf]
        %v488 = vld [vmem:[%s249 + $0x4] sm:$0xf]
        %v489 = vld [vmem:[%s245 + $0x4] sm:$0x7]
        %v490 = vld [vmem:[%s245 + $0xc] sm:$0x7]
        %v491 = vld [vmem:[%s245 + $0x14] sm:$0x7]
        %v492 = vld [vmem:[%s245 + $0x1c] sm:$0x7]
        %v493 = vld [vmem:[%s245 + $0x24] sm:$0x7]
        %v494 = vld [vmem:[%s245 + $0x2c] sm:$0x7]
        %v495 = vld [vmem:[%s245 + $0x34] sm:$0x7]
        %v496 = vld [vmem:[%s245 + $0x3c] sm:$0x7]
        %v497 = vld [vmem:[%s245 + $0x44] sm:$0x7]
        %v498 = vld [vmem:[%s245 + $0x4c] sm:$0x7]
        %v499 = vld [vmem:[%s245 + $0x54] sm:$0x7]
        %v500 = vld [vmem:[%s245 + $0x5c] sm:$0x7]
        %v514 = vunpack.c.l.s4 1983009808
        %v515 = vunpack.c.0.s8 %v514
        %v516 = vlaneseq
        %v517 = vshrl.u32 %v516, 7
        %v518 = vsub.s32 %v515, %v517
        %v519 = vrot.slane %v489, %v518
        %v520 = vcombine.high %v519, %v519
        %v522 = vunpack.c.l.s4 1983009808
        %v523 = vunpack.c.0.s8 %v522
        %v524 = vlaneseq
        %v525 = vshrl.u32 %v524, 7
        %v526 = vsub.s32 %v523, %v525
        %v527 = vrot.slane %v490, %v526
        %v528 = vcombine.high %v527, %v527
        %v530 = vunpack.c.l.s4 1983009808
        %v531 = vunpack.c.0.s8 %v530
        %v532 = vlaneseq
        %v533 = vshrl.u32 %v532, 7
        %v534 = vsub.s32 %v531, %v533
        %v535 = vrot.slane %v491, %v534
        %v536 = vcombine.high %v535, %v535
        %v538 = vunpack.c.l.s4 1983009808
        %v539 = vunpack.c.0.s8 %v538
        %v540 = vlaneseq
        %v541 = vshrl.u32 %v540, 7
        %v542 = vsub.s32 %v539, %v541
        %v543 = vrot.slane %v492, %v542
        %v544 = vcombine.high %v543, %v543
        %v546 = vunpack.c.l.s4 1983009808
        %v547 = vunpack.c.0.s8 %v546
        %v548 = vlaneseq
        %v549 = vshrl.u32 %v548, 7
        %v550 = vsub.s32 %v547, %v549
        %v551 = vrot.slane %v493, %v550
        %v552 = vcombine.high %v551, %v551
        %v554 = vunpack.c.l.s4 1983009808
        %v555 = vunpack.c.0.s8 %v554
        %v556 = vlaneseq
        %v557 = vshrl.u32 %v556, 7
        %v558 = vsub.s32 %v555, %v557
        %v559 = vrot.slane %v494, %v558
        %v560 = vcombine.high %v559, %v559
        %v562 = vunpack.c.l.s4 1983009808
        %v563 = vunpack.c.0.s8 %v562
        %v564 = vlaneseq
        %v565 = vshrl.u32 %v564, 7
        %v566 = vsub.s32 %v563, %v565
        %v567 = vrot.slane %v495, %v566
        %v568 = vcombine.high %v567, %v567
        %v570 = vunpack.c.l.s4 1983009808
        %v571 = vunpack.c.0.s8 %v570
        %v572 = vlaneseq
        %v573 = vshrl.u32 %v572, 7
        %v574 = vsub.s32 %v571, %v573
        %v575 = vrot.slane %v496, %v574
        %v576 = vcombine.high %v575, %v575
        %v578 = vunpack.c.l.s4 1983009808
        %v579 = vunpack.c.0.s8 %v578
        %v580 = vlaneseq
        %v581 = vshrl.u32 %v580, 7
        %v582 = vsub.s32 %v579, %v581
        %v583 = vrot.slane %v497, %v582
        %v584 = vcombine.high %v583, %v583
        %v586 = vunpack.c.l.s4 1983009808
        %v587 = vunpack.c.0.s8 %v586
        %v588 = vlaneseq
        %v589 = vshrl.u32 %v588, 7
        %v590 = vsub.s32 %v587, %v589
        %v591 = vrot.slane %v498, %v590
        %v592 = vcombine.high %v591, %v591
        %v594 = vunpack.c.l.s4 1983009808
        %v595 = vunpack.c.0.s8 %v594
        %v596 = vlaneseq
        %v597 = vshrl.u32 %v596, 7
        %v598 = vsub.s32 %v595, %v597
        %v599 = vrot.slane %v499, %v598
        %v600 = vcombine.high %v599, %v599
        %v602 = vunpack.c.l.s4 1983009808
        %v603 = vunpack.c.0.s8 %v602
        %v604 = vlaneseq
        %v605 = vshrl.u32 %v604, 7
        %v606 = vsub.s32 %v603, %v605
        %v607 = vrot.slane %v500, %v606
        %v608 = vcombine.high %v607, %v607
        %vm609 = vsmask.f32 1280
        %vm610 = vsmask.f32 3336
        %vm611 = vmor %vm609, %vm610
        %vm612 = vsmask.f32 5392
        %vm613 = vmor %vm611, %vm612
        %vm614 = vsmask.f32 7448
        %vm615 = vmor %vm613, %vm614
        %v617 = vshrl.u32 %v313, 16
        %v619 = vrot.slane %v617, 6
        %v620 = vshll.u32 %v313, 16
        %v622 = vrot.slane %v620, 7
        %v623 = vor.u32 %v619, %v622
        %v624 = vrot.slane %v623, 2
        %v626 = vshll.u32 %v314, 16
        %v628 = vrot.slane %v626, 7
        %v629 = vsel %vm615, %v624, %v628
        %v630 = vshrl.u32 %v314, 16
        %v632 = vrot.slane %v630, 6
        %v633 = vor.u32 %v632, %v628
        %v634 = vrot.slane %v633, 2
        %v636 = vshll.u32 %v519, 16
        %v638 = vrot.slane %v636, 7
        %v639 = vsel %vm615, %v634, %v638
        %v640 = vshrl.u32 %v519, 16
        %v642 = vrot.slane %v640, 6
        %v643 = vor.u32 %v642, %v638
        %v644 = vrot.slane %v643, 2
        %v646 = vshll.u32 %v520, 16
        %v648 = vrot.slane %v646, 7
        %v649 = vsel %vm615, %v644, %v648
        %v651 = vshrl.u32 %v328, 16
        %v653 = vrot.slane %v651, 6
        %v654 = vshll.u32 %v328, 16
        %v656 = vrot.slane %v654, 7
        %v657 = vor.u32 %v653, %v656
        %v658 = vrot.slane %v657, 2
        %v660 = vshll.u32 %v329, 16
        %v662 = vrot.slane %v660, 7
        %v663 = vsel %vm615, %v658, %v662
        %v664 = vshrl.u32 %v329, 16
        %v666 = vrot.slane %v664, 6
        %v667 = vor.u32 %v666, %v662
        %v668 = vrot.slane %v667, 2
        %v670 = vshll.u32 %v527, 16
        %v672 = vrot.slane %v670, 7
        %v673 = vsel %vm615, %v668, %v672
        %v674 = vshrl.u32 %v527, 16
        %v676 = vrot.slane %v674, 6
        %v677 = vor.u32 %v676, %v672
        %v678 = vrot.slane %v677, 2
        %v680 = vshll.u32 %v528, 16
        %v682 = vrot.slane %v680, 7
        %v683 = vsel %vm615, %v678, %v682
        %v685 = vshrl.u32 %v343, 16
        %v687 = vrot.slane %v685, 6
        %v688 = vshll.u32 %v343, 16
        %v690 = vrot.slane %v688, 7
        %v691 = vor.u32 %v687, %v690
        %v692 = vrot.slane %v691, 2
        %v694 = vshll.u32 %v344, 16
        %v696 = vrot.slane %v694, 7
        %v697 = vsel %vm615, %v692, %v696
        %v698 = vshrl.u32 %v344, 16
        %v700 = vrot.slane %v698, 6
        %v701 = vor.u32 %v700, %v696
        %v702 = vrot.slane %v701, 2
        %v704 = vshll.u32 %v535, 16
        %v706 = vrot.slane %v704, 7
        %v707 = vsel %vm615, %v702, %v706
        %v708 = vshrl.u32 %v535, 16
        %v710 = vrot.slane %v708, 6
        %v711 = vor.u32 %v710, %v706
        %v712 = vrot.slane %v711, 2
        %v714 = vshll.u32 %v536, 16
        %v716 = vrot.slane %v714, 7
        %v717 = vsel %vm615, %v712, %v716
        %v719 = vshrl.u32 %v358, 16
        %v721 = vrot.slane %v719, 6
        %v722 = vshll.u32 %v358, 16
        %v724 = vrot.slane %v722, 7
        %v725 = vor.u32 %v721, %v724
        %v726 = vrot.slane %v725, 2
        %v728 = vshll.u32 %v359, 16
        %v730 = vrot.slane %v728, 7
        %v731 = vsel %vm615, %v726, %v730
        %v732 = vshrl.u32 %v359, 16
        %v734 = vrot.slane %v732, 6
        %v735 = vor.u32 %v734, %v730
        %v736 = vrot.slane %v735, 2
        %v738 = vshll.u32 %v543, 16
        %v740 = vrot.slane %v738, 7
        %v741 = vsel %vm615, %v736, %v740
        %v742 = vshrl.u32 %v543, 16
        %v744 = vrot.slane %v742, 6
        %v745 = vor.u32 %v744, %v740
        %v746 = vrot.slane %v745, 2
        %v748 = vshll.u32 %v544, 16
        %v750 = vrot.slane %v748, 7
        %v751 = vsel %vm615, %v746, %v750
        %v753 = vshrl.u32 %v373, 16
        %v755 = vrot.slane %v753, 6
        %v756 = vshll.u32 %v373, 16
        %v758 = vrot.slane %v756, 7
        %v759 = vor.u32 %v755, %v758
        %v760 = vrot.slane %v759, 2
        %v762 = vshll.u32 %v374, 16
        %v764 = vrot.slane %v762, 7
        %v765 = vsel %vm615, %v760, %v764
        %v766 = vshrl.u32 %v374, 16
        %v768 = vrot.slane %v766, 6
        %v769 = vor.u32 %v768, %v764
        %v770 = vrot.slane %v769, 2
        %v772 = vshll.u32 %v551, 16
        %v774 = vrot.slane %v772, 7
        %v775 = vsel %vm615, %v770, %v774
        %v776 = vshrl.u32 %v551, 16
        %v778 = vrot.slane %v776, 6
        %v779 = vor.u32 %v778, %v774
        %v780 = vrot.slane %v779, 2
        %v782 = vshll.u32 %v552, 16
        %v784 = vrot.slane %v782, 7
        %v785 = vsel %vm615, %v780, %v784
        %v787 = vshrl.u32 %v388, 16
        %v789 = vrot.slane %v787, 6
        %v790 = vshll.u32 %v388, 16
        %v792 = vrot.slane %v790, 7
        %v793 = vor.u32 %v789, %v792
        %v794 = vrot.slane %v793, 2
        %v796 = vshll.u32 %v389, 16
        %v798 = vrot.slane %v796, 7
        %v799 = vsel %vm615, %v794, %v798
        %v800 = vshrl.u32 %v389, 16
        %v802 = vrot.slane %v800, 6
        %v803 = vor.u32 %v802, %v798
        %v804 = vrot.slane %v803, 2
        %v806 = vshll.u32 %v559, 16
        %v808 = vrot.slane %v806, 7
        %v809 = vsel %vm615, %v804, %v808
        %v810 = vshrl.u32 %v559, 16
        %v812 = vrot.slane %v810, 6
        %v813 = vor.u32 %v812, %v808
        %v814 = vrot.slane %v813, 2
        %v816 = vshll.u32 %v560, 16
        %v818 = vrot.slane %v816, 7
        %v819 = vsel %vm615, %v814, %v818
        %v821 = vshrl.u32 %v403, 16
        %v823 = vrot.slane %v821, 6
        %v824 = vshll.u32 %v403, 16
        %v826 = vrot.slane %v824, 7
        %v827 = vor.u32 %v823, %v826
        %v828 = vrot.slane %v827, 2
        %v830 = vshll.u32 %v404, 16
        %v832 = vrot.slane %v830, 7
        %v833 = vsel %vm615, %v828, %v832
        %v834 = vshrl.u32 %v404, 16
        %v836 = vrot.slane %v834, 6
        %v837 = vor.u32 %v836, %v832
        %v838 = vrot.slane %v837, 2
        %v840 = vshll.u32 %v567, 16
        %v842 = vrot.slane %v840, 7
        %v843 = vsel %vm615, %v838, %v842
        %v844 = vshrl.u32 %v567, 16
        %v846 = vrot.slane %v844, 6
        %v847 = vor.u32 %v846, %v842
        %v848 = vrot.slane %v847, 2
        %v850 = vshll.u32 %v568, 16
        %v852 = vrot.slane %v850, 7
        %v853 = vsel %vm615, %v848, %v852
        %v855 = vshrl.u32 %v418, 16
        %v857 = vrot.slane %v855, 6
        %v858 = vshll.u32 %v418, 16
        %v860 = vrot.slane %v858, 7
        %v861 = vor.u32 %v857, %v860
        %v862 = vrot.slane %v861, 2
        %v864 = vshll.u32 %v419, 16
        %v866 = vrot.slane %v864, 7
        %v867 = vsel %vm615, %v862, %v866
        %v868 = vshrl.u32 %v419, 16
        %v870 = vrot.slane %v868, 6
        %v871 = vor.u32 %v870, %v866
        %v872 = vrot.slane %v871, 2
        %v874 = vshll.u32 %v575, 16
        %v876 = vrot.slane %v874, 7
        %v877 = vsel %vm615, %v872, %v876
        %v878 = vshrl.u32 %v575, 16
        %v880 = vrot.slane %v878, 6
        %v881 = vor.u32 %v880, %v876
        %v882 = vrot.slane %v881, 2
        %v884 = vshll.u32 %v576, 16
        %v886 = vrot.slane %v884, 7
        %v887 = vsel %vm615, %v882, %v886
        %v889 = vshrl.u32 %v433, 16
        %v891 = vrot.slane %v889, 6
        %v892 = vshll.u32 %v433, 16
        %v894 = vrot.slane %v892, 7
        %v895 = vor.u32 %v891, %v894
        %v896 = vrot.slane %v895, 2
        %v898 = vshll.u32 %v434, 16
        %v900 = vrot.slane %v898, 7
        %v901 = vsel %vm615, %v896, %v900
        %v902 = vshrl.u32 %v434, 16
        %v904 = vrot.slane %v902, 6
        %v905 = vor.u32 %v904, %v900
        %v906 = vrot.slane %v905, 2
        %v908 = vshll.u32 %v583, 16
        %v910 = vrot.slane %v908, 7
        %v911 = vsel %vm615, %v906, %v910
        %v912 = vshrl.u32 %v583, 16
        %v914 = vrot.slane %v912, 6
        %v915 = vor.u32 %v914, %v910
        %v916 = vrot.slane %v915, 2
        %v918 = vshll.u32 %v584, 16
        %v920 = vrot.slane %v918, 7
        %v921 = vsel %vm615, %v916, %v920
        %v923 = vshrl.u32 %v448, 16
        %v925 = vrot.slane %v923, 6
        %v926 = vshll.u32 %v448, 16
        %v928 = vrot.slane %v926, 7
        %v929 = vor.u32 %v925, %v928
        %v930 = vrot.slane %v929, 2
        %v932 = vshll.u32 %v449, 16
        %v934 = vrot.slane %v932, 7
        %v935 = vsel %vm615, %v930, %v934
        %v936 = vshrl.u32 %v449, 16
        %v938 = vrot.slane %v936, 6
        %v939 = vor.u32 %v938, %v934
        %v940 = vrot.slane %v939, 2
        %v942 = vshll.u32 %v591, 16
        %v944 = vrot.slane %v942, 7
        %v945 = vsel %vm615, %v940, %v944
        %v946 = vshrl.u32 %v591, 16
        %v948 = vrot.slane %v946, 6
        %v949 = vor.u32 %v948, %v944
        %v950 = vrot.slane %v949, 2
        %v952 = vshll.u32 %v592, 16
        %v954 = vrot.slane %v952, 7
        %v955 = vsel %vm615, %v950, %v954
        %v957 = vshrl.u32 %v463, 16
        %v959 = vrot.slane %v957, 6
        %v960 = vshll.u32 %v463, 16
        %v962 = vrot.slane %v960, 7
        %v963 = vor.u32 %v959, %v962
        %v964 = vrot.slane %v963, 2
        %v966 = vshll.u32 %v464, 16
        %v968 = vrot.slane %v966, 7
        %v969 = vsel %vm615, %v964, %v968
        %v970 = vshrl.u32 %v464, 16
        %v972 = vrot.slane %v970, 6
        %v973 = vor.u32 %v972, %v968
        %v974 = vrot.slane %v973, 2
        %v976 = vshll.u32 %v599, 16
        %v978 = vrot.slane %v976, 7
        %v979 = vsel %vm615, %v974, %v978
        %v980 = vshrl.u32 %v599, 16
        %v982 = vrot.slane %v980, 6
        %v983 = vor.u32 %v982, %v978
        %v984 = vrot.slane %v983, 2
        %v986 = vshll.u32 %v600, 16
        %v988 = vrot.slane %v986, 7
        %v989 = vsel %vm615, %v984, %v988
        %v991 = vshrl.u32 %v478, 16
        %v993 = vrot.slane %v991, 6
        %v994 = vshll.u32 %v478, 16
        %v996 = vrot.slane %v994, 7
        %v997 = vor.u32 %v993, %v996
        %v998 = vrot.slane %v997, 2
        %v1000 = vshll.u32 %v479, 16
        %v1002 = vrot.slane %v1000, 7
        %v1003 = vsel %vm615, %v998, %v1002
        %v1004 = vshrl.u32 %v479, 16
        %v1006 = vrot.slane %v1004, 6
        %v1007 = vor.u32 %v1006, %v1002
        %v1008 = vrot.slane %v1007, 2
        %v1010 = vshll.u32 %v607, 16
        %v1012 = vrot.slane %v1010, 7
        %v1013 = vsel %vm615, %v1008, %v1012
        %v1014 = vshrl.u32 %v607, 16
        %v1016 = vrot.slane %v1014, 6
        %v1017 = vor.u32 %v1016, %v1012
        %v1018 = vrot.slane %v1017, 2
        %v1020 = vshll.u32 %v608, 16
        %v1022 = vrot.slane %v1020, 7
        %v1023 = vsel %vm615, %v1018, %v1022
        %s1024 = scalar_lea.vmem %s249, 8
        %v1025 = vld [vmem:[%s1024] sm:$0xf]
        %v1026 = vld [vmem:[%s1024 + $0x4] sm:$0xf]
        %v1027 = vcombine.low %v629, %v639
        %v1028 = vcombine.low %v649, %v663
        %v1030 = vunpack.c.l.s4 1983009808
        %v1031 = vunpack.c.0.s8 %v1030
        %v1032 = vlaneseq
        %v1033 = vshrl.u32 %v1032, 7
        %v1034 = vsub.s32 %v1031, %v1033
        %v1035 = vrot.slane %v1027, %v1034
        %v1037 = vunpack.c.l.s4 1983009808
        %v1038 = vunpack.c.0.s8 %v1037
        %v1039 = vlaneseq
        %v1040 = vshrl.u32 %v1039, 7
        %v1041 = vsub.s32 %v1038, %v1040
        %v1042 = vrot.slane %v1028, %v1041
        %v1043 = vcombine.low %v1035, %v1042
        %v1044 = vcombine.low %v673, %v683
        %v1045 = vcombine.low %v697, %v707
        %v1047 = vunpack.c.l.s4 1983009808
        %v1048 = vunpack.c.0.s8 %v1047
        %v1049 = vlaneseq
        %v1050 = vshrl.u32 %v1049, 7
        %v1051 = vsub.s32 %v1048, %v1050
        %v1052 = vrot.slane %v1044, %v1051
        %v1054 = vunpack.c.l.s4 1983009808
        %v1055 = vunpack.c.0.s8 %v1054
        %v1056 = vlaneseq
        %v1057 = vshrl.u32 %v1056, 7
        %v1058 = vsub.s32 %v1055, %v1057
        %v1059 = vrot.slane %v1045, %v1058
        %v1060 = vcombine.low %v1052, %v1059
        %v1061 = vcombine.low %v717, %v731
        %v1062 = vcombine.low %v741, %v751
        %v1064 = vunpack.c.l.s4 1983009808
        %v1065 = vunpack.c.0.s8 %v1064
        %v1066 = vlaneseq
        %v1067 = vshrl.u32 %v1066, 7
        %v1068 = vsub.s32 %v1065, %v1067
        %v1069 = vrot.slane %v1061, %v1068
        %v1071 = vunpack.c.l.s4 1983009808
        %v1072 = vunpack.c.0.s8 %v1071
        %v1073 = vlaneseq
        %v1074 = vshrl.u32 %v1073, 7
        %v1075 = vsub.s32 %v1072, %v1074
        %v1076 = vrot.slane %v1062, %v1075
        %v1077 = vcombine.low %v1069, %v1076
        %v1078 = vcombine.low %v765, %v775
        %v1079 = vcombine.low %v785, %v799
        %v1081 = vunpack.c.l.s4 1983009808
        %v1082 = vunpack.c.0.s8 %v1081
        %v1083 = vlaneseq
        %v1084 = vshrl.u32 %v1083, 7
        %v1085 = vsub.s32 %v1082, %v1084
        %v1086 = vrot.slane %v1078, %v1085
        %v1088 = vunpack.c.l.s4 1983009808
        %v1089 = vunpack.c.0.s8 %v1088
        %v1090 = vlaneseq
        %v1091 = vshrl.u32 %v1090, 7
        %v1092 = vsub.s32 %v1089, %v1091
        %v1093 = vrot.slane %v1079, %v1092
        %v1094 = vcombine.low %v1086, %v1093
        %v1095 = vcombine.low %v809, %v819
        %v1096 = vcombine.low %v833, %v843
        %v1098 = vunpack.c.l.s4 1983009808
        %v1099 = vunpack.c.0.s8 %v1098
        %v1100 = vlaneseq
        %v1101 = vshrl.u32 %v1100, 7
        %v1102 = vsub.s32 %v1099, %v1101
        %v1103 = vrot.slane %v1095, %v1102
        %v1105 = vunpack.c.l.s4 1983009808
        %v1106 = vunpack.c.0.s8 %v1105
        %v1107 = vlaneseq
        %v1108 = vshrl.u32 %v1107, 7
        %v1109 = vsub.s32 %v1106, %v1108
        %v1110 = vrot.slane %v1096, %v1109
        %v1111 = vcombine.low %v1103, %v1110
        %v1112 = vcombine.low %v853, %v867
        %v1113 = vcombine.low %v877, %v887
        %v1115 = vunpack.c.l.s4 1983009808
        %v1116 = vunpack.c.0.s8 %v1115
        %v1117 = vlaneseq
        %v1118 = vshrl.u32 %v1117, 7
        %v1119 = vsub.s32 %v1116, %v1118
        %v1120 = vrot.slane %v1112, %v1119
        %v1122 = vunpack.c.l.s4 1983009808
        %v1123 = vunpack.c.0.s8 %v1122
        %v1124 = vlaneseq
        %v1125 = vshrl.u32 %v1124, 7
        %v1126 = vsub.s32 %v1123, %v1125
        %v1127 = vrot.slane %v1113, %v1126
        %v1128 = vcombine.low %v1120, %v1127
        %v1129 = vcombine.low %v901, %v911
        %v1130 = vcombine.low %v921, %v935
        %v1132 = vunpack.c.l.s4 1983009808
        %v1133 = vunpack.c.0.s8 %v1132
        %v1134 = vlaneseq
        %v1135 = vshrl.u32 %v1134, 7
        %v1136 = vsub.s32 %v1133, %v1135
        %v1137 = vrot.slane %v1129, %v1136
        %v1139 = vunpack.c.l.s4 1983009808
        %v1140 = vunpack.c.0.s8 %v1139
        %v1141 = vlaneseq
        %v1142 = vshrl.u32 %v1141, 7
        %v1143 = vsub.s32 %v1140, %v1142
        %v1144 = vrot.slane %v1130, %v1143
        %v1145 = vcombine.low %v1137, %v1144
        %v1146 = vcombine.low %v945, %v955
        %v1147 = vcombine.low %v969, %v979
        %v1149 = vunpack.c.l.s4 1983009808
        %v1150 = vunpack.c.0.s8 %v1149
        %v1151 = vlaneseq
        %v1152 = vshrl.u32 %v1151, 7
        %v1153 = vsub.s32 %v1150, %v1152
        %v1154 = vrot.slane %v1146, %v1153
        %v1156 = vunpack.c.l.s4 1983009808
        %v1157 = vunpack.c.0.s8 %v1156
        %v1158 = vlaneseq
        %v1159 = vshrl.u32 %v1158, 7
        %v1160 = vsub.s32 %v1157, %v1159
        %v1161 = vrot.slane %v1147, %v1160
        %v1162 = vcombine.low %v1154, %v1161
        %v1163 = vcombine.low %v989, %v1003
        %v1164 = vcombine.low %v1013, %v1023
        %v1166 = vunpack.c.l.s4 1983009808
        %v1167 = vunpack.c.0.s8 %v1166
        %v1168 = vlaneseq
        %v1169 = vshrl.u32 %v1168, 7
        %v1170 = vsub.s32 %v1167, %v1169
        %v1171 = vrot.slane %v1163, %v1170
        %v1173 = vunpack.c.l.s4 1983009808
        %v1174 = vunpack.c.0.s8 %v1173
        %v1175 = vlaneseq
        %v1176 = vshrl.u32 %v1175, 7
        %v1177 = vsub.s32 %v1174, %v1176
        %v1178 = vrot.slane %v1164, %v1177
        %v1179 = vcombine.low %v1171, %v1178
        %v1182 = vunpack.c.l.b16 %v1025
        %v1183 = vunpack.c.l.b16 %v1026
        %v1184 = vpack.c.b16 %v1183, %v1182
        %vm1186 = vcmask 130048
        %v1188 = vsel %vm1186, %v1043, 0
        %v1191 = vsel %vm1186, %v1060, 0
        %v1194 = vsel %vm1186, %v1077, 0
        %v1197 = vsel %vm1186, %v1094, 0
        %v1200 = vsel %vm1186, %v1111, 0
        %v1203 = vsel %vm1186, %v1128, 0
        %v1206 = vsel %vm1186, %v1145, 0
        %v1209 = vsel %vm1186, %v1162, 0
        %v1212 = vsel %vm1186, %v1179, 0
        %1214 = vmatprep.subr.bf16.mxu0 0
        %1215 = vmatpush1.bf16.msra.mxu0 %v1184
        %1216 = vmatprep.subr.bf16.mxu0 0
        %1217 = vmatpush1.bf16.msra.mxu0 0
        %1218 = vmatprep.subr.bf16.mxu0 0
        %1219 = vmatpush1.bf16.msra.mxu0 0
        %1220 = vmatprep.subr.bf16.mxu0 0
        %1221 = vmatpush1.bf16.msra.mxu0 0
        %1222 = vmatprep.subr.bf16.mxu0 0
        %1223 = vmatpush1.bf16.msra.mxu0 0
        %1224 = vmatprep.subr.bf16.mxu0 0
        %1225 = vmatpush1.bf16.msra.mxu0 0
        %1226 = vmatprep.subr.bf16.mxu0 0
        %1227 = vmatpush1.bf16.msra.mxu0 0
        %1228 = vmatprep.subr.bf16.mxu0 0
        %1229 = vmatpush1.bf16.msra.mxu0 0
        %1230 = vmatprep.subr.bf16.mxu0 0
        %1231 = vmatpush1.bf16.msra.mxu0 0
        %1232 = vmatprep.subr.bf16.mxu0 0
        %1233 = vmatpush1.bf16.msra.mxu0 0
        %1234 = vmatprep.subr.bf16.mxu0 0
        %1235 = vmatpush1.bf16.msra.mxu0 0
        %1236 = vmatprep.subr.bf16.mxu0 0
        %1237 = vmatpush1.bf16.msra.mxu0 0
        %1238 = vmatprep.subr.bf16.mxu0 0
        %1239 = vmatpush1.bf16.msra.mxu0 0
        %1240 = vmatprep.subr.bf16.mxu0 0
        %1241 = vmatpush1.bf16.msra.mxu0 0
        %1242 = vmatprep.subr.bf16.mxu0 0
        %1243 = vmatpush1.bf16.msra.mxu0 0
        %1244 = vmatprep.subr.bf16.mxu0 0
        %1245 = vmatpush1.bf16.msra.mxu0 0
        %1246 = vmatprep.mubr.bf16.mxu0 0
        %1247 = vmatmul.mubr.bf16.gmra.mrb[0].mxu0 %v1188
        %v1248 = vpop.f32.mrb[0].mxu0
        %v1249 = vadd.f32 0.0, %v1248
        %v1250 = vpop.f32.mrb[0].mxu0
        %v1251 = vpop.f32.mrb[0].mxu0
        %v1252 = vadd.f32 0.0, %v1251
        %v1253 = vpop.f32.mrb[0].mxu0
        %1254 = vmatprep.mubr.bf16.mxu0 0
        %1255 = vmatmul.mubr.bf16.gmra.mrb[0].mxu0 %v1191
        %v1256 = vpop.f32.mrb[0].mxu0
        %v1257 = vadd.f32 0.0, %v1256
        %v1258 = vpop.f32.mrb[0].mxu0
        %v1259 = vpop.f32.mrb[0].mxu0
        %v1260 = vadd.f32 0.0, %v1259
        %v1261 = vpop.f32.mrb[0].mxu0
        %1262 = vmatprep.mubr.bf16.mxu0 0
        %1263 = vmatmul.mubr.bf16.gmra.mrb[0].mxu0 %v1194
        %v1264 = vpop.f32.mrb[0].mxu0
        %v1265 = vadd.f32 0.0, %v1264
        %v1266 = vpop.f32.mrb[0].mxu0
        %v1267 = vpop.f32.mrb[0].mxu0
        %v1268 = vadd.f32 0.0, %v1267
        %v1269 = vpop.f32.mrb[0].mxu0
        %1270 = vmatprep.mubr.bf16.mxu0 0
        %1271 = vmatmul.mubr.bf16.gmra.mrb[0].mxu0 %v1197
        %v1272 = vpop.f32.mrb[0].mxu0
        %v1273 = vadd.f32 0.0, %v1272
        %v1274 = vpop.f32.mrb[0].mxu0
        %v1275 = vpop.f32.mrb[0].mxu0
        %v1276 = vadd.f32 0.0, %v1275
        %v1277 = vpop.f32.mrb[0].mxu0
        %1278 = vmatprep.mubr.bf16.mxu0 0
        %1279 = vmatmul.mubr.bf16.gmra.mrb[0].mxu0 %v1200
        %v1280 = vpop.f32.mrb[0].mxu0
        %v1281 = vadd.f32 0.0, %v1280
        %v1282 = vpop.f32.mrb[0].mxu0
        %v1283 = vpop.f32.mrb[0].mxu0
        %v1284 = vadd.f32 0.0, %v1283
        %v1285 = vpop.f32.mrb[0].mxu0
        %1286 = vmatprep.mubr.bf16.mxu0 0
        %1287 = vmatmul.mubr.bf16.gmra.mrb[0].mxu0 %v1203
        %v1288 = vpop.f32.mrb[0].mxu0
        %v1289 = vadd.f32 0.0, %v1288
        %v1290 = vpop.f32.mrb[0].mxu0
        %v1291 = vpop.f32.mrb[0].mxu0
        %v1292 = vadd.f32 0.0, %v1291
        %v1293 = vpop.f32.mrb[0].mxu0
        %1294 = vmatprep.mubr.bf16.mxu0 0
        %1295 = vmatmul.mubr.bf16.gmra.mrb[0].mxu0 %v1206
        %v1296 = vpop.f32.mrb[0].mxu0
        %v1297 = vadd.f32 0.0, %v1296
        %v1298 = vpop.f32.mrb[0].mxu0
        %v1299 = vpop.f32.mrb[0].mxu0
        %v1300 = vadd.f32 0.0, %v1299
        %v1301 = vpop.f32.mrb[0].mxu0
        %1302 = vmatprep.mubr.bf16.mxu0 0
        %1303 = vmatmul.mubr.bf16.gmra.mrb[0].mxu0 %v1209
        %v1304 = vpop.f32.mrb[0].mxu0
        %v1305 = vadd.f32 0.0, %v1304
        %v1306 = vpop.f32.mrb[0].mxu0
        %v1307 = vpop.f32.mrb[0].mxu0
        %v1308 = vadd.f32 0.0, %v1307
        %v1309 = vpop.f32.mrb[0].mxu0
        %1310 = vmatprep.mubr.bf16.mxu0 0
        %1311 = vmatmul.mubr.bf16.gmra.mrb[0].mxu0 %v1212
        %v1312 = vpop.f32.mrb[0].mxu0
        %v1313 = vadd.f32 0.0, %v1312
        %v1314 = vpop.f32.mrb[0].mxu0
        %v1315 = vpop.f32.mrb[0].mxu0
        %v1316 = vadd.f32 0.0, %v1315
        %v1317 = vpop.f32.mrb[0].mxu0
        %1318 = vdwg.mxu0
        %v1319 = vcombine.low %v313, %v314
        %v1320 = vcombine.low %v321, %v328
        %v1322 = vunpack.c.l.s4 1983009808
        %v1323 = vunpack.c.0.s8 %v1322
        %v1324 = vlaneseq
        %v1325 = vshrl.u32 %v1324, 7
        %v1326 = vsub.s32 %v1323, %v1325
        %v1327 = vrot.slane %v1319, %v1326
        %v1329 = vunpack.c.l.s4 1983009808
        %v1330 = vunpack.c.0.s8 %v1329
        %v1331 = vlaneseq
        %v1332 = vshrl.u32 %v1331, 7
        %v1333 = vsub.s32 %v1330, %v1332
        %v1334 = vrot.slane %v1320, %v1333
        %v1335 = vcombine.low %v1327, %v1334
        %v1336 = vcombine.low %v329, %v336
        %v1337 = vcombine.low %v343, %v344
        %v1339 = vunpack.c.l.s4 1983009808
        %v1340 = vunpack.c.0.s8 %v1339
        %v1341 = vlaneseq
        %v1342 = vshrl.u32 %v1341, 7
        %v1343 = vsub.s32 %v1340, %v1342
        %v1344 = vrot.slane %v1336, %v1343
        %v1346 = vunpack.c.l.s4 1983009808
        %v1347 = vunpack.c.0.s8 %v1346
        %v1348 = vlaneseq
        %v1349 = vshrl.u32 %v1348, 7
        %v1350 = vsub.s32 %v1347, %v1349
        %v1351 = vrot.slane %v1337, %v1350
        %v1352 = vcombine.low %v1344, %v1351
        %v1353 = vcombine.low %v351, %v358
        %v1354 = vcombine.low %v359, %v366
        %v1356 = vunpack.c.l.s4 1983009808
        %v1357 = vunpack.c.0.s8 %v1356
        %v1358 = vlaneseq
        %v1359 = vshrl.u32 %v1358, 7
        %v1360 = vsub.s32 %v1357, %v1359
        %v1361 = vrot.slane %v1353, %v1360
        %v1363 = vunpack.c.l.s4 1983009808
        %v1364 = vunpack.c.0.s8 %v1363
        %v1365 = vlaneseq
        %v1366 = vshrl.u32 %v1365, 7
        %v1367 = vsub.s32 %v1364, %v1366
        %v1368 = vrot.slane %v1354, %v1367
        %v1369 = vcombine.low %v1361, %v1368
        %v1370 = vcombine.low %v373, %v374
        %v1371 = vcombine.low %v381, %v388
        %v1373 = vunpack.c.l.s4 1983009808
        %v1374 = vunpack.c.0.s8 %v1373
        %v1375 = vlaneseq
        %v1376 = vshrl.u32 %v1375, 7
        %v1377 = vsub.s32 %v1374, %v1376
        %v1378 = vrot.slane %v1370, %v1377
        %v1380 = vunpack.c.l.s4 1983009808
        %v1381 = vunpack.c.0.s8 %v1380
        %v1382 = vlaneseq
        %v1383 = vshrl.u32 %v1382, 7
        %v1384 = vsub.s32 %v1381, %v1383
        %v1385 = vrot.slane %v1371, %v1384
        %v1386 = vcombine.low %v1378, %v1385
        %v1387 = vcombine.low %v389, %v396
        %v1388 = vcombine.low %v403, %v404
        %v1390 = vunpack.c.l.s4 1983009808
        %v1391 = vunpack.c.0.s8 %v1390
        %v1392 = vlaneseq
        %v1393 = vshrl.u32 %v1392, 7
        %v1394 = vsub.s32 %v1391, %v1393
        %v1395 = vrot.slane %v1387, %v1394
        %v1397 = vunpack.c.l.s4 1983009808
        %v1398 = vunpack.c.0.s8 %v1397
        %v1399 = vlaneseq
        %v1400 = vshrl.u32 %v1399, 7
        %v1401 = vsub.s32 %v1398, %v1400
        %v1402 = vrot.slane %v1388, %v1401
        %v1403 = vcombine.low %v1395, %v1402
        %v1404 = vcombine.low %v411, %v418
        %v1405 = vcombine.low %v419, %v426
        %v1407 = vunpack.c.l.s4 1983009808
        %v1408 = vunpack.c.0.s8 %v1407
        %v1409 = vlaneseq
        %v1410 = vshrl.u32 %v1409, 7
        %v1411 = vsub.s32 %v1408, %v1410
        %v1412 = vrot.slane %v1404, %v1411
        %v1414 = vunpack.c.l.s4 1983009808
        %v1415 = vunpack.c.0.s8 %v1414
        %v1416 = vlaneseq
        %v1417 = vshrl.u32 %v1416, 7
        %v1418 = vsub.s32 %v1415, %v1417
        %v1419 = vrot.slane %v1405, %v1418
        %v1420 = vcombine.low %v1412, %v1419
        %v1421 = vcombine.low %v433, %v434
        %v1422 = vcombine.low %v441, %v448
        %v1424 = vunpack.c.l.s4 1983009808
        %v1425 = vunpack.c.0.s8 %v1424
        %v1426 = vlaneseq
        %v1427 = vshrl.u32 %v1426, 7
        %v1428 = vsub.s32 %v1425, %v1427
        %v1429 = vrot.slane %v1421, %v1428
        %v1431 = vunpack.c.l.s4 1983009808
        %v1432 = vunpack.c.0.s8 %v1431
        %v1433 = vlaneseq
        %v1434 = vshrl.u32 %v1433, 7
        %v1435 = vsub.s32 %v1432, %v1434
        %v1436 = vrot.slane %v1422, %v1435
        %v1437 = vcombine.low %v1429, %v1436
        %v1438 = vcombine.low %v449, %v456
        %v1439 = vcombine.low %v463, %v464
        %v1441 = vunpack.c.l.s4 1983009808
        %v1442 = vunpack.c.0.s8 %v1441
        %v1443 = vlaneseq
        %v1444 = vshrl.u32 %v1443, 7
        %v1445 = vsub.s32 %v1442, %v1444
        %v1446 = vrot.slane %v1438, %v1445
        %v1448 = vunpack.c.l.s4 1983009808
        %v1449 = vunpack.c.0.s8 %v1448
        %v1450 = vlaneseq
        %v1451 = vshrl.u32 %v1450, 7
        %v1452 = vsub.s32 %v1449, %v1451
        %v1453 = vrot.slane %v1439, %v1452
        %v1454 = vcombine.low %v1446, %v1453
        %v1455 = vcombine.low %v471, %v478
        %v1456 = vcombine.low %v479, %v486
        %v1458 = vunpack.c.l.s4 1983009808
        %v1459 = vunpack.c.0.s8 %v1458
        %v1460 = vlaneseq
        %v1461 = vshrl.u32 %v1460, 7
        %v1462 = vsub.s32 %v1459, %v1461
        %v1463 = vrot.slane %v1455, %v1462
        %v1465 = vunpack.c.l.s4 1983009808
        %v1466 = vunpack.c.0.s8 %v1465
        %v1467 = vlaneseq
        %v1468 = vshrl.u32 %v1467, 7
        %v1469 = vsub.s32 %v1466, %v1468
        %v1470 = vrot.slane %v1456, %v1469
        %v1471 = vcombine.low %v1463, %v1470
        %v1474 = vunpack.c.l.b16 %v487
        %v1475 = vunpack.c.l.b16 %v488
        %v1476 = vpack.c.b16 %v1475, %v1474
        %v1479 = vsel %vm1186, %v1335, 0
        %v1482 = vsel %vm1186, %v1352, 0
        %v1485 = vsel %vm1186, %v1369, 0
        %v1488 = vsel %vm1186, %v1386, 0
        %v1491 = vsel %vm1186, %v1403, 0
        %v1494 = vsel %vm1186, %v1420, 0
        %v1497 = vsel %vm1186, %v1437, 0
        %v1500 = vsel %vm1186, %v1454, 0
        %v1503 = vsel %vm1186, %v1471, 0
        %1505 = vmatprep.subr.bf16.mxu0 0
        %1506 = vmatpush1.bf16.msra.mxu0 %v1476
        %1507 = vmatprep.subr.bf16.mxu0 0
        %1508 = vmatpush1.bf16.msra.mxu0 0
        %1509 = vmatprep.subr.bf16.mxu0 0
        %1510 = vmatpush1.bf16.msra.mxu0 0
        %1511 = vmatprep.subr.bf16.mxu0 0
        %1512 = vmatpush1.bf16.msra.mxu0 0
        %1513 = vmatprep.subr.bf16.mxu0 0
        %1514 = vmatpush1.bf16.msra.mxu0 0
        %1515 = vmatprep.subr.bf16.mxu0 0
        %1516 = vmatpush1.bf16.msra.mxu0 0
        %1517 = vmatprep.subr.bf16.mxu0 0
        %1518 = vmatpush1.bf16.msra.mxu0 0
        %1519 = vmatprep.subr.bf16.mxu0 0
        %1520 = vmatpush1.bf16.msra.mxu0 0
        %1521 = vmatprep.subr.bf16.mxu0 0
        %1522 = vmatpush1.bf16.msra.mxu0 0
        %1523 = vmatprep.subr.bf16.mxu0 0
        %1524 = vmatpush1.bf16.msra.mxu0 0
        %1525 = vmatprep.subr.bf16.mxu0 0
        %1526 = vmatpush1.bf16.msra.mxu0 0
        %1527 = vmatprep.subr.bf16.mxu0 0
        %1528 = vmatpush1.bf16.msra.mxu0 0
        %1529 = vmatprep.subr.bf16.mxu0 0
        %1530 = vmatpush1.bf16.msra.mxu0 0
        %1531 = vmatprep.subr.bf16.mxu0 0
        %1532 = vmatpush1.bf16.msra.mxu0 0
        %1533 = vmatprep.subr.bf16.mxu0 0
        %1534 = vmatpush1.bf16.msra.mxu0 0
        %1535 = vmatprep.subr.bf16.mxu0 0
        %1536 = vmatpush1.bf16.msra.mxu0 0
        %1537 = vmatprep.mubr.bf16.mxu0 0
        %1538 = vmatmul.mubr.bf16.gmra.mrb[0].mxu0 %v1479
        %v1539 = vpop.f32.mrb[0].mxu0
        %v1540 = vadd.f32 %v1249, %v1539
        %v1541 = vpop.f32.mrb[0].mxu0
        %v1542 = vpop.f32.mrb[0].mxu0
        %v1543 = vadd.f32 %v1252, %v1542
        %v1544 = vpop.f32.mrb[0].mxu0
        %1545 = vmatprep.mubr.bf16.mxu0 0
        %1546 = vmatmul.mubr.bf16.gmra.mrb[0].mxu0 %v1482
        %v1547 = vpop.f32.mrb[0].mxu0
        %v1548 = vadd.f32 %v1257, %v1547
        %v1549 = vpop.f32.mrb[0].mxu0
        %v1550 = vpop.f32.mrb[0].mxu0
        %v1551 = vadd.f32 %v1260, %v1550
        %v1552 = vpop.f32.mrb[0].mxu0
        %1553 = vmatprep.mubr.bf16.mxu0 0
        %1554 = vmatmul.mubr.bf16.gmra.mrb[0].mxu0 %v1485
        %v1555 = vpop.f32.mrb[0].mxu0
        %v1556 = vadd.f32 %v1265, %v1555
        %v1557 = vpop.f32.mrb[0].mxu0
        %v1558 = vpop.f32.mrb[0].mxu0
        %v1559 = vadd.f32 %v1268, %v1558
        %v1560 = vpop.f32.mrb[0].mxu0
        %1561 = vmatprep.mubr.bf16.mxu0 0
        %1562 = vmatmul.mubr.bf16.gmra.mrb[0].mxu0 %v1488
        %v1563 = vpop.f32.mrb[0].mxu0
        %v1564 = vadd.f32 %v1273, %v1563
        %v1565 = vpop.f32.mrb[0].mxu0
        %v1566 = vpop.f32.mrb[0].mxu0
        %v1567 = vadd.f32 %v1276, %v1566
        %v1568 = vpop.f32.mrb[0].mxu0
        %1569 = vmatprep.mubr.bf16.mxu0 0
        %1570 = vmatmul.mubr.bf16.gmra.mrb[0].mxu0 %v1491
        %v1571 = vpop.f32.mrb[0].mxu0
        %v1572 = vadd.f32 %v1281, %v1571
        %v1573 = vpop.f32.mrb[0].mxu0
        %v1574 = vpop.f32.mrb[0].mxu0
        %v1575 = vadd.f32 %v1284, %v1574
        %v1576 = vpop.f32.mrb[0].mxu0
        %1577 = vmatprep.mubr.bf16.mxu0 0
        %1578 = vmatmul.mubr.bf16.gmra.mrb[0].mxu0 %v1494
        %v1579 = vpop.f32.mrb[0].mxu0
        %v1580 = vadd.f32 %v1289, %v1579
        %v1581 = vpop.f32.mrb[0].mxu0
        %v1582 = vpop.f32.mrb[0].mxu0
        %v1583 = vadd.f32 %v1292, %v1582
        %v1584 = vpop.f32.mrb[0].mxu0
        %1585 = vmatprep.mubr.bf16.mxu0 0
        %1586 = vmatmul.mubr.bf16.gmra.mrb[0].mxu0 %v1497
        %v1587 = vpop.f32.mrb[0].mxu0
        %v1588 = vadd.f32 %v1297, %v1587
        %v1589 = vpop.f32.mrb[0].mxu0
        %v1590 = vpop.f32.mrb[0].mxu0
        %v1591 = vadd.f32 %v1300, %v1590
        %v1592 = vpop.f32.mrb[0].mxu0
        %1593 = vmatprep.mubr.bf16.mxu0 0
        %1594 = vmatmul.mubr.bf16.gmra.mrb[0].mxu0 %v1500
        %v1595 = vpop.f32.mrb[0].mxu0
        %v1596 = vadd.f32 %v1305, %v1595
        %v1597 = vpop.f32.mrb[0].mxu0
        %v1598 = vpop.f32.mrb[0].mxu0
        %v1599 = vadd.f32 %v1308, %v1598
        %v1600 = vpop.f32.mrb[0].mxu0
        %1601 = vmatprep.mubr.bf16.mxu0 0
        %1602 = vmatmul.mubr.bf16.gmra.mrb[0].mxu0 %v1503
        %v1603 = vpop.f32.mrb[0].mxu0
        %v1604 = vadd.f32 %v1313, %v1603
        %v1605 = vpop.f32.mrb[0].mxu0
        %v1606 = vpop.f32.mrb[0].mxu0
        %v1607 = vadd.f32 %v1316, %v1606
        %v1608 = vpop.f32.mrb[0].mxu0
        %1609 = vdwg.mxu0
        %v1610 = vld [vmem:[%s245] sm:$0xe]
        %v1611 = vld [vmem:[%s245 + $0x4] sm:$0x7]
        %v1612 = vld [vmem:[%s245 + $0x8] sm:$0xe]
        %v1613 = vld [vmem:[%s245 + $0xc] sm:$0x7]
        %v1614 = vld [vmem:[%s245 + $0x10] sm:$0xe]
        %v1615 = vld [vmem:[%s245 + $0x14] sm:$0x7]
        %v1616 = vld [vmem:[%s245 + $0x18] sm:$0xe]
        %v1617 = vld [vmem:[%s245 + $0x1c] sm:$0x7]
        %v1618 = vld [vmem:[%s245 + $0x20] sm:$0xe]
        %v1619 = vld [vmem:[%s245 + $0x24] sm:$0x7]
        %v1620 = vld [vmem:[%s245 + $0x28] sm:$0xe]
        %v1621 = vld [vmem:[%s245 + $0x2c] sm:$0x7]
        %v1622 = vld [vmem:[%s245 + $0x30] sm:$0xe]
        %v1623 = vld [vmem:[%s245 + $0x34] sm:$0x7]
        %v1624 = vld [vmem:[%s245 + $0x38] sm:$0xe]
        %v1625 = vld [vmem:[%s245 + $0x3c] sm:$0x7]
        %v1626 = vld [vmem:[%s245 + $0x40] sm:$0xe]
        %v1627 = vld [vmem:[%s245 + $0x44] sm:$0x7]
        %v1628 = vld [vmem:[%s245 + $0x48] sm:$0xe]
        %v1629 = vld [vmem:[%s245 + $0x4c] sm:$0x7]
        %v1630 = vld [vmem:[%s245 + $0x50] sm:$0xe]
        %v1631 = vld [vmem:[%s245 + $0x54] sm:$0x7]
        %v1632 = vld [vmem:[%s245 + $0x58] sm:$0xe]
        %v1633 = vld [vmem:[%s245 + $0x5c] sm:$0x7]
        %v1659 = vunpack.c.l.s4 1983009808
        %v1660 = vunpack.c.0.s8 %v1659
        %v1661 = vlaneseq
        %v1662 = vshrl.u32 %v1661, 7
        %v1663 = vsub.s32 %v1660, %v1662
        %v1664 = vrot.slane %v1610, %v1663
        %v1665 = vcombine.high %v1664, %v1664
        %v1667 = vunpack.c.l.s4 1983009808
        %v1668 = vunpack.c.0.s8 %v1667
        %v1669 = vlaneseq
        %v1670 = vshrl.u32 %v1669, 7
        %v1671 = vsub.s32 %v1668, %v1670
        %v1672 = vrot.slane %v1611, %v1671
        %v1673 = vcombine.high %v1672, %v1672
        %v1675 = vunpack.c.l.s4 1983009808
        %v1676 = vunpack.c.0.s8 %v1675
        %v1677 = vlaneseq
        %v1678 = vshrl.u32 %v1677, 7
        %v1679 = vsub.s32 %v1676, %v1678
        %v1680 = vrot.slane %v1612, %v1679
        %v1681 = vcombine.high %v1680, %v1680
        %v1683 = vunpack.c.l.s4 1983009808
        %v1684 = vunpack.c.0.s8 %v1683
        %v1685 = vlaneseq
        %v1686 = vshrl.u32 %v1685, 7
        %v1687 = vsub.s32 %v1684, %v1686
        %v1688 = vrot.slane %v1613, %v1687
        %v1689 = vcombine.high %v1688, %v1688
        %v1691 = vunpack.c.l.s4 1983009808
        %v1692 = vunpack.c.0.s8 %v1691
        %v1693 = vlaneseq
        %v1694 = vshrl.u32 %v1693, 7
        %v1695 = vsub.s32 %v1692, %v1694
        %v1696 = vrot.slane %v1614, %v1695
        %v1697 = vcombine.high %v1696, %v1696
        %v1699 = vunpack.c.l.s4 1983009808
        %v1700 = vunpack.c.0.s8 %v1699
        %v1701 = vlaneseq
        %v1702 = vshrl.u32 %v1701, 7
        %v1703 = vsub.s32 %v1700, %v1702
        %v1704 = vrot.slane %v1615, %v1703
        %v1705 = vcombine.high %v1704, %v1704
        %v1707 = vunpack.c.l.s4 1983009808
        %v1708 = vunpack.c.0.s8 %v1707
        %v1709 = vlaneseq
        %v1710 = vshrl.u32 %v1709, 7
        %v1711 = vsub.s32 %v1708, %v1710
        %v1712 = vrot.slane %v1616, %v1711
        %v1713 = vcombine.high %v1712, %v1712
        %v1715 = vunpack.c.l.s4 1983009808
        %v1716 = vunpack.c.0.s8 %v1715
        %v1717 = vlaneseq
        %v1718 = vshrl.u32 %v1717, 7
        %v1719 = vsub.s32 %v1716, %v1718
        %v1720 = vrot.slane %v1617, %v1719
        %v1721 = vcombine.high %v1720, %v1720
        %v1723 = vunpack.c.l.s4 1983009808
        %v1724 = vunpack.c.0.s8 %v1723
        %v1725 = vlaneseq
        %v1726 = vshrl.u32 %v1725, 7
        %v1727 = vsub.s32 %v1724, %v1726
        %v1728 = vrot.slane %v1618, %v1727
        %v1729 = vcombine.high %v1728, %v1728
        %v1731 = vunpack.c.l.s4 1983009808
        %v1732 = vunpack.c.0.s8 %v1731
        %v1733 = vlaneseq
        %v1734 = vshrl.u32 %v1733, 7
        %v1735 = vsub.s32 %v1732, %v1734
        %v1736 = vrot.slane %v1619, %v1735
        %v1737 = vcombine.high %v1736, %v1736
        %v1739 = vunpack.c.l.s4 1983009808
        %v1740 = vunpack.c.0.s8 %v1739
        %v1741 = vlaneseq
        %v1742 = vshrl.u32 %v1741, 7
        %v1743 = vsub.s32 %v1740, %v1742
        %v1744 = vrot.slane %v1620, %v1743
        %v1745 = vcombine.high %v1744, %v1744
        %v1747 = vunpack.c.l.s4 1983009808
        %v1748 = vunpack.c.0.s8 %v1747
        %v1749 = vlaneseq
        %v1750 = vshrl.u32 %v1749, 7
        %v1751 = vsub.s32 %v1748, %v1750
        %v1752 = vrot.slane %v1621, %v1751
        %v1753 = vcombine.high %v1752, %v1752
        %v1755 = vunpack.c.l.s4 1983009808
        %v1756 = vunpack.c.0.s8 %v1755
        %v1757 = vlaneseq
        %v1758 = vshrl.u32 %v1757, 7
        %v1759 = vsub.s32 %v1756, %v1758
        %v1760 = vrot.slane %v1622, %v1759
        %v1761 = vcombine.high %v1760, %v1760
        %v1763 = vunpack.c.l.s4 1983009808
        %v1764 = vunpack.c.0.s8 %v1763
        %v1765 = vlaneseq
        %v1766 = vshrl.u32 %v1765, 7
        %v1767 = vsub.s32 %v1764, %v1766
        %v1768 = vrot.slane %v1623, %v1767
        %v1769 = vcombine.high %v1768, %v1768
        %v1771 = vunpack.c.l.s4 1983009808
        %v1772 = vunpack.c.0.s8 %v1771
        %v1773 = vlaneseq
        %v1774 = vshrl.u32 %v1773, 7
        %v1775 = vsub.s32 %v1772, %v1774
        %v1776 = vrot.slane %v1624, %v1775
        %v1777 = vcombine.high %v1776, %v1776
        %v1779 = vunpack.c.l.s4 1983009808
        %v1780 = vunpack.c.0.s8 %v1779
        %v1781 = vlaneseq
        %v1782 = vshrl.u32 %v1781, 7
        %v1783 = vsub.s32 %v1780, %v1782
        %v1784 = vrot.slane %v1625, %v1783
        %v1785 = vcombine.high %v1784, %v1784
        %v1787 = vunpack.c.l.s4 1983009808
        %v1788 = vunpack.c.0.s8 %v1787
        %v1789 = vlaneseq
        %v1790 = vshrl.u32 %v1789, 7
        %v1791 = vsub.s32 %v1788, %v1790
        %v1792 = vrot.slane %v1626, %v1791
        %v1793 = vcombine.high %v1792, %v1792
        %v1795 = vunpack.c.l.s4 1983009808
        %v1796 = vunpack.c.0.s8 %v1795
        %v1797 = vlaneseq
        %v1798 = vshrl.u32 %v1797, 7
        %v1799 = vsub.s32 %v1796, %v1798
        %v1800 = vrot.slane %v1627, %v1799
        %v1801 = vcombine.high %v1800, %v1800
        %v1803 = vunpack.c.l.s4 1983009808
        %v1804 = vunpack.c.0.s8 %v1803
        %v1805 = vlaneseq
        %v1806 = vshrl.u32 %v1805, 7
        %v1807 = vsub.s32 %v1804, %v1806
        %v1808 = vrot.slane %v1628, %v1807
        %v1809 = vcombine.high %v1808, %v1808
        %v1811 = vunpack.c.l.s4 1983009808
        %v1812 = vunpack.c.0.s8 %v1811
        %v1813 = vlaneseq
        %v1814 = vshrl.u32 %v1813, 7
        %v1815 = vsub.s32 %v1812, %v1814
        %v1816 = vrot.slane %v1629, %v1815
        %v1817 = vcombine.high %v1816, %v1816
        %v1819 = vunpack.c.l.s4 1983009808
        %v1820 = vunpack.c.0.s8 %v1819
        %v1821 = vlaneseq
        %v1822 = vshrl.u32 %v1821, 7
        %v1823 = vsub.s32 %v1820, %v1822
        %v1824 = vrot.slane %v1630, %v1823
        %v1825 = vcombine.high %v1824, %v1824
        %v1827 = vunpack.c.l.s4 1983009808
        %v1828 = vunpack.c.0.s8 %v1827
        %v1829 = vlaneseq
        %v1830 = vshrl.u32 %v1829, 7
        %v1831 = vsub.s32 %v1828, %v1830
        %v1832 = vrot.slane %v1631, %v1831
        %v1833 = vcombine.high %v1832, %v1832
        %v1835 = vunpack.c.l.s4 1983009808
        %v1836 = vunpack.c.0.s8 %v1835
        %v1837 = vlaneseq
        %v1838 = vshrl.u32 %v1837, 7
        %v1839 = vsub.s32 %v1836, %v1838
        %v1840 = vrot.slane %v1632, %v1839
        %v1841 = vcombine.high %v1840, %v1840
        %v1843 = vunpack.c.l.s4 1983009808
        %v1844 = vunpack.c.0.s8 %v1843
        %v1845 = vlaneseq
        %v1846 = vshrl.u32 %v1845, 7
        %v1847 = vsub.s32 %v1844, %v1846
        %v1848 = vrot.slane %v1633, %v1847
        %v1849 = vcombine.high %v1848, %v1848
        %vm1850 = vcmask 1040384
        %vm1851 = vcmask 1042434
        %vm1852 = vmor %vm1850, %vm1851
        %vm1853 = vcmask 1044484
        %vm1854 = vmor %vm1852, %vm1853
        %vm1855 = vcmask 1046534
        %vm1856 = vmor %vm1854, %vm1855
        %v1857 = vrot.slane %v1664, 7
        %v1858 = vrot.slane %v1857, 2
        %v1859 = vrot.slane %v1665, 7
        %v1860 = vsel %vm1856, %v1858, %v1859
        %v1861 = vrot.slane %v1859, 2
        %v1862 = vrot.slane %v1672, 7
        %v1863 = vsel %vm1856, %v1861, %v1862
        %v1864 = vrot.slane %v1862, 2
        %v1865 = vrot.slane %v1673, 7
        %v1866 = vsel %vm1856, %v1864, %v1865
        %v1867 = vrot.slane %v1680, 7
        %v1868 = vrot.slane %v1867, 2
        %v1869 = vrot.slane %v1681, 7
        %v1870 = vsel %vm1856, %v1868, %v1869
        %v1871 = vrot.slane %v1869, 2
        %v1872 = vrot.slane %v1688, 7
        %v1873 = vsel %vm1856, %v1871, %v1872
        %v1874 = vrot.slane %v1872, 2
        %v1875 = vrot.slane %v1689, 7
        %v1876 = vsel %vm1856, %v1874, %v1875
        %v1877 = vrot.slane %v1696, 7
        %v1878 = vrot.slane %v1877, 2
        %v1879 = vrot.slane %v1697, 7
        %v1880 = vsel %vm1856, %v1878, %v1879
        %v1881 = vrot.slane %v1879, 2
        %v1882 = vrot.slane %v1704, 7
        %v1883 = vsel %vm1856, %v1881, %v1882
        %v1884 = vrot.slane %v1882, 2
        %v1885 = vrot.slane %v1705, 7
        %v1886 = vsel %vm1856, %v1884, %v1885
        %v1887 = vrot.slane %v1712, 7
        %v1888 = vrot.slane %v1887, 2
        %v1889 = vrot.slane %v1713, 7
        %v1890 = vsel %vm1856, %v1888, %v1889
        %v1891 = vrot.slane %v1889, 2
        %v1892 = vrot.slane %v1720, 7
        %v1893 = vsel %vm1856, %v1891, %v1892
        %v1894 = vrot.slane %v1892, 2
        %v1895 = vrot.slane %v1721, 7
        %v1896 = vsel %vm1856, %v1894, %v1895
        %v1897 = vrot.slane %v1728, 7
        %v1898 = vrot.slane %v1897, 2
        %v1899 = vrot.slane %v1729, 7
        %v1900 = vsel %vm1856, %v1898, %v1899
        %v1901 = vrot.slane %v1899, 2
        %v1902 = vrot.slane %v1736, 7
        %v1903 = vsel %vm1856, %v1901, %v1902
        %v1904 = vrot.slane %v1902, 2
        %v1905 = vrot.slane %v1737, 7
        %v1906 = vsel %vm1856, %v1904, %v1905
        %v1907 = vrot.slane %v1744, 7
        %v1908 = vrot.slane %v1907, 2
        %v1909 = vrot.slane %v1745, 7
        %v1910 = vsel %vm1856, %v1908, %v1909
        %v1911 = vrot.slane %v1909, 2
        %v1912 = vrot.slane %v1752, 7
        %v1913 = vsel %vm1856, %v1911, %v1912
        %v1914 = vrot.slane %v1912, 2
        %v1915 = vrot.slane %v1753, 7
        %v1916 = vsel %vm1856, %v1914, %v1915
        %v1917 = vrot.slane %v1760, 7
        %v1918 = vrot.slane %v1917, 2
        %v1919 = vrot.slane %v1761, 7
        %v1920 = vsel %vm1856, %v1918, %v1919
        %v1921 = vrot.slane %v1919, 2
        %v1922 = vrot.slane %v1768, 7
        %v1923 = vsel %vm1856, %v1921, %v1922
        %v1924 = vrot.slane %v1922, 2
        %v1925 = vrot.slane %v1769, 7
        %v1926 = vsel %vm1856, %v1924, %v1925
        %v1927 = vrot.slane %v1776, 7
        %v1928 = vrot.slane %v1927, 2
        %v1929 = vrot.slane %v1777, 7
        %v1930 = vsel %vm1856, %v1928, %v1929
        %v1931 = vrot.slane %v1929, 2
        %v1932 = vrot.slane %v1784, 7
        %v1933 = vsel %vm1856, %v1931, %v1932
        %v1934 = vrot.slane %v1932, 2
        %v1935 = vrot.slane %v1785, 7
        %v1936 = vsel %vm1856, %v1934, %v1935
        %v1937 = vrot.slane %v1792, 7
        %v1938 = vrot.slane %v1937, 2
        %v1939 = vrot.slane %v1793, 7
        %v1940 = vsel %vm1856, %v1938, %v1939
        %v1941 = vrot.slane %v1939, 2
        %v1942 = vrot.slane %v1800, 7
        %v1943 = vsel %vm1856, %v1941, %v1942
        %v1944 = vrot.slane %v1942, 2
        %v1945 = vrot.slane %v1801, 7
        %v1946 = vsel %vm1856, %v1944, %v1945
        %v1947 = vrot.slane %v1808, 7
        %v1948 = vrot.slane %v1947, 2
        %v1949 = vrot.slane %v1809, 7
        %v1950 = vsel %vm1856, %v1948, %v1949
        %v1951 = vrot.slane %v1949, 2
        %v1952 = vrot.slane %v1816, 7
        %v1953 = vsel %vm1856, %v1951, %v1952
        %v1954 = vrot.slane %v1952, 2
        %v1955 = vrot.slane %v1817, 7
        %v1956 = vsel %vm1856, %v1954, %v1955
        %v1957 = vrot.slane %v1824, 7
        %v1958 = vrot.slane %v1957, 2
        %v1959 = vrot.slane %v1825, 7
        %v1960 = vsel %vm1856, %v1958, %v1959
        %v1961 = vrot.slane %v1959, 2
        %v1962 = vrot.slane %v1832, 7
        %v1963 = vsel %vm1856, %v1961, %v1962
        %v1964 = vrot.slane %v1962, 2
        %v1965 = vrot.slane %v1833, 7
        %v1966 = vsel %vm1856, %v1964, %v1965
        %v1967 = vrot.slane %v1840, 7
        %v1968 = vrot.slane %v1967, 2
        %v1969 = vrot.slane %v1841, 7
        %v1970 = vsel %vm1856, %v1968, %v1969
        %v1971 = vrot.slane %v1969, 2
        %v1972 = vrot.slane %v1848, 7
        %v1973 = vsel %vm1856, %v1971, %v1972
        %v1974 = vrot.slane %v1972, 2
        %v1975 = vrot.slane %v1849, 7
        %v1976 = vsel %vm1856, %v1974, %v1975
        %s1977 = scalar_lea.vmem %s249, 16
        %v1978 = vld [vmem:[%s1977] sm:$0xf]
        %v1979 = vld [vmem:[%s1977 + $0x4] sm:$0xf]
        %v1980 = vcombine.low %v1860, %v1863
        %v1981 = vcombine.low %v1866, %v1870
        %v1983 = vunpack.c.l.s4 1983009808
        %v1984 = vunpack.c.0.s8 %v1983
        %v1985 = vlaneseq
        %v1986 = vshrl.u32 %v1985, 7
        %v1987 = vsub.s32 %v1984, %v1986
        %v1988 = vrot.slane %v1980, %v1987
        %v1990 = vunpack.c.l.s4 1983009808
        %v1991 = vunpack.c.0.s8 %v1990
        %v1992 = vlaneseq
        %v1993 = vshrl.u32 %v1992, 7
        %v1994 = vsub.s32 %v1991, %v1993
        %v1995 = vrot.slane %v1981, %v1994
        %v1996 = vcombine.low %v1988, %v1995
        %v1997 = vcombine.low %v1873, %v1876
        %v1998 = vcombine.low %v1880, %v1883
        %v2000 = vunpack.c.l.s4 1983009808
        %v2001 = vunpack.c.0.s8 %v2000
        %v2002 = vlaneseq
        %v2003 = vshrl.u32 %v2002, 7
        %v2004 = vsub.s32 %v2001, %v2003
        %v2005 = vrot.slane %v1997, %v2004
        %v2007 = vunpack.c.l.s4 1983009808
        %v2008 = vunpack.c.0.s8 %v2007
        %v2009 = vlaneseq
        %v2010 = vshrl.u32 %v2009, 7
        %v2011 = vsub.s32 %v2008, %v2010
        %v2012 = vrot.slane %v1998, %v2011
        %v2013 = vcombine.low %v2005, %v2012
        %v2014 = vcombine.low %v1886, %v1890
        %v2015 = vcombine.low %v1893, %v1896
        %v2017 = vunpack.c.l.s4 1983009808
        %v2018 = vunpack.c.0.s8 %v2017
        %v2019 = vlaneseq
        %v2020 = vshrl.u32 %v2019, 7
        %v2021 = vsub.s32 %v2018, %v2020
        %v2022 = vrot.slane %v2014, %v2021
        %v2024 = vunpack.c.l.s4 1983009808
        %v2025 = vunpack.c.0.s8 %v2024
        %v2026 = vlaneseq
        %v2027 = vshrl.u32 %v2026, 7
        %v2028 = vsub.s32 %v2025, %v2027
        %v2029 = vrot.slane %v2015, %v2028
        %v2030 = vcombine.low %v2022, %v2029
        %v2031 = vcombine.low %v1900, %v1903
        %v2032 = vcombine.low %v1906, %v1910
        %v2034 = vunpack.c.l.s4 1983009808
        %v2035 = vunpack.c.0.s8 %v2034
        %v2036 = vlaneseq
        %v2037 = vshrl.u32 %v2036, 7
        %v2038 = vsub.s32 %v2035, %v2037
        %v2039 = vrot.slane %v2031, %v2038
        %v2041 = vunpack.c.l.s4 1983009808
        %v2042 = vunpack.c.0.s8 %v2041
        %v2043 = vlaneseq
        %v2044 = vshrl.u32 %v2043, 7
        %v2045 = vsub.s32 %v2042, %v2044
        %v2046 = vrot.slane %v2032, %v2045
        %v2047 = vcombine.low %v2039, %v2046
        %v2048 = vcombine.low %v1913, %v1916
        %v2049 = vcombine.low %v1920, %v1923
        %v2051 = vunpack.c.l.s4 1983009808
        %v2052 = vunpack.c.0.s8 %v2051
        %v2053 = vlaneseq
        %v2054 = vshrl.u32 %v2053, 7
        %v2055 = vsub.s32 %v2052, %v2054
        %v2056 = vrot.slane %v2048, %v2055
        %v2058 = vunpack.c.l.s4 1983009808
        %v2059 = vunpack.c.0.s8 %v2058
        %v2060 = vlaneseq
        %v2061 = vshrl.u32 %v2060, 7
        %v2062 = vsub.s32 %v2059, %v2061
        %v2063 = vrot.slane %v2049, %v2062
        %v2064 = vcombine.low %v2056, %v2063
        %v2065 = vcombine.low %v1926, %v1930
        %v2066 = vcombine.low %v1933, %v1936
        %v2068 = vunpack.c.l.s4 1983009808
        %v2069 = vunpack.c.0.s8 %v2068
        %v2070 = vlaneseq
        %v2071 = vshrl.u32 %v2070, 7
        %v2072 = vsub.s32 %v2069, %v2071
        %v2073 = vrot.slane %v2065, %v2072
        %v2075 = vunpack.c.l.s4 1983009808
        %v2076 = vunpack.c.0.s8 %v2075
        %v2077 = vlaneseq
        %v2078 = vshrl.u32 %v2077, 7
        %v2079 = vsub.s32 %v2076, %v2078
        %v2080 = vrot.slane %v2066, %v2079
        %v2081 = vcombine.low %v2073, %v2080
        %v2082 = vcombine.low %v1940, %v1943
        %v2083 = vcombine.low %v1946, %v1950
        %v2085 = vunpack.c.l.s4 1983009808
        %v2086 = vunpack.c.0.s8 %v2085
        %v2087 = vlaneseq
        %v2088 = vshrl.u32 %v2087, 7
        %v2089 = vsub.s32 %v2086, %v2088
        %v2090 = vrot.slane %v2082, %v2089
        %v2092 = vunpack.c.l.s4 1983009808
        %v2093 = vunpack.c.0.s8 %v2092
        %v2094 = vlaneseq
        %v2095 = vshrl.u32 %v2094, 7
        %v2096 = vsub.s32 %v2093, %v2095
        %v2097 = vrot.slane %v2083, %v2096
        %v2098 = vcombine.low %v2090, %v2097
        %v2099 = vcombine.low %v1953, %v1956
        %v2100 = vcombine.low %v1960, %v1963
        %v2102 = vunpack.c.l.s4 1983009808
        %v2103 = vunpack.c.0.s8 %v2102
        %v2104 = vlaneseq
        %v2105 = vshrl.u32 %v2104, 7
        %v2106 = vsub.s32 %v2103, %v2105
        %v2107 = vrot.slane %v2099, %v2106
        %v2109 = vunpack.c.l.s4 1983009808
        %v2110 = vunpack.c.0.s8 %v2109
        %v2111 = vlaneseq
        %v2112 = vshrl.u32 %v2111, 7
        %v2113 = vsub.s32 %v2110, %v2112
        %v2114 = vrot.slane %v2100, %v2113
        %v2115 = vcombine.low %v2107, %v2114
        %v2116 = vcombine.low %v1966, %v1970
        %v2117 = vcombine.low %v1973, %v1976
        %v2119 = vunpack.c.l.s4 1983009808
        %v2120 = vunpack.c.0.s8 %v2119
        %v2121 = vlaneseq
        %v2122 = vshrl.u32 %v2121, 7
        %v2123 = vsub.s32 %v2120, %v2122
        %v2124 = vrot.slane %v2116, %v2123
        %v2126 = vunpack.c.l.s4 1983009808
        %v2127 = vunpack.c.0.s8 %v2126
        %v2128 = vlaneseq
        %v2129 = vshrl.u32 %v2128, 7
        %v2130 = vsub.s32 %v2127, %v2129
        %v2131 = vrot.slane %v2117, %v2130
        %v2132 = vcombine.low %v2124, %v2131
        %v2135 = vunpack.c.l.b16 %v1978
        %v2136 = vunpack.c.l.b16 %v1979
        %v2137 = vpack.c.b16 %v2136, %v2135
        %v2140 = vsel %vm1186, %v1996, 0
        %v2143 = vsel %vm1186, %v2013, 0
        %v2146 = vsel %vm1186, %v2030, 0
        %v2149 = vsel %vm1186, %v2047, 0
        %v2152 = vsel %vm1186, %v2064, 0
        %v2155 = vsel %vm1186, %v2081, 0
        %v2158 = vsel %vm1186, %v2098, 0
        %v2161 = vsel %vm1186, %v2115, 0
        %v2164 = vsel %vm1186, %v2132, 0
        %2166 = vmatprep.subr.bf16.mxu0 0
        %2167 = vmatpush1.bf16.msra.mxu0 %v2137
        %2168 = vmatprep.subr.bf16.mxu0 0
        %2169 = vmatpush1.bf16.msra.mxu0 0
        %2170 = vmatprep.subr.bf16.mxu0 0
        %2171 = vmatpush1.bf16.msra.mxu0 0
        %2172 = vmatprep.subr.bf16.mxu0 0
        %2173 = vmatpush1.bf16.msra.mxu0 0
        %2174 = vmatprep.subr.bf16.mxu0 0
        %2175 = vmatpush1.bf16.msra.mxu0 0
        %2176 = vmatprep.subr.bf16.mxu0 0
        %2177 = vmatpush1.bf16.msra.mxu0 0
        %2178 = vmatprep.subr.bf16.mxu0 0
        %2179 = vmatpush1.bf16.msra.mxu0 0
        %2180 = vmatprep.subr.bf16.mxu0 0
        %2181 = vmatpush1.bf16.msra.mxu0 0
        %2182 = vmatprep.subr.bf16.mxu0 0
        %2183 = vmatpush1.bf16.msra.mxu0 0
        %2184 = vmatprep.subr.bf16.mxu0 0
        %2185 = vmatpush1.bf16.msra.mxu0 0
        %2186 = vmatprep.subr.bf16.mxu0 0
        %2187 = vmatpush1.bf16.msra.mxu0 0
        %2188 = vmatprep.subr.bf16.mxu0 0
        %2189 = vmatpush1.bf16.msra.mxu0 0
        %2190 = vmatprep.subr.bf16.mxu0 0
        %2191 = vmatpush1.bf16.msra.mxu0 0
        %2192 = vmatprep.subr.bf16.mxu0 0
        %2193 = vmatpush1.bf16.msra.mxu0 0
        %2194 = vmatprep.subr.bf16.mxu0 0
        %2195 = vmatpush1.bf16.msra.mxu0 0
        %2196 = vmatprep.subr.bf16.mxu0 0
        %2197 = vmatpush1.bf16.msra.mxu0 0
        %2198 = vmatprep.mubr.bf16.mxu0 0
        %2199 = vmatmul.mubr.bf16.gmra.mrb[0].mxu0 %v2140
        %v2200 = vpop.f32.mrb[0].mxu0
        %v2201 = vadd.f32 0.0, %v2200
        %v2202 = vpop.f32.mrb[0].mxu0
        %v2203 = vpop.f32.mrb[0].mxu0
        %v2204 = vadd.f32 0.0, %v2203
        %v2205 = vpop.f32.mrb[0].mxu0
        %2206 = vmatprep.mubr.bf16.mxu0 0
        %2207 = vmatmul.mubr.bf16.gmra.mrb[0].mxu0 %v2143
        %v2208 = vpop.f32.mrb[0].mxu0
        %v2209 = vadd.f32 0.0, %v2208
        %v2210 = vpop.f32.mrb[0].mxu0
        %v2211 = vpop.f32.mrb[0].mxu0
        %v2212 = vadd.f32 0.0, %v2211
        %v2213 = vpop.f32.mrb[0].mxu0
        %2214 = vmatprep.mubr.bf16.mxu0 0
        %2215 = vmatmul.mubr.bf16.gmra.mrb[0].mxu0 %v2146
        %v2216 = vpop.f32.mrb[0].mxu0
        %v2217 = vadd.f32 0.0, %v2216
        %v2218 = vpop.f32.mrb[0].mxu0
        %v2219 = vpop.f32.mrb[0].mxu0
        %v2220 = vadd.f32 0.0, %v2219
        %v2221 = vpop.f32.mrb[0].mxu0
        %2222 = vmatprep.mubr.bf16.mxu0 0
        %2223 = vmatmul.mubr.bf16.gmra.mrb[0].mxu0 %v2149
        %v2224 = vpop.f32.mrb[0].mxu0
        %v2225 = vadd.f32 0.0, %v2224
        %v2226 = vpop.f32.mrb[0].mxu0
        %v2227 = vpop.f32.mrb[0].mxu0
        %v2228 = vadd.f32 0.0, %v2227
        %v2229 = vpop.f32.mrb[0].mxu0
        %2230 = vmatprep.mubr.bf16.mxu0 0
        %2231 = vmatmul.mubr.bf16.gmra.mrb[0].mxu0 %v2152
        %v2232 = vpop.f32.mrb[0].mxu0
        %v2233 = vadd.f32 0.0, %v2232
        %v2234 = vpop.f32.mrb[0].mxu0
        %v2235 = vpop.f32.mrb[0].mxu0
        %v2236 = vadd.f32 0.0, %v2235
        %v2237 = vpop.f32.mrb[0].mxu0
        %2238 = vmatprep.mubr.bf16.mxu0 0
        %2239 = vmatmul.mubr.bf16.gmra.mrb[0].mxu0 %v2155
        %v2240 = vpop.f32.mrb[0].mxu0
        %v2241 = vadd.f32 0.0, %v2240
        %v2242 = vpop.f32.mrb[0].mxu0
        %v2243 = vpop.f32.mrb[0].mxu0
        %v2244 = vadd.f32 0.0, %v2243
        %v2245 = vpop.f32.mrb[0].mxu0
        %2246 = vmatprep.mubr.bf16.mxu0 0
        %2247 = vmatmul.mubr.bf16.gmra.mrb[0].mxu0 %v2158
        %v2248 = vpop.f32.mrb[0].mxu0
        %v2249 = vadd.f32 0.0, %v2248
        %v2250 = vpop.f32.mrb[0].mxu0
        %v2251 = vpop.f32.mrb[0].mxu0
        %v2252 = vadd.f32 0.0, %v2251
        %v2253 = vpop.f32.mrb[0].mxu0
        %2254 = vmatprep.mubr.bf16.mxu0 0
        %2255 = vmatmul.mubr.bf16.gmra.mrb[0].mxu0 %v2161
        %v2256 = vpop.f32.mrb[0].mxu0
        %v2257 = vadd.f32 0.0, %v2256
        %v2258 = vpop.f32.mrb[0].mxu0
        %v2259 = vpop.f32.mrb[0].mxu0
        %v2260 = vadd.f32 0.0, %v2259
        %v2261 = vpop.f32.mrb[0].mxu0
        %2262 = vmatprep.mubr.bf16.mxu0 0
        %2263 = vmatmul.mubr.bf16.gmra.mrb[0].mxu0 %v2164
        %v2264 = vpop.f32.mrb[0].mxu0
        %v2265 = vadd.f32 0.0, %v2264
        %v2266 = vpop.f32.mrb[0].mxu0
        %v2267 = vpop.f32.mrb[0].mxu0
        %v2268 = vadd.f32 0.0, %v2267
        %v2269 = vpop.f32.mrb[0].mxu0
        %2270 = vdwg.mxu0
        %v2271 = vadd.f32 %v1540, %v2201
        %v2272 = vadd.f32 %v1543, %v2204
        %v2273 = vadd.f32 %v1548, %v2209
        %v2274 = vadd.f32 %v1551, %v2212
        %v2275 = vadd.f32 %v1556, %v2217
        %v2276 = vadd.f32 %v1559, %v2220
        %v2277 = vadd.f32 %v1564, %v2225
        %v2278 = vadd.f32 %v1567, %v2228
        %v2279 = vadd.f32 %v1572, %v2233
        %v2280 = vadd.f32 %v1575, %v2236
        %v2281 = vadd.f32 %v1580, %v2241
        %v2282 = vadd.f32 %v1583, %v2244
        %v2283 = vadd.f32 %v1588, %v2249
        %v2284 = vadd.f32 %v1591, %v2252
        %v2285 = vadd.f32 %v1596, %v2257
        %v2286 = vadd.f32 %v1599, %v2260
        %v2287 = vadd.f32 %v1604, %v2265
        %v2288 = vadd.f32 %v1607, %v2268
        %s2289 = scalar_lea.vmem %s245, 8
        %v2290 = vld [vmem:[%s2289] sm:$0xf]
        %v2291 = vld [vmem:[%s2289 + $0x4] sm:$0x3]
        %v2292 = vld [vmem:[%s2289 + $0x8] sm:$0xf]
        %v2293 = vld [vmem:[%s2289 + $0xc] sm:$0x3]
        %v2294 = vld [vmem:[%s2289 + $0x10] sm:$0xf]
        %v2295 = vld [vmem:[%s2289 + $0x14] sm:$0x3]
        %v2296 = vld [vmem:[%s2289 + $0x18] sm:$0xf]
        %v2297 = vld [vmem:[%s2289 + $0x1c] sm:$0x3]
        %v2298 = vld [vmem:[%s2289 + $0x20] sm:$0xf]
        %v2299 = vld [vmem:[%s2289 + $0x24] sm:$0x3]
        %v2300 = vld [vmem:[%s2289 + $0x28] sm:$0xf]
        %v2301 = vld [vmem:[%s2289 + $0x2c] sm:$0x3]
        %v2302 = vld [vmem:[%s2289 + $0x30] sm:$0xf]
        %v2303 = vld [vmem:[%s2289 + $0x34] sm:$0x3]
        %v2304 = vld [vmem:[%s2289 + $0x38] sm:$0xf]
        %v2305 = vld [vmem:[%s2289 + $0x3c] sm:$0x3]
        %v2306 = vld [vmem:[%s2289 + $0x40] sm:$0xf]
        %v2307 = vld [vmem:[%s2289 + $0x44] sm:$0x3]
        %v2308 = vld [vmem:[%s2289 + $0x48] sm:$0xf]
        %v2309 = vld [vmem:[%s2289 + $0x4c] sm:$0x3]
        %v2310 = vld [vmem:[%s2289 + $0x50] sm:$0xf]
        %v2311 = vld [vmem:[%s2289 + $0x54] sm:$0x3]
        %v2312 = vld [vmem:[%s2289 + $0x58] sm:$0xf]
        %v2313 = vld [vmem:[%s2289 + $0x5c] sm:$0x3]
        %v2339 = vunpack.c.l.s4 1983009808
        %v2340 = vunpack.c.0.s8 %v2339
        %v2341 = vlaneseq
        %v2342 = vshrl.u32 %v2341, 7
        %v2343 = vsub.s32 %v2340, %v2342
        %v2344 = vrot.slane %v2290, %v2343
        %v2345 = vcombine.high %v2344, %v2344
        %v2347 = vunpack.c.l.s4 1983009808
        %v2348 = vunpack.c.0.s8 %v2347
        %v2349 = vlaneseq
        %v2350 = vshrl.u32 %v2349, 7
        %v2351 = vsub.s32 %v2348, %v2350
        %v2352 = vrot.slane %v2291, %v2351
        %v2354 = vunpack.c.l.s4 1983009808
        %v2355 = vunpack.c.0.s8 %v2354
        %v2356 = vlaneseq
        %v2357 = vshrl.u32 %v2356, 7
        %v2358 = vsub.s32 %v2355, %v2357
        %v2359 = vrot.slane %v2292, %v2358
        %v2360 = vcombine.high %v2359, %v2359
        %v2362 = vunpack.c.l.s4 1983009808
        %v2363 = vunpack.c.0.s8 %v2362
        %v2364 = vlaneseq
        %v2365 = vshrl.u32 %v2364, 7
        %v2366 = vsub.s32 %v2363, %v2365
        %v2367 = vrot.slane %v2293, %v2366
        %v2369 = vunpack.c.l.s4 1983009808
        %v2370 = vunpack.c.0.s8 %v2369
        %v2371 = vlaneseq
        %v2372 = vshrl.u32 %v2371, 7
        %v2373 = vsub.s32 %v2370, %v2372
        %v2374 = vrot.slane %v2294, %v2373
        %v2375 = vcombine.high %v2374, %v2374
        %v2377 = vunpack.c.l.s4 1983009808
        %v2378 = vunpack.c.0.s8 %v2377
        %v2379 = vlaneseq
        %v2380 = vshrl.u32 %v2379, 7
        %v2381 = vsub.s32 %v2378, %v2380
        %v2382 = vrot.slane %v2295, %v2381
        %v2384 = vunpack.c.l.s4 1983009808
        %v2385 = vunpack.c.0.s8 %v2384
        %v2386 = vlaneseq
        %v2387 = vshrl.u32 %v2386, 7
        %v2388 = vsub.s32 %v2385, %v2387
        %v2389 = vrot.slane %v2296, %v2388
        %v2390 = vcombine.high %v2389, %v2389
        %v2392 = vunpack.c.l.s4 1983009808
        %v2393 = vunpack.c.0.s8 %v2392
        %v2394 = vlaneseq
        %v2395 = vshrl.u32 %v2394, 7
        %v2396 = vsub.s32 %v2393, %v2395
        %v2397 = vrot.slane %v2297, %v2396
        %v2399 = vunpack.c.l.s4 1983009808
        %v2400 = vunpack.c.0.s8 %v2399
        %v2401 = vlaneseq
        %v2402 = vshrl.u32 %v2401, 7
        %v2403 = vsub.s32 %v2400, %v2402
        %v2404 = vrot.slane %v2298, %v2403
        %v2405 = vcombine.high %v2404, %v2404
        %v2407 = vunpack.c.l.s4 1983009808
        %v2408 = vunpack.c.0.s8 %v2407
        %v2409 = vlaneseq
        %v2410 = vshrl.u32 %v2409, 7
        %v2411 = vsub.s32 %v2408, %v2410
        %v2412 = vrot.slane %v2299, %v2411
        %v2414 = vunpack.c.l.s4 1983009808
        %v2415 = vunpack.c.0.s8 %v2414
        %v2416 = vlaneseq
        %v2417 = vshrl.u32 %v2416, 7
        %v2418 = vsub.s32 %v2415, %v2417
        %v2419 = vrot.slane %v2300, %v2418
        %v2420 = vcombine.high %v2419, %v2419
        %v2422 = vunpack.c.l.s4 1983009808
        %v2423 = vunpack.c.0.s8 %v2422
        %v2424 = vlaneseq
        %v2425 = vshrl.u32 %v2424, 7
        %v2426 = vsub.s32 %v2423, %v2425
        %v2427 = vrot.slane %v2301, %v2426
        %v2429 = vunpack.c.l.s4 1983009808
        %v2430 = vunpack.c.0.s8 %v2429
        %v2431 = vlaneseq
        %v2432 = vshrl.u32 %v2431, 7
        %v2433 = vsub.s32 %v2430, %v2432
        %v2434 = vrot.slane %v2302, %v2433
        %v2435 = vcombine.high %v2434, %v2434
        %v2437 = vunpack.c.l.s4 1983009808
        %v2438 = vunpack.c.0.s8 %v2437
        %v2439 = vlaneseq
        %v2440 = vshrl.u32 %v2439, 7
        %v2441 = vsub.s32 %v2438, %v2440
        %v2442 = vrot.slane %v2303, %v2441
        %v2444 = vunpack.c.l.s4 1983009808
        %v2445 = vunpack.c.0.s8 %v2444
        %v2446 = vlaneseq
        %v2447 = vshrl.u32 %v2446, 7
        %v2448 = vsub.s32 %v2445, %v2447
        %v2449 = vrot.slane %v2304, %v2448
        %v2450 = vcombine.high %v2449, %v2449
        %v2452 = vunpack.c.l.s4 1983009808
        %v2453 = vunpack.c.0.s8 %v2452
        %v2454 = vlaneseq
        %v2455 = vshrl.u32 %v2454, 7
        %v2456 = vsub.s32 %v2453, %v2455
        %v2457 = vrot.slane %v2305, %v2456
        %v2459 = vunpack.c.l.s4 1983009808
        %v2460 = vunpack.c.0.s8 %v2459
        %v2461 = vlaneseq
        %v2462 = vshrl.u32 %v2461, 7
        %v2463 = vsub.s32 %v2460, %v2462
        %v2464 = vrot.slane %v2306, %v2463
        %v2465 = vcombine.high %v2464, %v2464
        %v2467 = vunpack.c.l.s4 1983009808
        %v2468 = vunpack.c.0.s8 %v2467
        %v2469 = vlaneseq
        %v2470 = vshrl.u32 %v2469, 7
        %v2471 = vsub.s32 %v2468, %v2470
        %v2472 = vrot.slane %v2307, %v2471
        %v2474 = vunpack.c.l.s4 1983009808
        %v2475 = vunpack.c.0.s8 %v2474
        %v2476 = vlaneseq
        %v2477 = vshrl.u32 %v2476, 7
        %v2478 = vsub.s32 %v2475, %v2477
        %v2479 = vrot.slane %v2308, %v2478
        %v2480 = vcombine.high %v2479, %v2479
        %v2482 = vunpack.c.l.s4 1983009808
        %v2483 = vunpack.c.0.s8 %v2482
        %v2484 = vlaneseq
        %v2485 = vshrl.u32 %v2484, 7
        %v2486 = vsub.s32 %v2483, %v2485
        %v2487 = vrot.slane %v2309, %v2486
        %v2489 = vunpack.c.l.s4 1983009808
        %v2490 = vunpack.c.0.s8 %v2489
        %v2491 = vlaneseq
        %v2492 = vshrl.u32 %v2491, 7
        %v2493 = vsub.s32 %v2490, %v2492
        %v2494 = vrot.slane %v2310, %v2493
        %v2495 = vcombine.high %v2494, %v2494
        %v2497 = vunpack.c.l.s4 1983009808
        %v2498 = vunpack.c.0.s8 %v2497
        %v2499 = vlaneseq
        %v2500 = vshrl.u32 %v2499, 7
        %v2501 = vsub.s32 %v2498, %v2500
        %v2502 = vrot.slane %v2311, %v2501
        %v2504 = vunpack.c.l.s4 1983009808
        %v2505 = vunpack.c.0.s8 %v2504
        %v2506 = vlaneseq
        %v2507 = vshrl.u32 %v2506, 7
        %v2508 = vsub.s32 %v2505, %v2507
        %v2509 = vrot.slane %v2312, %v2508
        %v2510 = vcombine.high %v2509, %v2509
        %v2512 = vunpack.c.l.s4 1983009808
        %v2513 = vunpack.c.0.s8 %v2512
        %v2514 = vlaneseq
        %v2515 = vshrl.u32 %v2514, 7
        %v2516 = vsub.s32 %v2513, %v2515
        %v2517 = vrot.slane %v2313, %v2516
        %s2518 = scalar_lea.vmem %s249, 24
        %v2519 = vld [vmem:[%s2518] sm:$0xf]
        %v2520 = vld [vmem:[%s2518 + $0x4] sm:$0xf]
        %v2521 = vcombine.low %v2344, %v2345
        %v2522 = vcombine.low %v2352, %v2359
        %v2524 = vunpack.c.l.s4 1983009808
        %v2525 = vunpack.c.0.s8 %v2524
        %v2526 = vlaneseq
        %v2527 = vshrl.u32 %v2526, 7
        %v2528 = vsub.s32 %v2525, %v2527
        %v2529 = vrot.slane %v2521, %v2528
        %v2531 = vunpack.c.l.s4 1983009808
        %v2532 = vunpack.c.0.s8 %v2531
        %v2533 = vlaneseq
        %v2534 = vshrl.u32 %v2533, 7
        %v2535 = vsub.s32 %v2532, %v2534
        %v2536 = vrot.slane %v2522, %v2535
        %v2537 = vcombine.low %v2529, %v2536
        %v2538 = vcombine.low %v2360, %v2367
        %v2539 = vcombine.low %v2374, %v2375
        %v2541 = vunpack.c.l.s4 1983009808
        %v2542 = vunpack.c.0.s8 %v2541
        %v2543 = vlaneseq
        %v2544 = vshrl.u32 %v2543, 7
        %v2545 = vsub.s32 %v2542, %v2544
        %v2546 = vrot.slane %v2538, %v2545
        %v2548 = vunpack.c.l.s4 1983009808
        %v2549 = vunpack.c.0.s8 %v2548
        %v2550 = vlaneseq
        %v2551 = vshrl.u32 %v2550, 7
        %v2552 = vsub.s32 %v2549, %v2551
        %v2553 = vrot.slane %v2539, %v2552
        %v2554 = vcombine.low %v2546, %v2553
        %v2555 = vcombine.low %v2382, %v2389
        %v2556 = vcombine.low %v2390, %v2397
        %v2558 = vunpack.c.l.s4 1983009808
        %v2559 = vunpack.c.0.s8 %v2558
        %v2560 = vlaneseq
        %v2561 = vshrl.u32 %v2560, 7
        %v2562 = vsub.s32 %v2559, %v2561
        %v2563 = vrot.slane %v2555, %v2562
        %v2565 = vunpack.c.l.s4 1983009808
        %v2566 = vunpack.c.0.s8 %v2565
        %v2567 = vlaneseq
        %v2568 = vshrl.u32 %v2567, 7
        %v2569 = vsub.s32 %v2566, %v2568
        %v2570 = vrot.slane %v2556, %v2569
        %v2571 = vcombine.low %v2563, %v2570
        %v2572 = vcombine.low %v2404, %v2405
        %v2573 = vcombine.low %v2412, %v2419
        %v2575 = vunpack.c.l.s4 1983009808
        %v2576 = vunpack.c.0.s8 %v2575
        %v2577 = vlaneseq
        %v2578 = vshrl.u32 %v2577, 7
        %v2579 = vsub.s32 %v2576, %v2578
        %v2580 = vrot.slane %v2572, %v2579
        %v2582 = vunpack.c.l.s4 1983009808
        %v2583 = vunpack.c.0.s8 %v2582
        %v2584 = vlaneseq
        %v2585 = vshrl.u32 %v2584, 7
        %v2586 = vsub.s32 %v2583, %v2585
        %v2587 = vrot.slane %v2573, %v2586
        %v2588 = vcombine.low %v2580, %v2587
        %v2589 = vcombine.low %v2420, %v2427
        %v2590 = vcombine.low %v2434, %v2435
        %v2592 = vunpack.c.l.s4 1983009808
        %v2593 = vunpack.c.0.s8 %v2592
        %v2594 = vlaneseq
        %v2595 = vshrl.u32 %v2594, 7
        %v2596 = vsub.s32 %v2593, %v2595
        %v2597 = vrot.slane %v2589, %v2596
        %v2599 = vunpack.c.l.s4 1983009808
        %v2600 = vunpack.c.0.s8 %v2599
        %v2601 = vlaneseq
        %v2602 = vshrl.u32 %v2601, 7
        %v2603 = vsub.s32 %v2600, %v2602
        %v2604 = vrot.slane %v2590, %v2603
        %v2605 = vcombine.low %v2597, %v2604
        %v2606 = vcombine.low %v2442, %v2449
        %v2607 = vcombine.low %v2450, %v2457
        %v2609 = vunpack.c.l.s4 1983009808
        %v2610 = vunpack.c.0.s8 %v2609
        %v2611 = vlaneseq
        %v2612 = vshrl.u32 %v2611, 7
        %v2613 = vsub.s32 %v2610, %v2612
        %v2614 = vrot.slane %v2606, %v2613
        %v2616 = vunpack.c.l.s4 1983009808
        %v2617 = vunpack.c.0.s8 %v2616
        %v2618 = vlaneseq
        %v2619 = vshrl.u32 %v2618, 7
        %v2620 = vsub.s32 %v2617, %v2619
        %v2621 = vrot.slane %v2607, %v2620
        %v2622 = vcombine.low %v2614, %v2621
        %v2623 = vcombine.low %v2464, %v2465
        %v2624 = vcombine.low %v2472, %v2479
        %v2626 = vunpack.c.l.s4 1983009808
        %v2627 = vunpack.c.0.s8 %v2626
        %v2628 = vlaneseq
        %v2629 = vshrl.u32 %v2628, 7
        %v2630 = vsub.s32 %v2627, %v2629
        %v2631 = vrot.slane %v2623, %v2630
        %v2633 = vunpack.c.l.s4 1983009808
        %v2634 = vunpack.c.0.s8 %v2633
        %v2635 = vlaneseq
        %v2636 = vshrl.u32 %v2635, 7
        %v2637 = vsub.s32 %v2634, %v2636
        %v2638 = vrot.slane %v2624, %v2637
        %v2639 = vcombine.low %v2631, %v2638
        %v2640 = vcombine.low %v2480, %v2487
        %v2641 = vcombine.low %v2494, %v2495
        %v2643 = vunpack.c.l.s4 1983009808
        %v2644 = vunpack.c.0.s8 %v2643
        %v2645 = vlaneseq
        %v2646 = vshrl.u32 %v2645, 7
        %v2647 = vsub.s32 %v2644, %v2646
        %v2648 = vrot.slane %v2640, %v2647
        %v2650 = vunpack.c.l.s4 1983009808
        %v2651 = vunpack.c.0.s8 %v2650
        %v2652 = vlaneseq
        %v2653 = vshrl.u32 %v2652, 7
        %v2654 = vsub.s32 %v2651, %v2653
        %v2655 = vrot.slane %v2641, %v2654
        %v2656 = vcombine.low %v2648, %v2655
        %v2657 = vcombine.low %v2502, %v2509
        %v2658 = vcombine.low %v2510, %v2517
        %v2660 = vunpack.c.l.s4 1983009808
        %v2661 = vunpack.c.0.s8 %v2660
        %v2662 = vlaneseq
        %v2663 = vshrl.u32 %v2662, 7
        %v2664 = vsub.s32 %v2661, %v2663
        %v2665 = vrot.slane %v2657, %v2664
        %v2667 = vunpack.c.l.s4 1983009808
        %v2668 = vunpack.c.0.s8 %v2667
        %v2669 = vlaneseq
        %v2670 = vshrl.u32 %v2669, 7
        %v2671 = vsub.s32 %v2668, %v2670
        %v2672 = vrot.slane %v2658, %v2671
        %v2673 = vcombine.low %v2665, %v2672
        %v2676 = vunpack.c.l.b16 %v2519
        %v2677 = vunpack.c.l.b16 %v2520
        %v2678 = vpack.c.b16 %v2677, %v2676
        %v2681 = vsel %vm1186, %v2537, 0
        %v2684 = vsel %vm1186, %v2554, 0
        %v2687 = vsel %vm1186, %v2571, 0
        %v2690 = vsel %vm1186, %v2588, 0
        %v2693 = vsel %vm1186, %v2605, 0
        %v2696 = vsel %vm1186, %v2622, 0
        %v2699 = vsel %vm1186, %v2639, 0
        %v2702 = vsel %vm1186, %v2656, 0
        %v2705 = vsel %vm1186, %v2673, 0
        %2707 = vmatprep.subr.bf16.mxu0 0
        %2708 = vmatpush1.bf16.msra.mxu0 %v2678
        %2709 = vmatprep.subr.bf16.mxu0 0
        %2710 = vmatpush1.bf16.msra.mxu0 0
        %2711 = vmatprep.subr.bf16.mxu0 0
        %2712 = vmatpush1.bf16.msra.mxu0 0
        %2713 = vmatprep.subr.bf16.mxu0 0
        %2714 = vmatpush1.bf16.msra.mxu0 0
        %2715 = vmatprep.subr.bf16.mxu0 0
        %2716 = vmatpush1.bf16.msra.mxu0 0
        %2717 = vmatprep.subr.bf16.mxu0 0
        %2718 = vmatpush1.bf16.msra.mxu0 0
        %2719 = vmatprep.subr.bf16.mxu0 0
        %2720 = vmatpush1.bf16.msra.mxu0 0
        %2721 = vmatprep.subr.bf16.mxu0 0
        %2722 = vmatpush1.bf16.msra.mxu0 0
        %2723 = vmatprep.subr.bf16.mxu0 0
        %2724 = vmatpush1.bf16.msra.mxu0 0
        %2725 = vmatprep.subr.bf16.mxu0 0
        %2726 = vmatpush1.bf16.msra.mxu0 0
        %2727 = vmatprep.subr.bf16.mxu0 0
        %2728 = vmatpush1.bf16.msra.mxu0 0
        %2729 = vmatprep.subr.bf16.mxu0 0
        %2730 = vmatpush1.bf16.msra.mxu0 0
        %2731 = vmatprep.subr.bf16.mxu0 0
        %2732 = vmatpush1.bf16.msra.mxu0 0
        %2733 = vmatprep.subr.bf16.mxu0 0
        %2734 = vmatpush1.bf16.msra.mxu0 0
        %2735 = vmatprep.subr.bf16.mxu0 0
        %2736 = vmatpush1.bf16.msra.mxu0 0
        %2737 = vmatprep.subr.bf16.mxu0 0
        %2738 = vmatpush1.bf16.msra.mxu0 0
        %2739 = vmatprep.mubr.bf16.mxu0 0
        %2740 = vmatmul.mubr.bf16.gmra.mrb[0].mxu0 %v2681
        %v2741 = vpop.f32.mrb[0].mxu0
        %v2742 = vadd.f32 0.0, %v2741
        %v2743 = vpop.f32.mrb[0].mxu0
        %v2744 = vpop.f32.mrb[0].mxu0
        %v2745 = vadd.f32 0.0, %v2744
        %v2746 = vpop.f32.mrb[0].mxu0
        %2747 = vmatprep.mubr.bf16.mxu0 0
        %2748 = vmatmul.mubr.bf16.gmra.mrb[0].mxu0 %v2684
        %v2749 = vpop.f32.mrb[0].mxu0
        %v2750 = vadd.f32 0.0, %v2749
        %v2751 = vpop.f32.mrb[0].mxu0
        %v2752 = vpop.f32.mrb[0].mxu0
        %v2753 = vadd.f32 0.0, %v2752
        %v2754 = vpop.f32.mrb[0].mxu0
        %2755 = vmatprep.mubr.bf16.mxu0 0
        %2756 = vmatmul.mubr.bf16.gmra.mrb[0].mxu0 %v2687
        %v2757 = vpop.f32.mrb[0].mxu0
        %v2758 = vadd.f32 0.0, %v2757
        %v2759 = vpop.f32.mrb[0].mxu0
        %v2760 = vpop.f32.mrb[0].mxu0
        %v2761 = vadd.f32 0.0, %v2760
        %v2762 = vpop.f32.mrb[0].mxu0
        %2763 = vmatprep.mubr.bf16.mxu0 0
        %2764 = vmatmul.mubr.bf16.gmra.mrb[0].mxu0 %v2690
        %v2765 = vpop.f32.mrb[0].mxu0
        %v2766 = vadd.f32 0.0, %v2765
        %v2767 = vpop.f32.mrb[0].mxu0
        %v2768 = vpop.f32.mrb[0].mxu0
        %v2769 = vadd.f32 0.0, %v2768
        %v2770 = vpop.f32.mrb[0].mxu0
        %2771 = vmatprep.mubr.bf16.mxu0 0
        %2772 = vmatmul.mubr.bf16.gmra.mrb[0].mxu0 %v2693
        %v2773 = vpop.f32.mrb[0].mxu0
        %v2774 = vadd.f32 0.0, %v2773
        %v2775 = vpop.f32.mrb[0].mxu0
        %v2776 = vpop.f32.mrb[0].mxu0
        %v2777 = vadd.f32 0.0, %v2776
        %v2778 = vpop.f32.mrb[0].mxu0
        %2779 = vmatprep.mubr.bf16.mxu0 0
        %2780 = vmatmul.mubr.bf16.gmra.mrb[0].mxu0 %v2696
        %v2781 = vpop.f32.mrb[0].mxu0
        %v2782 = vadd.f32 0.0, %v2781
        %v2783 = vpop.f32.mrb[0].mxu0
        %v2784 = vpop.f32.mrb[0].mxu0
        %v2785 = vadd.f32 0.0, %v2784
        %v2786 = vpop.f32.mrb[0].mxu0
        %2787 = vmatprep.mubr.bf16.mxu0 0
        %2788 = vmatmul.mubr.bf16.gmra.mrb[0].mxu0 %v2699
        %v2789 = vpop.f32.mrb[0].mxu0
        %v2790 = vadd.f32 0.0, %v2789
        %v2791 = vpop.f32.mrb[0].mxu0
        %v2792 = vpop.f32.mrb[0].mxu0
        %v2793 = vadd.f32 0.0, %v2792
        %v2794 = vpop.f32.mrb[0].mxu0
        %2795 = vmatprep.mubr.bf16.mxu0 0
        %2796 = vmatmul.mubr.bf16.gmra.mrb[0].mxu0 %v2702
        %v2797 = vpop.f32.mrb[0].mxu0
        %v2798 = vadd.f32 0.0, %v2797
        %v2799 = vpop.f32.mrb[0].mxu0
        %v2800 = vpop.f32.mrb[0].mxu0
        %v2801 = vadd.f32 0.0, %v2800
        %v2802 = vpop.f32.mrb[0].mxu0
        %2803 = vmatprep.mubr.bf16.mxu0 0
        %2804 = vmatmul.mubr.bf16.gmra.mrb[0].mxu0 %v2705
        %v2805 = vpop.f32.mrb[0].mxu0
        %v2806 = vadd.f32 0.0, %v2805
        %v2807 = vpop.f32.mrb[0].mxu0
        %v2808 = vpop.f32.mrb[0].mxu0
        %v2809 = vadd.f32 0.0, %v2808
        %v2810 = vpop.f32.mrb[0].mxu0
        %2811 = vdwg.mxu0
        %v2812 = vadd.f32 %v2271, %v2742
        %v2813 = vadd.f32 %v2272, %v2745
        %v2814 = vadd.f32 %v2273, %v2750
        %v2815 = vadd.f32 %v2274, %v2753
        %v2816 = vadd.f32 %v2275, %v2758
        %v2817 = vadd.f32 %v2276, %v2761
        %v2818 = vadd.f32 %v2277, %v2766
        %v2819 = vadd.f32 %v2278, %v2769
        %v2820 = vadd.f32 %v2279, %v2774
        %v2821 = vadd.f32 %v2280, %v2777
        %v2822 = vadd.f32 %v2281, %v2782
        %v2823 = vadd.f32 %v2282, %v2785
        %v2824 = vadd.f32 %v2283, %v2790
        %v2825 = vadd.f32 %v2284, %v2793
        %v2826 = vadd.f32 %v2285, %v2798
        %v2827 = vadd.f32 %v2286, %v2801
        %v2828 = vadd.f32 %v2287, %v2806
        %v2829 = vadd.f32 %v2288, %v2809
        %v2830 = vld [vmem:[%s2289] sm:$0xf]
        %v2831 = vld [vmem:[%s2289 + $0x4] sm:$0x7]
        %v2832 = vld [vmem:[%s2289 + $0x8] sm:$0xf]
        %v2833 = vld [vmem:[%s2289 + $0xc] sm:$0x7]
        %v2834 = vld [vmem:[%s2289 + $0x10] sm:$0xf]
        %v2835 = vld [vmem:[%s2289 + $0x14] sm:$0x7]
        %v2836 = vld [vmem:[%s2289 + $0x18] sm:$0xf]
        %v2837 = vld [vmem:[%s2289 + $0x1c] sm:$0x7]
        %v2838 = vld [vmem:[%s2289 + $0x20] sm:$0xf]
        %v2839 = vld [vmem:[%s2289 + $0x24] sm:$0x7]
        %v2840 = vld [vmem:[%s2289 + $0x28] sm:$0xf]
        %v2841 = vld [vmem:[%s2289 + $0x2c] sm:$0x7]
        %v2842 = vld [vmem:[%s2289 + $0x30] sm:$0xf]
        %v2843 = vld [vmem:[%s2289 + $0x34] sm:$0x7]
        %v2844 = vld [vmem:[%s2289 + $0x38] sm:$0xf]
        %v2845 = vld [vmem:[%s2289 + $0x3c] sm:$0x7]
        %v2846 = vld [vmem:[%s2289 + $0x40] sm:$0xf]
        %v2847 = vld [vmem:[%s2289 + $0x44] sm:$0x7]
        %v2848 = vld [vmem:[%s2289 + $0x48] sm:$0xf]
        %v2849 = vld [vmem:[%s2289 + $0x4c] sm:$0x7]
        %v2850 = vld [vmem:[%s2289 + $0x50] sm:$0xf]
        %v2851 = vld [vmem:[%s2289 + $0x54] sm:$0x7]
        %v2852 = vld [vmem:[%s2289 + $0x58] sm:$0xf]
        %v2853 = vld [vmem:[%s2289 + $0x5c] sm:$0x7]
        %v2879 = vunpack.c.l.s4 1983009808
        %v2880 = vunpack.c.0.s8 %v2879
        %v2881 = vlaneseq
        %v2882 = vshrl.u32 %v2881, 7
        %v2883 = vsub.s32 %v2880, %v2882
        %v2884 = vrot.slane %v2830, %v2883
        %v2885 = vcombine.high %v2884, %v2884
        %v2887 = vunpack.c.l.s4 1983009808
        %v2888 = vunpack.c.0.s8 %v2887
        %v2889 = vlaneseq
        %v2890 = vshrl.u32 %v2889, 7
        %v2891 = vsub.s32 %v2888, %v2890
        %v2892 = vrot.slane %v2831, %v2891
        %v2893 = vcombine.high %v2892, %v2892
        %v2895 = vunpack.c.l.s4 1983009808
        %v2896 = vunpack.c.0.s8 %v2895
        %v2897 = vlaneseq
        %v2898 = vshrl.u32 %v2897, 7
        %v2899 = vsub.s32 %v2896, %v2898
        %v2900 = vrot.slane %v2832, %v2899
        %v2901 = vcombine.high %v2900, %v2900
        %v2903 = vunpack.c.l.s4 1983009808
        %v2904 = vunpack.c.0.s8 %v2903
        %v2905 = vlaneseq
        %v2906 = vshrl.u32 %v2905, 7
        %v2907 = vsub.s32 %v2904, %v2906
        %v2908 = vrot.slane %v2833, %v2907
        %v2909 = vcombine.high %v2908, %v2908
        %v2911 = vunpack.c.l.s4 1983009808
        %v2912 = vunpack.c.0.s8 %v2911
        %v2913 = vlaneseq
        %v2914 = vshrl.u32 %v2913, 7
        %v2915 = vsub.s32 %v2912, %v2914
        %v2916 = vrot.slane %v2834, %v2915
        %v2917 = vcombine.high %v2916, %v2916
        %v2919 = vunpack.c.l.s4 1983009808
        %v2920 = vunpack.c.0.s8 %v2919
        %v2921 = vlaneseq
        %v2922 = vshrl.u32 %v2921, 7
        %v2923 = vsub.s32 %v2920, %v2922
        %v2924 = vrot.slane %v2835, %v2923
        %v2925 = vcombine.high %v2924, %v2924
        %v2927 = vunpack.c.l.s4 1983009808
        %v2928 = vunpack.c.0.s8 %v2927
        %v2929 = vlaneseq
        %v2930 = vshrl.u32 %v2929, 7
        %v2931 = vsub.s32 %v2928, %v2930
        %v2932 = vrot.slane %v2836, %v2931
        %v2933 = vcombine.high %v2932, %v2932
        %v2935 = vunpack.c.l.s4 1983009808
        %v2936 = vunpack.c.0.s8 %v2935
        %v2937 = vlaneseq
        %v2938 = vshrl.u32 %v2937, 7
        %v2939 = vsub.s32 %v2936, %v2938
        %v2940 = vrot.slane %v2837, %v2939
        %v2941 = vcombine.high %v2940, %v2940
        %v2943 = vunpack.c.l.s4 1983009808
        %v2944 = vunpack.c.0.s8 %v2943
        %v2945 = vlaneseq
        %v2946 = vshrl.u32 %v2945, 7
        %v2947 = vsub.s32 %v2944, %v2946
        %v2948 = vrot.slane %v2838, %v2947
        %v2949 = vcombine.high %v2948, %v2948
        %v2951 = vunpack.c.l.s4 1983009808
        %v2952 = vunpack.c.0.s8 %v2951
        %v2953 = vlaneseq
        %v2954 = vshrl.u32 %v2953, 7
        %v2955 = vsub.s32 %v2952, %v2954
        %v2956 = vrot.slane %v2839, %v2955
        %v2957 = vcombine.high %v2956, %v2956
        %v2959 = vunpack.c.l.s4 1983009808
        %v2960 = vunpack.c.0.s8 %v2959
        %v2961 = vlaneseq
        %v2962 = vshrl.u32 %v2961, 7
        %v2963 = vsub.s32 %v2960, %v2962
        %v2964 = vrot.slane %v2840, %v2963
        %v2965 = vcombine.high %v2964, %v2964
        %v2967 = vunpack.c.l.s4 1983009808
        %v2968 = vunpack.c.0.s8 %v2967
        %v2969 = vlaneseq
        %v2970 = vshrl.u32 %v2969, 7
        %v2971 = vsub.s32 %v2968, %v2970
        %v2972 = vrot.slane %v2841, %v2971
        %v2973 = vcombine.high %v2972, %v2972
        %v2975 = vunpack.c.l.s4 1983009808
        %v2976 = vunpack.c.0.s8 %v2975
        %v2977 = vlaneseq
        %v2978 = vshrl.u32 %v2977, 7
        %v2979 = vsub.s32 %v2976, %v2978
        %v2980 = vrot.slane %v2842, %v2979
        %v2981 = vcombine.high %v2980, %v2980
        %v2983 = vunpack.c.l.s4 1983009808
        %v2984 = vunpack.c.0.s8 %v2983
        %v2985 = vlaneseq
        %v2986 = vshrl.u32 %v2985, 7
        %v2987 = vsub.s32 %v2984, %v2986
        %v2988 = vrot.slane %v2843, %v2987
        %v2989 = vcombine.high %v2988, %v2988
        %v2991 = vunpack.c.l.s4 1983009808
        %v2992 = vunpack.c.0.s8 %v2991
        %v2993 = vlaneseq
        %v2994 = vshrl.u32 %v2993, 7
        %v2995 = vsub.s32 %v2992, %v2994
        %v2996 = vrot.slane %v2844, %v2995
        %v2997 = vcombine.high %v2996, %v2996
        %v2999 = vunpack.c.l.s4 1983009808
        %v3000 = vunpack.c.0.s8 %v2999
        %v3001 = vlaneseq
        %v3002 = vshrl.u32 %v3001, 7
        %v3003 = vsub.s32 %v3000, %v3002
        %v3004 = vrot.slane %v2845, %v3003
        %v3005 = vcombine.high %v3004, %v3004
        %v3007 = vunpack.c.l.s4 1983009808
        %v3008 = vunpack.c.0.s8 %v3007
        %v3009 = vlaneseq
        %v3010 = vshrl.u32 %v3009, 7
        %v3011 = vsub.s32 %v3008, %v3010
        %v3012 = vrot.slane %v2846, %v3011
        %v3013 = vcombine.high %v3012, %v3012
        %v3015 = vunpack.c.l.s4 1983009808
        %v3016 = vunpack.c.0.s8 %v3015
        %v3017 = vlaneseq
        %v3018 = vshrl.u32 %v3017, 7
        %v3019 = vsub.s32 %v3016, %v3018
        %v3020 = vrot.slane %v2847, %v3019
        %v3021 = vcombine.high %v3020, %v3020
        %v3023 = vunpack.c.l.s4 1983009808
        %v3024 = vunpack.c.0.s8 %v3023
        %v3025 = vlaneseq
        %v3026 = vshrl.u32 %v3025, 7
        %v3027 = vsub.s32 %v3024, %v3026
        %v3028 = vrot.slane %v2848, %v3027
        %v3029 = vcombine.high %v3028, %v3028
        %v3031 = vunpack.c.l.s4 1983009808
        %v3032 = vunpack.c.0.s8 %v3031
        %v3033 = vlaneseq
        %v3034 = vshrl.u32 %v3033, 7
        %v3035 = vsub.s32 %v3032, %v3034
        %v3036 = vrot.slane %v2849, %v3035
        %v3037 = vcombine.high %v3036, %v3036
        %v3039 = vunpack.c.l.s4 1983009808
        %v3040 = vunpack.c.0.s8 %v3039
        %v3041 = vlaneseq
        %v3042 = vshrl.u32 %v3041, 7
        %v3043 = vsub.s32 %v3040, %v3042
        %v3044 = vrot.slane %v2850, %v3043
        %v3045 = vcombine.high %v3044, %v3044
        %v3047 = vunpack.c.l.s4 1983009808
        %v3048 = vunpack.c.0.s8 %v3047
        %v3049 = vlaneseq
        %v3050 = vshrl.u32 %v3049, 7
        %v3051 = vsub.s32 %v3048, %v3050
        %v3052 = vrot.slane %v2851, %v3051
        %v3053 = vcombine.high %v3052, %v3052
        %v3055 = vunpack.c.l.s4 1983009808
        %v3056 = vunpack.c.0.s8 %v3055
        %v3057 = vlaneseq
        %v3058 = vshrl.u32 %v3057, 7
        %v3059 = vsub.s32 %v3056, %v3058
        %v3060 = vrot.slane %v2852, %v3059
        %v3061 = vcombine.high %v3060, %v3060
        %v3063 = vunpack.c.l.s4 1983009808
        %v3064 = vunpack.c.0.s8 %v3063
        %v3065 = vlaneseq
        %v3066 = vshrl.u32 %v3065, 7
        %v3067 = vsub.s32 %v3064, %v3066
        %v3068 = vrot.slane %v2853, %v3067
        %v3069 = vcombine.high %v3068, %v3068
        %v3071 = vshrl.u32 %v2884, 16
        %v3073 = vrot.slane %v3071, 6
        %v3074 = vshll.u32 %v2884, 16
        %v3076 = vrot.slane %v3074, 7
        %v3077 = vor.u32 %v3073, %v3076
        %v3078 = vrot.slane %v3077, 2
        %v3080 = vshll.u32 %v2885, 16
        %v3082 = vrot.slane %v3080, 7
        %v3083 = vsel %vm615, %v3078, %v3082
        %v3084 = vshrl.u32 %v2885, 16
        %v3086 = vrot.slane %v3084, 6
        %v3087 = vor.u32 %v3086, %v3082
        %v3088 = vrot.slane %v3087, 2
        %v3090 = vshll.u32 %v2892, 16
        %v3092 = vrot.slane %v3090, 7
        %v3093 = vsel %vm615, %v3088, %v3092
        %v3094 = vshrl.u32 %v2892, 16
        %v3096 = vrot.slane %v3094, 6
        %v3097 = vor.u32 %v3096, %v3092
        %v3098 = vrot.slane %v3097, 2
        %v3100 = vshll.u32 %v2893, 16
        %v3102 = vrot.slane %v3100, 7
        %v3103 = vsel %vm615, %v3098, %v3102
        %v3105 = vshrl.u32 %v2900, 16
        %v3107 = vrot.slane %v3105, 6
        %v3108 = vshll.u32 %v2900, 16
        %v3110 = vrot.slane %v3108, 7
        %v3111 = vor.u32 %v3107, %v3110
        %v3112 = vrot.slane %v3111, 2
        %v3114 = vshll.u32 %v2901, 16
        %v3116 = vrot.slane %v3114, 7
        %v3117 = vsel %vm615, %v3112, %v3116
        %v3118 = vshrl.u32 %v2901, 16
        %v3120 = vrot.slane %v3118, 6
        %v3121 = vor.u32 %v3120, %v3116
        %v3122 = vrot.slane %v3121, 2
        %v3124 = vshll.u32 %v2908, 16
        %v3126 = vrot.slane %v3124, 7
        %v3127 = vsel %vm615, %v3122, %v3126
        %v3128 = vshrl.u32 %v2908, 16
        %v3130 = vrot.slane %v3128, 6
        %v3131 = vor.u32 %v3130, %v3126
        %v3132 = vrot.slane %v3131, 2
        %v3134 = vshll.u32 %v2909, 16
        %v3136 = vrot.slane %v3134, 7
        %v3137 = vsel %vm615, %v3132, %v3136
        %v3139 = vshrl.u32 %v2916, 16
        %v3141 = vrot.slane %v3139, 6
        %v3142 = vshll.u32 %v2916, 16
        %v3144 = vrot.slane %v3142, 7
        %v3145 = vor.u32 %v3141, %v3144
        %v3146 = vrot.slane %v3145, 2
        %v3148 = vshll.u32 %v2917, 16
        %v3150 = vrot.slane %v3148, 7
        %v3151 = vsel %vm615, %v3146, %v3150
        %v3152 = vshrl.u32 %v2917, 16
        %v3154 = vrot.slane %v3152, 6
        %v3155 = vor.u32 %v3154, %v3150
        %v3156 = vrot.slane %v3155, 2
        %v3158 = vshll.u32 %v2924, 16
        %v3160 = vrot.slane %v3158, 7
        %v3161 = vsel %vm615, %v3156, %v3160
        %v3162 = vshrl.u32 %v2924, 16
        %v3164 = vrot.slane %v3162, 6
        %v3165 = vor.u32 %v3164, %v3160
        %v3166 = vrot.slane %v3165, 2
        %v3168 = vshll.u32 %v2925, 16
        %v3170 = vrot.slane %v3168, 7
        %v3171 = vsel %vm615, %v3166, %v3170
        %v3173 = vshrl.u32 %v2932, 16
        %v3175 = vrot.slane %v3173, 6
        %v3176 = vshll.u32 %v2932, 16
        %v3178 = vrot.slane %v3176, 7
        %v3179 = vor.u32 %v3175, %v3178
        %v3180 = vrot.slane %v3179, 2
        %v3182 = vshll.u32 %v2933, 16
        %v3184 = vrot.slane %v3182, 7
        %v3185 = vsel %vm615, %v3180, %v3184
        %v3186 = vshrl.u32 %v2933, 16
        %v3188 = vrot.slane %v3186, 6
        %v3189 = vor.u32 %v3188, %v3184
        %v3190 = vrot.slane %v3189, 2
        %v3192 = vshll.u32 %v2940, 16
        %v3194 = vrot.slane %v3192, 7
        %v3195 = vsel %vm615, %v3190, %v3194
        %v3196 = vshrl.u32 %v2940, 16
        %v3198 = vrot.slane %v3196, 6
        %v3199 = vor.u32 %v3198, %v3194
        %v3200 = vrot.slane %v3199, 2
        %v3202 = vshll.u32 %v2941, 16
        %v3204 = vrot.slane %v3202, 7
        %v3205 = vsel %vm615, %v3200, %v3204
        %v3207 = vshrl.u32 %v2948, 16
        %v3209 = vrot.slane %v3207, 6
        %v3210 = vshll.u32 %v2948, 16
        %v3212 = vrot.slane %v3210, 7
        %v3213 = vor.u32 %v3209, %v3212
        %v3214 = vrot.slane %v3213, 2
        %v3216 = vshll.u32 %v2949, 16
        %v3218 = vrot.slane %v3216, 7
        %v3219 = vsel %vm615, %v3214, %v3218
        %v3220 = vshrl.u32 %v2949, 16
        %v3222 = vrot.slane %v3220, 6
        %v3223 = vor.u32 %v3222, %v3218
        %v3224 = vrot.slane %v3223, 2
        %v3226 = vshll.u32 %v2956, 16
        %v3228 = vrot.slane %v3226, 7
        %v3229 = vsel %vm615, %v3224, %v3228
        %v3230 = vshrl.u32 %v2956, 16
        %v3232 = vrot.slane %v3230, 6
        %v3233 = vor.u32 %v3232, %v3228
        %v3234 = vrot.slane %v3233, 2
        %v3236 = vshll.u32 %v2957, 16
        %v3238 = vrot.slane %v3236, 7
        %v3239 = vsel %vm615, %v3234, %v3238
        %v3241 = vshrl.u32 %v2964, 16
        %v3243 = vrot.slane %v3241, 6
        %v3244 = vshll.u32 %v2964, 16
        %v3246 = vrot.slane %v3244, 7
        %v3247 = vor.u32 %v3243, %v3246
        %v3248 = vrot.slane %v3247, 2
        %v3250 = vshll.u32 %v2965, 16
        %v3252 = vrot.slane %v3250, 7
        %v3253 = vsel %vm615, %v3248, %v3252
        %v3254 = vshrl.u32 %v2965, 16
        %v3256 = vrot.slane %v3254, 6
        %v3257 = vor.u32 %v3256, %v3252
        %v3258 = vrot.slane %v3257, 2
        %v3260 = vshll.u32 %v2972, 16
        %v3262 = vrot.slane %v3260, 7
        %v3263 = vsel %vm615, %v3258, %v3262
        %v3264 = vshrl.u32 %v2972, 16
        %v3266 = vrot.slane %v3264, 6
        %v3267 = vor.u32 %v3266, %v3262
        %v3268 = vrot.slane %v3267, 2
        %v3270 = vshll.u32 %v2973, 16
        %v3272 = vrot.slane %v3270, 7
        %v3273 = vsel %vm615, %v3268, %v3272
        %v3275 = vshrl.u32 %v2980, 16
        %v3277 = vrot.slane %v3275, 6
        %v3278 = vshll.u32 %v2980, 16
        %v3280 = vrot.slane %v3278, 7
        %v3281 = vor.u32 %v3277, %v3280
        %v3282 = vrot.slane %v3281, 2
        %v3284 = vshll.u32 %v2981, 16
        %v3286 = vrot.slane %v3284, 7
        %v3287 = vsel %vm615, %v3282, %v3286
        %v3288 = vshrl.u32 %v2981, 16
        %v3290 = vrot.slane %v3288, 6
        %v3291 = vor.u32 %v3290, %v3286
        %v3292 = vrot.slane %v3291, 2
        %v3294 = vshll.u32 %v2988, 16
        %v3296 = vrot.slane %v3294, 7
        %v3297 = vsel %vm615, %v3292, %v3296
        %v3298 = vshrl.u32 %v2988, 16
        %v3300 = vrot.slane %v3298, 6
        %v3301 = vor.u32 %v3300, %v3296
        %v3302 = vrot.slane %v3301, 2
        %v3304 = vshll.u32 %v2989, 16
        %v3306 = vrot.slane %v3304, 7
        %v3307 = vsel %vm615, %v3302, %v3306
        %v3309 = vshrl.u32 %v2996, 16
        %v3311 = vrot.slane %v3309, 6
        %v3312 = vshll.u32 %v2996, 16
        %v3314 = vrot.slane %v3312, 7
        %v3315 = vor.u32 %v3311, %v3314
        %v3316 = vrot.slane %v3315, 2
        %v3318 = vshll.u32 %v2997, 16
        %v3320 = vrot.slane %v3318, 7
        %v3321 = vsel %vm615, %v3316, %v3320
        %v3322 = vshrl.u32 %v2997, 16
        %v3324 = vrot.slane %v3322, 6
        %v3325 = vor.u32 %v3324, %v3320
        %v3326 = vrot.slane %v3325, 2
        %v3328 = vshll.u32 %v3004, 16
        %v3330 = vrot.slane %v3328, 7
        %v3331 = vsel %vm615, %v3326, %v3330
        %v3332 = vshrl.u32 %v3004, 16
        %v3334 = vrot.slane %v3332, 6
        %v3335 = vor.u32 %v3334, %v3330
        %v3336 = vrot.slane %v3335, 2
        %v3338 = vshll.u32 %v3005, 16
        %v3340 = vrot.slane %v3338, 7
        %v3341 = vsel %vm615, %v3336, %v3340
        %v3343 = vshrl.u32 %v3012, 16
        %v3345 = vrot.slane %v3343, 6
        %v3346 = vshll.u32 %v3012, 16
        %v3348 = vrot.slane %v3346, 7
        %v3349 = vor.u32 %v3345, %v3348
        %v3350 = vrot.slane %v3349, 2
        %v3352 = vshll.u32 %v3013, 16
        %v3354 = vrot.slane %v3352, 7
        %v3355 = vsel %vm615, %v3350, %v3354
        %v3356 = vshrl.u32 %v3013, 16
        %v3358 = vrot.slane %v3356, 6
        %v3359 = vor.u32 %v3358, %v3354
        %v3360 = vrot.slane %v3359, 2
        %v3362 = vshll.u32 %v3020, 16
        %v3364 = vrot.slane %v3362, 7
        %v3365 = vsel %vm615, %v3360, %v3364
        %v3366 = vshrl.u32 %v3020, 16
        %v3368 = vrot.slane %v3366, 6
        %v3369 = vor.u32 %v3368, %v3364
        %v3370 = vrot.slane %v3369, 2
        %v3372 = vshll.u32 %v3021, 16
        %v3374 = vrot.slane %v3372, 7
        %v3375 = vsel %vm615, %v3370, %v3374
        %v3377 = vshrl.u32 %v3028, 16
        %v3379 = vrot.slane %v3377, 6
        %v3380 = vshll.u32 %v3028, 16
        %v3382 = vrot.slane %v3380, 7
        %v3383 = vor.u32 %v3379, %v3382
        %v3384 = vrot.slane %v3383, 2
        %v3386 = vshll.u32 %v3029, 16
        %v3388 = vrot.slane %v3386, 7
        %v3389 = vsel %vm615, %v3384, %v3388
        %v3390 = vshrl.u32 %v3029, 16
        %v3392 = vrot.slane %v3390, 6
        %v3393 = vor.u32 %v3392, %v3388
        %v3394 = vrot.slane %v3393, 2
        %v3396 = vshll.u32 %v3036, 16
        %v3398 = vrot.slane %v3396, 7
        %v3399 = vsel %vm615, %v3394, %v3398
        %v3400 = vshrl.u32 %v3036, 16
        %v3402 = vrot.slane %v3400, 6
        %v3403 = vor.u32 %v3402, %v3398
        %v3404 = vrot.slane %v3403, 2
        %v3406 = vshll.u32 %v3037, 16
        %v3408 = vrot.slane %v3406, 7
        %v3409 = vsel %vm615, %v3404, %v3408
        %v3411 = vshrl.u32 %v3044, 16
        %v3413 = vrot.slane %v3411, 6
        %v3414 = vshll.u32 %v3044, 16
        %v3416 = vrot.slane %v3414, 7
        %v3417 = vor.u32 %v3413, %v3416
        %v3418 = vrot.slane %v3417, 2
        %v3420 = vshll.u32 %v3045, 16
        %v3422 = vrot.slane %v3420, 7
        %v3423 = vsel %vm615, %v3418, %v3422
        %v3424 = vshrl.u32 %v3045, 16
        %v3426 = vrot.slane %v3424, 6
        %v3427 = vor.u32 %v3426, %v3422
        %v3428 = vrot.slane %v3427, 2
        %v3430 = vshll.u32 %v3052, 16
        %v3432 = vrot.slane %v3430, 7
        %v3433 = vsel %vm615, %v3428, %v3432
        %v3434 = vshrl.u32 %v3052, 16
        %v3436 = vrot.slane %v3434, 6
        %v3437 = vor.u32 %v3436, %v3432
        %v3438 = vrot.slane %v3437, 2
        %v3440 = vshll.u32 %v3053, 16
        %v3442 = vrot.slane %v3440, 7
        %v3443 = vsel %vm615, %v3438, %v3442
        %v3445 = vshrl.u32 %v3060, 16
        %v3447 = vrot.slane %v3445, 6
        %v3448 = vshll.u32 %v3060, 16
        %v3450 = vrot.slane %v3448, 7
        %v3451 = vor.u32 %v3447, %v3450
        %v3452 = vrot.slane %v3451, 2
        %v3454 = vshll.u32 %v3061, 16
        %v3456 = vrot.slane %v3454, 7
        %v3457 = vsel %vm615, %v3452, %v3456
        %v3458 = vshrl.u32 %v3061, 16
        %v3460 = vrot.slane %v3458, 6
        %v3461 = vor.u32 %v3460, %v3456
        %v3462 = vrot.slane %v3461, 2
        %v3464 = vshll.u32 %v3068, 16
        %v3466 = vrot.slane %v3464, 7
        %v3467 = vsel %vm615, %v3462, %v3466
        %v3468 = vshrl.u32 %v3068, 16
        %v3470 = vrot.slane %v3468, 6
        %v3471 = vor.u32 %v3470, %v3466
        %v3472 = vrot.slane %v3471, 2
        %v3474 = vshll.u32 %v3069, 16
        %v3476 = vrot.slane %v3474, 7
        %v3477 = vsel %vm615, %v3472, %v3476
        %s3478 = scalar_lea.vmem %s249, 32
        %v3479 = vld [vmem:[%s3478] sm:$0xf]
        %v3480 = vld [vmem:[%s3478 + $0x4] sm:$0xf]
        %v3481 = vcombine.low %v3083, %v3093
        %v3482 = vcombine.low %v3103, %v3117
        %v3484 = vunpack.c.l.s4 1983009808
        %v3485 = vunpack.c.0.s8 %v3484
        %v3486 = vlaneseq
        %v3487 = vshrl.u32 %v3486, 7
        %v3488 = vsub.s32 %v3485, %v3487
        %v3489 = vrot.slane %v3481, %v3488
        %v3491 = vunpack.c.l.s4 1983009808
        %v3492 = vunpack.c.0.s8 %v3491
        %v3493 = vlaneseq
        %v3494 = vshrl.u32 %v3493, 7
        %v3495 = vsub.s32 %v3492, %v3494
        %v3496 = vrot.slane %v3482, %v3495
        %v3497 = vcombine.low %v3489, %v3496
        %v3498 = vcombine.low %v3127, %v3137
        %v3499 = vcombine.low %v3151, %v3161
        %v3501 = vunpack.c.l.s4 1983009808
        %v3502 = vunpack.c.0.s8 %v3501
        %v3503 = vlaneseq
        %v3504 = vshrl.u32 %v3503, 7
        %v3505 = vsub.s32 %v3502, %v3504
        %v3506 = vrot.slane %v3498, %v3505
        %v3508 = vunpack.c.l.s4 1983009808
        %v3509 = vunpack.c.0.s8 %v3508
        %v3510 = vlaneseq
        %v3511 = vshrl.u32 %v3510, 7
        %v3512 = vsub.s32 %v3509, %v3511
        %v3513 = vrot.slane %v3499, %v3512
        %v3514 = vcombine.low %v3506, %v3513
        %v3515 = vcombine.low %v3171, %v3185
        %v3516 = vcombine.low %v3195, %v3205
        %v3518 = vunpack.c.l.s4 1983009808
        %v3519 = vunpack.c.0.s8 %v3518
        %v3520 = vlaneseq
        %v3521 = vshrl.u32 %v3520, 7
        %v3522 = vsub.s32 %v3519, %v3521
        %v3523 = vrot.slane %v3515, %v3522
        %v3525 = vunpack.c.l.s4 1983009808
        %v3526 = vunpack.c.0.s8 %v3525
        %v3527 = vlaneseq
        %v3528 = vshrl.u32 %v3527, 7
        %v3529 = vsub.s32 %v3526, %v3528
        %v3530 = vrot.slane %v3516, %v3529
        %v3531 = vcombine.low %v3523, %v3530
        %v3532 = vcombine.low %v3219, %v3229
        %v3533 = vcombine.low %v3239, %v3253
        %v3535 = vunpack.c.l.s4 1983009808
        %v3536 = vunpack.c.0.s8 %v3535
        %v3537 = vlaneseq
        %v3538 = vshrl.u32 %v3537, 7
        %v3539 = vsub.s32 %v3536, %v3538
        %v3540 = vrot.slane %v3532, %v3539
        %v3542 = vunpack.c.l.s4 1983009808
        %v3543 = vunpack.c.0.s8 %v3542
        %v3544 = vlaneseq
        %v3545 = vshrl.u32 %v3544, 7
        %v3546 = vsub.s32 %v3543, %v3545
        %v3547 = vrot.slane %v3533, %v3546
        %v3548 = vcombine.low %v3540, %v3547
        %v3549 = vcombine.low %v3263, %v3273
        %v3550 = vcombine.low %v3287, %v3297
        %v3552 = vunpack.c.l.s4 1983009808
        %v3553 = vunpack.c.0.s8 %v3552
        %v3554 = vlaneseq
        %v3555 = vshrl.u32 %v3554, 7
        %v3556 = vsub.s32 %v3553, %v3555
        %v3557 = vrot.slane %v3549, %v3556
        %v3559 = vunpack.c.l.s4 1983009808
        %v3560 = vunpack.c.0.s8 %v3559
        %v3561 = vlaneseq
        %v3562 = vshrl.u32 %v3561, 7
        %v3563 = vsub.s32 %v3560, %v3562
        %v3564 = vrot.slane %v3550, %v3563
        %v3565 = vcombine.low %v3557, %v3564
        %v3566 = vcombine.low %v3307, %v3321
        %v3567 = vcombine.low %v3331, %v3341
        %v3569 = vunpack.c.l.s4 1983009808
        %v3570 = vunpack.c.0.s8 %v3569
        %v3571 = vlaneseq
        %v3572 = vshrl.u32 %v3571, 7
        %v3573 = vsub.s32 %v3570, %v3572
        %v3574 = vrot.slane %v3566, %v3573
        %v3576 = vunpack.c.l.s4 1983009808
        %v3577 = vunpack.c.0.s8 %v3576
        %v3578 = vlaneseq
        %v3579 = vshrl.u32 %v3578, 7
        %v3580 = vsub.s32 %v3577, %v3579
        %v3581 = vrot.slane %v3567, %v3580
        %v3582 = vcombine.low %v3574, %v3581
        %v3583 = vcombine.low %v3355, %v3365
        %v3584 = vcombine.low %v3375, %v3389
        %v3586 = vunpack.c.l.s4 1983009808
        %v3587 = vunpack.c.0.s8 %v3586
        %v3588 = vlaneseq
        %v3589 = vshrl.u32 %v3588, 7
        %v3590 = vsub.s32 %v3587, %v3589
        %v3591 = vrot.slane %v3583, %v3590
        %v3593 = vunpack.c.l.s4 1983009808
        %v3594 = vunpack.c.0.s8 %v3593
        %v3595 = vlaneseq
        %v3596 = vshrl.u32 %v3595, 7
        %v3597 = vsub.s32 %v3594, %v3596
        %v3598 = vrot.slane %v3584, %v3597
        %v3599 = vcombine.low %v3591, %v3598
        %v3600 = vcombine.low %v3399, %v3409
        %v3601 = vcombine.low %v3423, %v3433
        %v3603 = vunpack.c.l.s4 1983009808
        %v3604 = vunpack.c.0.s8 %v3603
        %v3605 = vlaneseq
        %v3606 = vshrl.u32 %v3605, 7
        %v3607 = vsub.s32 %v3604, %v3606
        %v3608 = vrot.slane %v3600, %v3607
        %v3610 = vunpack.c.l.s4 1983009808
        %v3611 = vunpack.c.0.s8 %v3610
        %v3612 = vlaneseq
        %v3613 = vshrl.u32 %v3612, 7
        %v3614 = vsub.s32 %v3611, %v3613
        %v3615 = vrot.slane %v3601, %v3614
        %v3616 = vcombine.low %v3608, %v3615
        %v3617 = vcombine.low %v3443, %v3457
        %v3618 = vcombine.low %v3467, %v3477
        %v3620 = vunpack.c.l.s4 1983009808
        %v3621 = vunpack.c.0.s8 %v3620
        %v3622 = vlaneseq
        %v3623 = vshrl.u32 %v3622, 7
        %v3624 = vsub.s32 %v3621, %v3623
        %v3625 = vrot.slane %v3617, %v3624
        %v3627 = vunpack.c.l.s4 1983009808
        %v3628 = vunpack.c.0.s8 %v3627
        %v3629 = vlaneseq
        %v3630 = vshrl.u32 %v3629, 7
        %v3631 = vsub.s32 %v3628, %v3630
        %v3632 = vrot.slane %v3618, %v3631
        %v3633 = vcombine.low %v3625, %v3632
        %v3636 = vunpack.c.l.b16 %v3479
        %v3637 = vunpack.c.l.b16 %v3480
        %v3638 = vpack.c.b16 %v3637, %v3636
        %v3641 = vsel %vm1186, %v3497, 0
        %v3644 = vsel %vm1186, %v3514, 0
        %v3647 = vsel %vm1186, %v3531, 0
        %v3650 = vsel %vm1186, %v3548, 0
        %v3653 = vsel %vm1186, %v3565, 0
        %v3656 = vsel %vm1186, %v3582, 0
        %v3659 = vsel %vm1186, %v3599, 0
        %v3662 = vsel %vm1186, %v3616, 0
        %v3665 = vsel %vm1186, %v3633, 0
        %3667 = vmatprep.subr.bf16.mxu0 0
        %3668 = vmatpush1.bf16.msra.mxu0 %v3638
        %3669 = vmatprep.subr.bf16.mxu0 0
        %3670 = vmatpush1.bf16.msra.mxu0 0
        %3671 = vmatprep.subr.bf16.mxu0 0
        %3672 = vmatpush1.bf16.msra.mxu0 0
        %3673 = vmatprep.subr.bf16.mxu0 0
        %3674 = vmatpush1.bf16.msra.mxu0 0
        %3675 = vmatprep.subr.bf16.mxu0 0
        %3676 = vmatpush1.bf16.msra.mxu0 0
        %3677 = vmatprep.subr.bf16.mxu0 0
        %3678 = vmatpush1.bf16.msra.mxu0 0
        %3679 = vmatprep.subr.bf16.mxu0 0
        %3680 = vmatpush1.bf16.msra.mxu0 0
        %3681 = vmatprep.subr.bf16.mxu0 0
        %3682 = vmatpush1.bf16.msra.mxu0 0
        %3683 = vmatprep.subr.bf16.mxu0 0
        %3684 = vmatpush1.bf16.msra.mxu0 0
        %3685 = vmatprep.subr.bf16.mxu0 0
        %3686 = vmatpush1.bf16.msra.mxu0 0
        %3687 = vmatprep.subr.bf16.mxu0 0
        %3688 = vmatpush1.bf16.msra.mxu0 0
        %3689 = vmatprep.subr.bf16.mxu0 0
        %3690 = vmatpush1.bf16.msra.mxu0 0
        %3691 = vmatprep.subr.bf16.mxu0 0
        %3692 = vmatpush1.bf16.msra.mxu0 0
        %3693 = vmatprep.subr.bf16.mxu0 0
        %3694 = vmatpush1.bf16.msra.mxu0 0
        %3695 = vmatprep.subr.bf16.mxu0 0
        %3696 = vmatpush1.bf16.msra.mxu0 0
        %3697 = vmatprep.subr.bf16.mxu0 0
        %3698 = vmatpush1.bf16.msra.mxu0 0
        %3699 = vmatprep.mubr.bf16.mxu0 0
        %3700 = vmatmul.mubr.bf16.gmra.mrb[0].mxu0 %v3641
        %v3701 = vpop.f32.mrb[0].mxu0
        %v3702 = vadd.f32 0.0, %v3701
        %v3703 = vpop.f32.mrb[0].mxu0
        %v3704 = vpop.f32.mrb[0].mxu0
        %v3705 = vadd.f32 0.0, %v3704
        %v3706 = vpop.f32.mrb[0].mxu0
        %3707 = vmatprep.mubr.bf16.mxu0 0
        %3708 = vmatmul.mubr.bf16.gmra.mrb[0].mxu0 %v3644
        %v3709 = vpop.f32.mrb[0].mxu0
        %v3710 = vadd.f32 0.0, %v3709
        %v3711 = vpop.f32.mrb[0].mxu0
        %v3712 = vpop.f32.mrb[0].mxu0
        %v3713 = vadd.f32 0.0, %v3712
        %v3714 = vpop.f32.mrb[0].mxu0
        %3715 = vmatprep.mubr.bf16.mxu0 0
        %3716 = vmatmul.mubr.bf16.gmra.mrb[0].mxu0 %v3647
        %v3717 = vpop.f32.mrb[0].mxu0
        %v3718 = vadd.f32 0.0, %v3717
        %v3719 = vpop.f32.mrb[0].mxu0
        %v3720 = vpop.f32.mrb[0].mxu0
        %v3721 = vadd.f32 0.0, %v3720
        %v3722 = vpop.f32.mrb[0].mxu0
        %3723 = vmatprep.mubr.bf16.mxu0 0
        %3724 = vmatmul.mubr.bf16.gmra.mrb[0].mxu0 %v3650
        %v3725 = vpop.f32.mrb[0].mxu0
        %v3726 = vadd.f32 0.0, %v3725
        %v3727 = vpop.f32.mrb[0].mxu0
        %v3728 = vpop.f32.mrb[0].mxu0
        %v3729 = vadd.f32 0.0, %v3728
        %v3730 = vpop.f32.mrb[0].mxu0
        %3731 = vmatprep.mubr.bf16.mxu0 0
        %3732 = vmatmul.mubr.bf16.gmra.mrb[0].mxu0 %v3653
        %v3733 = vpop.f32.mrb[0].mxu0
        %v3734 = vadd.f32 0.0, %v3733
        %v3735 = vpop.f32.mrb[0].mxu0
        %v3736 = vpop.f32.mrb[0].mxu0
        %v3737 = vadd.f32 0.0, %v3736
        %v3738 = vpop.f32.mrb[0].mxu0
        %3739 = vmatprep.mubr.bf16.mxu0 0
        %3740 = vmatmul.mubr.bf16.gmra.mrb[0].mxu0 %v3656
        %v3741 = vpop.f32.mrb[0].mxu0
        %v3742 = vadd.f32 0.0, %v3741
        %v3743 = vpop.f32.mrb[0].mxu0
        %v3744 = vpop.f32.mrb[0].mxu0
        %v3745 = vadd.f32 0.0, %v3744
        %v3746 = vpop.f32.mrb[0].mxu0
        %3747 = vmatprep.mubr.bf16.mxu0 0
        %3748 = vmatmul.mubr.bf16.gmra.mrb[0].mxu0 %v3659
        %v3749 = vpop.f32.mrb[0].mxu0
        %v3750 = vadd.f32 0.0, %v3749
        %v3751 = vpop.f32.mrb[0].mxu0
        %v3752 = vpop.f32.mrb[0].mxu0
        %v3753 = vadd.f32 0.0, %v3752
        %v3754 = vpop.f32.mrb[0].mxu0
        %3755 = vmatprep.mubr.bf16.mxu0 0
        %3756 = vmatmul.mubr.bf16.gmra.mrb[0].mxu0 %v3662
        %v3757 = vpop.f32.mrb[0].mxu0
        %v3758 = vadd.f32 0.0, %v3757
        %v3759 = vpop.f32.mrb[0].mxu0
        %v3760 = vpop.f32.mrb[0].mxu0
        %v3761 = vadd.f32 0.0, %v3760
        %v3762 = vpop.f32.mrb[0].mxu0
        %3763 = vmatprep.mubr.bf16.mxu0 0
        %3764 = vmatmul.mubr.bf16.gmra.mrb[0].mxu0 %v3665
        %v3765 = vpop.f32.mrb[0].mxu0
        %v3766 = vadd.f32 0.0, %v3765
        %v3767 = vpop.f32.mrb[0].mxu0
        %v3768 = vpop.f32.mrb[0].mxu0
        %v3769 = vadd.f32 0.0, %v3768
        %v3770 = vpop.f32.mrb[0].mxu0
        %3771 = vdwg.mxu0
        %v3772 = vadd.f32 %v2812, %v3702
        %v3773 = vadd.f32 %v2813, %v3705
        %v3774 = vadd.f32 %v2814, %v3710
        %v3775 = vadd.f32 %v2815, %v3713
        %v3776 = vadd.f32 %v2816, %v3718
        %v3777 = vadd.f32 %v2817, %v3721
        %v3778 = vadd.f32 %v2818, %v3726
        %v3779 = vadd.f32 %v2819, %v3729
        %v3780 = vadd.f32 %v2820, %v3734
        %v3781 = vadd.f32 %v2821, %v3737
        %v3782 = vadd.f32 %v2822, %v3742
        %v3783 = vadd.f32 %v2823, %v3745
        %v3784 = vadd.f32 %v2824, %v3750
        %v3785 = vadd.f32 %v2825, %v3753
        %v3786 = vadd.f32 %v2826, %v3758
        %v3787 = vadd.f32 %v2827, %v3761
        %v3788 = vadd.f32 %v2828, %v3766
        %v3789 = vadd.f32 %v2829, %v3769
        %v3790 = vld [vmem:[%s2289] sm:$0xe]
        %v3791 = vld [vmem:[%s2289 + $0x4] sm:$0x7]
        %v3792 = vld [vmem:[%s2289 + $0x8] sm:$0xe]
        %v3793 = vld [vmem:[%s2289 + $0xc] sm:$0x7]
        %v3794 = vld [vmem:[%s2289 + $0x10] sm:$0xe]
        %v3795 = vld [vmem:[%s2289 + $0x14] sm:$0x7]
        %v3796 = vld [vmem:[%s2289 + $0x18] sm:$0xe]
        %v3797 = vld [vmem:[%s2289 + $0x1c] sm:$0x7]
        %v3798 = vld [vmem:[%s2289 + $0x20] sm:$0xe]
        %v3799 = vld [vmem:[%s2289 + $0x24] sm:$0x7]
        %v3800 = vld [vmem:[%s2289 + $0x28] sm:$0xe]
        %v3801 = vld [vmem:[%s2289 + $0x2c] sm:$0x7]
        %v3802 = vld [vmem:[%s2289 + $0x30] sm:$0xe]
        %v3803 = vld [vmem:[%s2289 + $0x34] sm:$0x7]
        %v3804 = vld [vmem:[%s2289 + $0x38] sm:$0xe]
        %v3805 = vld [vmem:[%s2289 + $0x3c] sm:$0x7]
        %v3806 = vld [vmem:[%s2289 + $0x40] sm:$0xe]
        %v3807 = vld [vmem:[%s2289 + $0x44] sm:$0x7]
        %v3808 = vld [vmem:[%s2289 + $0x48] sm:$0xe]
        %v3809 = vld [vmem:[%s2289 + $0x4c] sm:$0x7]
        %v3810 = vld [vmem:[%s2289 + $0x50] sm:$0xe]
        %v3811 = vld [vmem:[%s2289 + $0x54] sm:$0x7]
        %v3812 = vld [vmem:[%s2289 + $0x58] sm:$0xe]
        %v3813 = vld [vmem:[%s2289 + $0x5c] sm:$0x7]
        %v3839 = vunpack.c.l.s4 1983009808
        %v3840 = vunpack.c.0.s8 %v3839
        %v3841 = vlaneseq
        %v3842 = vshrl.u32 %v3841, 7
        %v3843 = vsub.s32 %v3840, %v3842
        %v3844 = vrot.slane %v3790, %v3843
        %v3845 = vcombine.high %v3844, %v3844
        %v3847 = vunpack.c.l.s4 1983009808
        %v3848 = vunpack.c.0.s8 %v3847
        %v3849 = vlaneseq
        %v3850 = vshrl.u32 %v3849, 7
        %v3851 = vsub.s32 %v3848, %v3850
        %v3852 = vrot.slane %v3791, %v3851
        %v3853 = vcombine.high %v3852, %v3852
        %v3855 = vunpack.c.l.s4 1983009808
        %v3856 = vunpack.c.0.s8 %v3855
        %v3857 = vlaneseq
        %v3858 = vshrl.u32 %v3857, 7
        %v3859 = vsub.s32 %v3856, %v3858
        %v3860 = vrot.slane %v3792, %v3859
        %v3861 = vcombine.high %v3860, %v3860
        %v3863 = vunpack.c.l.s4 1983009808
        %v3864 = vunpack.c.0.s8 %v3863
        %v3865 = vlaneseq
        %v3866 = vshrl.u32 %v3865, 7
        %v3867 = vsub.s32 %v3864, %v3866
        %v3868 = vrot.slane %v3793, %v3867
        %v3869 = vcombine.high %v3868, %v3868
        %v3871 = vunpack.c.l.s4 1983009808
        %v3872 = vunpack.c.0.s8 %v3871
        %v3873 = vlaneseq
        %v3874 = vshrl.u32 %v3873, 7
        %v3875 = vsub.s32 %v3872, %v3874
        %v3876 = vrot.slane %v3794, %v3875
        %v3877 = vcombine.high %v3876, %v3876
        %v3879 = vunpack.c.l.s4 1983009808
        %v3880 = vunpack.c.0.s8 %v3879
        %v3881 = vlaneseq
        %v3882 = vshrl.u32 %v3881, 7
        %v3883 = vsub.s32 %v3880, %v3882
        %v3884 = vrot.slane %v3795, %v3883
        %v3885 = vcombine.high %v3884, %v3884
        %v3887 = vunpack.c.l.s4 1983009808
        %v3888 = vunpack.c.0.s8 %v3887
        %v3889 = vlaneseq
        %v3890 = vshrl.u32 %v3889, 7
        %v3891 = vsub.s32 %v3888, %v3890
        %v3892 = vrot.slane %v3796, %v3891
        %v3893 = vcombine.high %v3892, %v3892
        %v3895 = vunpack.c.l.s4 1983009808
        %v3896 = vunpack.c.0.s8 %v3895
        %v3897 = vlaneseq
        %v3898 = vshrl.u32 %v3897, 7
        %v3899 = vsub.s32 %v3896, %v3898
        %v3900 = vrot.slane %v3797, %v3899
        %v3901 = vcombine.high %v3900, %v3900
        %v3903 = vunpack.c.l.s4 1983009808
        %v3904 = vunpack.c.0.s8 %v3903
        %v3905 = vlaneseq
        %v3906 = vshrl.u32 %v3905, 7
        %v3907 = vsub.s32 %v3904, %v3906
        %v3908 = vrot.slane %v3798, %v3907
        %v3909 = vcombine.high %v3908, %v3908
        %v3911 = vunpack.c.l.s4 1983009808
        %v3912 = vunpack.c.0.s8 %v3911
        %v3913 = vlaneseq
        %v3914 = vshrl.u32 %v3913, 7
        %v3915 = vsub.s32 %v3912, %v3914
        %v3916 = vrot.slane %v3799, %v3915
        %v3917 = vcombine.high %v3916, %v3916
        %v3919 = vunpack.c.l.s4 1983009808
        %v3920 = vunpack.c.0.s8 %v3919
        %v3921 = vlaneseq
        %v3922 = vshrl.u32 %v3921, 7
        %v3923 = vsub.s32 %v3920, %v3922
        %v3924 = vrot.slane %v3800, %v3923
        %v3925 = vcombine.high %v3924, %v3924
        %v3927 = vunpack.c.l.s4 1983009808
        %v3928 = vunpack.c.0.s8 %v3927
        %v3929 = vlaneseq
        %v3930 = vshrl.u32 %v3929, 7
        %v3931 = vsub.s32 %v3928, %v3930
        %v3932 = vrot.slane %v3801, %v3931
        %v3933 = vcombine.high %v3932, %v3932
        %v3935 = vunpack.c.l.s4 1983009808
        %v3936 = vunpack.c.0.s8 %v3935
        %v3937 = vlaneseq
        %v3938 = vshrl.u32 %v3937, 7
        %v3939 = vsub.s32 %v3936, %v3938
        %v3940 = vrot.slane %v3802, %v3939
        %v3941 = vcombine.high %v3940, %v3940
        %v3943 = vunpack.c.l.s4 1983009808
        %v3944 = vunpack.c.0.s8 %v3943
        %v3945 = vlaneseq
        %v3946 = vshrl.u32 %v3945, 7
        %v3947 = vsub.s32 %v3944, %v3946
        %v3948 = vrot.slane %v3803, %v3947
        %v3949 = vcombine.high %v3948, %v3948
        %v3951 = vunpack.c.l.s4 1983009808
        %v3952 = vunpack.c.0.s8 %v3951
        %v3953 = vlaneseq
        %v3954 = vshrl.u32 %v3953, 7
        %v3955 = vsub.s32 %v3952, %v3954
        %v3956 = vrot.slane %v3804, %v3955
        %v3957 = vcombine.high %v3956, %v3956
        %v3959 = vunpack.c.l.s4 1983009808
        %v3960 = vunpack.c.0.s8 %v3959
        %v3961 = vlaneseq
        %v3962 = vshrl.u32 %v3961, 7
        %v3963 = vsub.s32 %v3960, %v3962
        %v3964 = vrot.slane %v3805, %v3963
        %v3965 = vcombine.high %v3964, %v3964
        %v3967 = vunpack.c.l.s4 1983009808
        %v3968 = vunpack.c.0.s8 %v3967
        %v3969 = vlaneseq
        %v3970 = vshrl.u32 %v3969, 7
        %v3971 = vsub.s32 %v3968, %v3970
        %v3972 = vrot.slane %v3806, %v3971
        %v3973 = vcombine.high %v3972, %v3972
        %v3975 = vunpack.c.l.s4 1983009808
        %v3976 = vunpack.c.0.s8 %v3975
        %v3977 = vlaneseq
        %v3978 = vshrl.u32 %v3977, 7
        %v3979 = vsub.s32 %v3976, %v3978
        %v3980 = vrot.slane %v3807, %v3979
        %v3981 = vcombine.high %v3980, %v3980
        %v3983 = vunpack.c.l.s4 1983009808
        %v3984 = vunpack.c.0.s8 %v3983
        %v3985 = vlaneseq
        %v3986 = vshrl.u32 %v3985, 7
        %v3987 = vsub.s32 %v3984, %v3986
        %v3988 = vrot.slane %v3808, %v3987
        %v3989 = vcombine.high %v3988, %v3988
        %v3991 = vunpack.c.l.s4 1983009808
        %v3992 = vunpack.c.0.s8 %v3991
        %v3993 = vlaneseq
        %v3994 = vshrl.u32 %v3993, 7
        %v3995 = vsub.s32 %v3992, %v3994
        %v3996 = vrot.slane %v3809, %v3995
        %v3997 = vcombine.high %v3996, %v3996
        %v3999 = vunpack.c.l.s4 1983009808
        %v4000 = vunpack.c.0.s8 %v3999
        %v4001 = vlaneseq
        %v4002 = vshrl.u32 %v4001, 7
        %v4003 = vsub.s32 %v4000, %v4002
        %v4004 = vrot.slane %v3810, %v4003
        %v4005 = vcombine.high %v4004, %v4004
        %v4007 = vunpack.c.l.s4 1983009808
        %v4008 = vunpack.c.0.s8 %v4007
        %v4009 = vlaneseq
        %v4010 = vshrl.u32 %v4009, 7
        %v4011 = vsub.s32 %v4008, %v4010
        %v4012 = vrot.slane %v3811, %v4011
        %v4013 = vcombine.high %v4012, %v4012
        %v4015 = vunpack.c.l.s4 1983009808
        %v4016 = vunpack.c.0.s8 %v4015
        %v4017 = vlaneseq
        %v4018 = vshrl.u32 %v4017, 7
        %v4019 = vsub.s32 %v4016, %v4018
        %v4020 = vrot.slane %v3812, %v4019
        %v4021 = vcombine.high %v4020, %v4020
        %v4023 = vunpack.c.l.s4 1983009808
        %v4024 = vunpack.c.0.s8 %v4023
        %v4025 = vlaneseq
        %v4026 = vshrl.u32 %v4025, 7
        %v4027 = vsub.s32 %v4024, %v4026
        %v4028 = vrot.slane %v3813, %v4027
        %v4029 = vcombine.high %v4028, %v4028
        %v4030 = vrot.slane %v3844, 7
        %v4031 = vrot.slane %v4030, 2
        %v4032 = vrot.slane %v3845, 7
        %v4033 = vsel %vm1856, %v4031, %v4032
        %v4034 = vrot.slane %v4032, 2
        %v4035 = vrot.slane %v3852, 7
        %v4036 = vsel %vm1856, %v4034, %v4035
        %v4037 = vrot.slane %v4035, 2
        %v4038 = vrot.slane %v3853, 7
        %v4039 = vsel %vm1856, %v4037, %v4038
        %v4040 = vrot.slane %v3860, 7
        %v4041 = vrot.slane %v4040, 2
        %v4042 = vrot.slane %v3861, 7
        %v4043 = vsel %vm1856, %v4041, %v4042
        %v4044 = vrot.slane %v4042, 2
        %v4045 = vrot.slane %v3868, 7
        %v4046 = vsel %vm1856, %v4044, %v4045
        %v4047 = vrot.slane %v4045, 2
        %v4048 = vrot.slane %v3869, 7
        %v4049 = vsel %vm1856, %v4047, %v4048
        %v4050 = vrot.slane %v3876, 7
        %v4051 = vrot.slane %v4050, 2
        %v4052 = vrot.slane %v3877, 7
        %v4053 = vsel %vm1856, %v4051, %v4052
        %v4054 = vrot.slane %v4052, 2
        %v4055 = vrot.slane %v3884, 7
        %v4056 = vsel %vm1856, %v4054, %v4055
        %v4057 = vrot.slane %v4055, 2
        %v4058 = vrot.slane %v3885, 7
        %v4059 = vsel %vm1856, %v4057, %v4058
        %v4060 = vrot.slane %v3892, 7
        %v4061 = vrot.slane %v4060, 2
        %v4062 = vrot.slane %v3893, 7
        %v4063 = vsel %vm1856, %v4061, %v4062
        %v4064 = vrot.slane %v4062, 2
        %v4065 = vrot.slane %v3900, 7
        %v4066 = vsel %vm1856, %v4064, %v4065
        %v4067 = vrot.slane %v4065, 2
        %v4068 = vrot.slane %v3901, 7
        %v4069 = vsel %vm1856, %v4067, %v4068
        %v4070 = vrot.slane %v3908, 7
        %v4071 = vrot.slane %v4070, 2
        %v4072 = vrot.slane %v3909, 7
        %v4073 = vsel %vm1856, %v4071, %v4072
        %v4074 = vrot.slane %v4072, 2
        %v4075 = vrot.slane %v3916, 7
        %v4076 = vsel %vm1856, %v4074, %v4075
        %v4077 = vrot.slane %v4075, 2
        %v4078 = vrot.slane %v3917, 7
        %v4079 = vsel %vm1856, %v4077, %v4078
        %v4080 = vrot.slane %v3924, 7
        %v4081 = vrot.slane %v4080, 2
        %v4082 = vrot.slane %v3925, 7
        %v4083 = vsel %vm1856, %v4081, %v4082
        %v4084 = vrot.slane %v4082, 2
        %v4085 = vrot.slane %v3932, 7
        %v4086 = vsel %vm1856, %v4084, %v4085
        %v4087 = vrot.slane %v4085, 2
        %v4088 = vrot.slane %v3933, 7
        %v4089 = vsel %vm1856, %v4087, %v4088
        %v4090 = vrot.slane %v3940, 7
        %v4091 = vrot.slane %v4090, 2
        %v4092 = vrot.slane %v3941, 7
        %v4093 = vsel %vm1856, %v4091, %v4092
        %v4094 = vrot.slane %v4092, 2
        %v4095 = vrot.slane %v3948, 7
        %v4096 = vsel %vm1856, %v4094, %v4095
        %v4097 = vrot.slane %v4095, 2
        %v4098 = vrot.slane %v3949, 7
        %v4099 = vsel %vm1856, %v4097, %v4098
        %v4100 = vrot.slane %v3956, 7
        %v4101 = vrot.slane %v4100, 2
        %v4102 = vrot.slane %v3957, 7
        %v4103 = vsel %vm1856, %v4101, %v4102
        %v4104 = vrot.slane %v4102, 2
        %v4105 = vrot.slane %v3964, 7
        %v4106 = vsel %vm1856, %v4104, %v4105
        %v4107 = vrot.slane %v4105, 2
        %v4108 = vrot.slane %v3965, 7
        %v4109 = vsel %vm1856, %v4107, %v4108
        %v4110 = vrot.slane %v3972, 7
        %v4111 = vrot.slane %v4110, 2
        %v4112 = vrot.slane %v3973, 7
        %v4113 = vsel %vm1856, %v4111, %v4112
        %v4114 = vrot.slane %v4112, 2
        %v4115 = vrot.slane %v3980, 7
        %v4116 = vsel %vm1856, %v4114, %v4115
        %v4117 = vrot.slane %v4115, 2
        %v4118 = vrot.slane %v3981, 7
        %v4119 = vsel %vm1856, %v4117, %v4118
        %v4120 = vrot.slane %v3988, 7
        %v4121 = vrot.slane %v4120, 2
        %v4122 = vrot.slane %v3989, 7
        %v4123 = vsel %vm1856, %v4121, %v4122
        %v4124 = vrot.slane %v4122, 2
        %v4125 = vrot.slane %v3996, 7
        %v4126 = vsel %vm1856, %v4124, %v4125
        %v4127 = vrot.slane %v4125, 2
        %v4128 = vrot.slane %v3997, 7
        %v4129 = vsel %vm1856, %v4127, %v4128
        %v4130 = vrot.slane %v4004, 7
        %v4131 = vrot.slane %v4130, 2
        %v4132 = vrot.slane %v4005, 7
        %v4133 = vsel %vm1856, %v4131, %v4132
        %v4134 = vrot.slane %v4132, 2
        %v4135 = vrot.slane %v4012, 7
        %v4136 = vsel %vm1856, %v4134, %v4135
        %v4137 = vrot.slane %v4135, 2
        %v4138 = vrot.slane %v4013, 7
        %v4139 = vsel %vm1856, %v4137, %v4138
        %v4140 = vrot.slane %v4020, 7
        %v4141 = vrot.slane %v4140, 2
        %v4142 = vrot.slane %v4021, 7
        %v4143 = vsel %vm1856, %v4141, %v4142
        %v4144 = vrot.slane %v4142, 2
        %v4145 = vrot.slane %v4028, 7
        %v4146 = vsel %vm1856, %v4144, %v4145
        %v4147 = vrot.slane %v4145, 2
        %v4148 = vrot.slane %v4029, 7
        %v4149 = vsel %vm1856, %v4147, %v4148
        %s4150 = scalar_lea.vmem %s249, 40
        %v4151 = vld [vmem:[%s4150] sm:$0xf]
        %v4152 = vld [vmem:[%s4150 + $0x4] sm:$0xf]
        %v4153 = vcombine.low %v4033, %v4036
        %v4154 = vcombine.low %v4039, %v4043
        %v4156 = vunpack.c.l.s4 1983009808
        %v4157 = vunpack.c.0.s8 %v4156
        %v4158 = vlaneseq
        %v4159 = vshrl.u32 %v4158, 7
        %v4160 = vsub.s32 %v4157, %v4159
        %v4161 = vrot.slane %v4153, %v4160
        %v4163 = vunpack.c.l.s4 1983009808
        %v4164 = vunpack.c.0.s8 %v4163
        %v4165 = vlaneseq
        %v4166 = vshrl.u32 %v4165, 7
        %v4167 = vsub.s32 %v4164, %v4166
        %v4168 = vrot.slane %v4154, %v4167
        %v4169 = vcombine.low %v4161, %v4168
        %v4170 = vcombine.low %v4046, %v4049
        %v4171 = vcombine.low %v4053, %v4056
        %v4173 = vunpack.c.l.s4 1983009808
        %v4174 = vunpack.c.0.s8 %v4173
        %v4175 = vlaneseq
        %v4176 = vshrl.u32 %v4175, 7
        %v4177 = vsub.s32 %v4174, %v4176
        %v4178 = vrot.slane %v4170, %v4177
        %v4180 = vunpack.c.l.s4 1983009808
        %v4181 = vunpack.c.0.s8 %v4180
        %v4182 = vlaneseq
        %v4183 = vshrl.u32 %v4182, 7
        %v4184 = vsub.s32 %v4181, %v4183
        %v4185 = vrot.slane %v4171, %v4184
        %v4186 = vcombine.low %v4178, %v4185
        %v4187 = vcombine.low %v4059, %v4063
        %v4188 = vcombine.low %v4066, %v4069
        %v4190 = vunpack.c.l.s4 1983009808
        %v4191 = vunpack.c.0.s8 %v4190
        %v4192 = vlaneseq
        %v4193 = vshrl.u32 %v4192, 7
        %v4194 = vsub.s32 %v4191, %v4193
        %v4195 = vrot.slane %v4187, %v4194
        %v4197 = vunpack.c.l.s4 1983009808
        %v4198 = vunpack.c.0.s8 %v4197
        %v4199 = vlaneseq
        %v4200 = vshrl.u32 %v4199, 7
        %v4201 = vsub.s32 %v4198, %v4200
        %v4202 = vrot.slane %v4188, %v4201
        %v4203 = vcombine.low %v4195, %v4202
        %v4204 = vcombine.low %v4073, %v4076
        %v4205 = vcombine.low %v4079, %v4083
        %v4207 = vunpack.c.l.s4 1983009808
        %v4208 = vunpack.c.0.s8 %v4207
        %v4209 = vlaneseq
        %v4210 = vshrl.u32 %v4209, 7
        %v4211 = vsub.s32 %v4208, %v4210
        %v4212 = vrot.slane %v4204, %v4211
        %v4214 = vunpack.c.l.s4 1983009808
        %v4215 = vunpack.c.0.s8 %v4214
        %v4216 = vlaneseq
        %v4217 = vshrl.u32 %v4216, 7
        %v4218 = vsub.s32 %v4215, %v4217
        %v4219 = vrot.slane %v4205, %v4218
        %v4220 = vcombine.low %v4212, %v4219
        %v4221 = vcombine.low %v4086, %v4089
        %v4222 = vcombine.low %v4093, %v4096
        %v4224 = vunpack.c.l.s4 1983009808
        %v4225 = vunpack.c.0.s8 %v4224
        %v4226 = vlaneseq
        %v4227 = vshrl.u32 %v4226, 7
        %v4228 = vsub.s32 %v4225, %v4227
        %v4229 = vrot.slane %v4221, %v4228
        %v4231 = vunpack.c.l.s4 1983009808
        %v4232 = vunpack.c.0.s8 %v4231
        %v4233 = vlaneseq
        %v4234 = vshrl.u32 %v4233, 7
        %v4235 = vsub.s32 %v4232, %v4234
        %v4236 = vrot.slane %v4222, %v4235
        %v4237 = vcombine.low %v4229, %v4236
        %v4238 = vcombine.low %v4099, %v4103
        %v4239 = vcombine.low %v4106, %v4109
        %v4241 = vunpack.c.l.s4 1983009808
        %v4242 = vunpack.c.0.s8 %v4241
        %v4243 = vlaneseq
        %v4244 = vshrl.u32 %v4243, 7
        %v4245 = vsub.s32 %v4242, %v4244
        %v4246 = vrot.slane %v4238, %v4245
        %v4248 = vunpack.c.l.s4 1983009808
        %v4249 = vunpack.c.0.s8 %v4248
        %v4250 = vlaneseq
        %v4251 = vshrl.u32 %v4250, 7
        %v4252 = vsub.s32 %v4249, %v4251
        %v4253 = vrot.slane %v4239, %v4252
        %v4254 = vcombine.low %v4246, %v4253
        %v4255 = vcombine.low %v4113, %v4116
        %v4256 = vcombine.low %v4119, %v4123
        %v4258 = vunpack.c.l.s4 1983009808
        %v4259 = vunpack.c.0.s8 %v4258
        %v4260 = vlaneseq
        %v4261 = vshrl.u32 %v4260, 7
        %v4262 = vsub.s32 %v4259, %v4261
        %v4263 = vrot.slane %v4255, %v4262
        %v4265 = vunpack.c.l.s4 1983009808
        %v4266 = vunpack.c.0.s8 %v4265
        %v4267 = vlaneseq
        %v4268 = vshrl.u32 %v4267, 7
        %v4269 = vsub.s32 %v4266, %v4268
        %v4270 = vrot.slane %v4256, %v4269
        %v4271 = vcombine.low %v4263, %v4270
        %v4272 = vcombine.low %v4126, %v4129
        %v4273 = vcombine.low %v4133, %v4136
        %v4275 = vunpack.c.l.s4 1983009808
        %v4276 = vunpack.c.0.s8 %v4275
        %v4277 = vlaneseq
        %v4278 = vshrl.u32 %v4277, 7
        %v4279 = vsub.s32 %v4276, %v4278
        %v4280 = vrot.slane %v4272, %v4279
        %v4282 = vunpack.c.l.s4 1983009808
        %v4283 = vunpack.c.0.s8 %v4282
        %v4284 = vlaneseq
        %v4285 = vshrl.u32 %v4284, 7
        %v4286 = vsub.s32 %v4283, %v4285
        %v4287 = vrot.slane %v4273, %v4286
        %v4288 = vcombine.low %v4280, %v4287
        %v4289 = vcombine.low %v4139, %v4143
        %v4290 = vcombine.low %v4146, %v4149
        %v4292 = vunpack.c.l.s4 1983009808
        %v4293 = vunpack.c.0.s8 %v4292
        %v4294 = vlaneseq
        %v4295 = vshrl.u32 %v4294, 7
        %v4296 = vsub.s32 %v4293, %v4295
        %v4297 = vrot.slane %v4289, %v4296
        %v4299 = vunpack.c.l.s4 1983009808
        %v4300 = vunpack.c.0.s8 %v4299
        %v4301 = vlaneseq
        %v4302 = vshrl.u32 %v4301, 7
        %v4303 = vsub.s32 %v4300, %v4302
        %v4304 = vrot.slane %v4290, %v4303
        %v4305 = vcombine.low %v4297, %v4304
        %v4308 = vunpack.c.l.b16 %v4151
        %v4309 = vunpack.c.l.b16 %v4152
        %v4310 = vpack.c.b16 %v4309, %v4308
        %v4313 = vsel %vm1186, %v4169, 0
        %v4316 = vsel %vm1186, %v4186, 0
        %v4319 = vsel %vm1186, %v4203, 0
        %v4322 = vsel %vm1186, %v4220, 0
        %v4325 = vsel %vm1186, %v4237, 0
        %v4328 = vsel %vm1186, %v4254, 0
        %v4331 = vsel %vm1186, %v4271, 0
        %v4334 = vsel %vm1186, %v4288, 0
        %v4337 = vsel %vm1186, %v4305, 0
        %4339 = vmatprep.subr.bf16.mxu0 0
        %4340 = vmatpush1.bf16.msra.mxu0 %v4310
        %4341 = vmatprep.subr.bf16.mxu0 0
        %4342 = vmatpush1.bf16.msra.mxu0 0
        %4343 = vmatprep.subr.bf16.mxu0 0
        %4344 = vmatpush1.bf16.msra.mxu0 0
        %4345 = vmatprep.subr.bf16.mxu0 0
        %4346 = vmatpush1.bf16.msra.mxu0 0
        %4347 = vmatprep.subr.bf16.mxu0 0
        %4348 = vmatpush1.bf16.msra.mxu0 0
        %4349 = vmatprep.subr.bf16.mxu0 0
        %4350 = vmatpush1.bf16.msra.mxu0 0
        %4351 = vmatprep.subr.bf16.mxu0 0
        %4352 = vmatpush1.bf16.msra.mxu0 0
        %4353 = vmatprep.subr.bf16.mxu0 0
        %4354 = vmatpush1.bf16.msra.mxu0 0
        %4355 = vmatprep.subr.bf16.mxu0 0
        %4356 = vmatpush1.bf16.msra.mxu0 0
        %4357 = vmatprep.subr.bf16.mxu0 0
        %4358 = vmatpush1.bf16.msra.mxu0 0
        %4359 = vmatprep.subr.bf16.mxu0 0
        %4360 = vmatpush1.bf16.msra.mxu0 0
        %4361 = vmatprep.subr.bf16.mxu0 0
        %4362 = vmatpush1.bf16.msra.mxu0 0
        %4363 = vmatprep.subr.bf16.mxu0 0
        %4364 = vmatpush1.bf16.msra.mxu0 0
        %4365 = vmatprep.subr.bf16.mxu0 0
        %4366 = vmatpush1.bf16.msra.mxu0 0
        %4367 = vmatprep.subr.bf16.mxu0 0
        %4368 = vmatpush1.bf16.msra.mxu0 0
        %4369 = vmatprep.subr.bf16.mxu0 0
        %4370 = vmatpush1.bf16.msra.mxu0 0
        %4371 = vmatprep.mubr.bf16.mxu0 0
        %4372 = vmatmul.mubr.bf16.gmra.mrb[0].mxu0 %v4313
        %v4373 = vpop.f32.mrb[0].mxu0
        %v4374 = vadd.f32 0.0, %v4373
        %v4375 = vpop.f32.mrb[0].mxu0
        %v4376 = vpop.f32.mrb[0].mxu0
        %v4377 = vadd.f32 0.0, %v4376
        %v4378 = vpop.f32.mrb[0].mxu0
        %4379 = vmatprep.mubr.bf16.mxu0 0
        %4380 = vmatmul.mubr.bf16.gmra.mrb[0].mxu0 %v4316
        %v4381 = vpop.f32.mrb[0].mxu0
        %v4382 = vadd.f32 0.0, %v4381
        %v4383 = vpop.f32.mrb[0].mxu0
        %v4384 = vpop.f32.mrb[0].mxu0
        %v4385 = vadd.f32 0.0, %v4384
        %v4386 = vpop.f32.mrb[0].mxu0
        %4387 = vmatprep.mubr.bf16.mxu0 0
        %4388 = vmatmul.mubr.bf16.gmra.mrb[0].mxu0 %v4319
        %v4389 = vpop.f32.mrb[0].mxu0
        %v4390 = vadd.f32 0.0, %v4389
        %v4391 = vpop.f32.mrb[0].mxu0
        %v4392 = vpop.f32.mrb[0].mxu0
        %v4393 = vadd.f32 0.0, %v4392
        %v4394 = vpop.f32.mrb[0].mxu0
        %4395 = vmatprep.mubr.bf16.mxu0 0
        %4396 = vmatmul.mubr.bf16.gmra.mrb[0].mxu0 %v4322
        %v4397 = vpop.f32.mrb[0].mxu0
        %v4398 = vadd.f32 0.0, %v4397
        %v4399 = vpop.f32.mrb[0].mxu0
        %v4400 = vpop.f32.mrb[0].mxu0
        %v4401 = vadd.f32 0.0, %v4400
        %v4402 = vpop.f32.mrb[0].mxu0
        %4403 = vmatprep.mubr.bf16.mxu0 0
        %4404 = vmatmul.mubr.bf16.gmra.mrb[0].mxu0 %v4325
        %v4405 = vpop.f32.mrb[0].mxu0
        %v4406 = vadd.f32 0.0, %v4405
        %v4407 = vpop.f32.mrb[0].mxu0
        %v4408 = vpop.f32.mrb[0].mxu0
        %v4409 = vadd.f32 0.0, %v4408
        %v4410 = vpop.f32.mrb[0].mxu0
        %4411 = vmatprep.mubr.bf16.mxu0 0
        %4412 = vmatmul.mubr.bf16.gmra.mrb[0].mxu0 %v4328
        %v4413 = vpop.f32.mrb[0].mxu0
        %v4414 = vadd.f32 0.0, %v4413
        %v4415 = vpop.f32.mrb[0].mxu0
        %v4416 = vpop.f32.mrb[0].mxu0
        %v4417 = vadd.f32 0.0, %v4416
        %v4418 = vpop.f32.mrb[0].mxu0
        %4419 = vmatprep.mubr.bf16.mxu0 0
        %4420 = vmatmul.mubr.bf16.gmra.mrb[0].mxu0 %v4331
        %v4421 = vpop.f32.mrb[0].mxu0
        %v4422 = vadd.f32 0.0, %v4421
        %v4423 = vpop.f32.mrb[0].mxu0
        %v4424 = vpop.f32.mrb[0].mxu0
        %v4425 = vadd.f32 0.0, %v4424
        %v4426 = vpop.f32.mrb[0].mxu0
        %4427 = vmatprep.mubr.bf16.mxu0 0
        %4428 = vmatmul.mubr.bf16.gmra.mrb[0].mxu0 %v4334
        %v4429 = vpop.f32.mrb[0].mxu0
        %v4430 = vadd.f32 0.0, %v4429
        %v4431 = vpop.f32.mrb[0].mxu0
        %v4432 = vpop.f32.mrb[0].mxu0
        %v4433 = vadd.f32 0.0, %v4432
        %v4434 = vpop.f32.mrb[0].mxu0
        %4435 = vmatprep.mubr.bf16.mxu0 0
        %4436 = vmatmul.mubr.bf16.gmra.mrb[0].mxu0 %v4337
        %v4437 = vpop.f32.mrb[0].mxu0
        %v4438 = vadd.f32 0.0, %v4437
        %v4439 = vpop.f32.mrb[0].mxu0
        %v4440 = vpop.f32.mrb[0].mxu0
        %v4441 = vadd.f32 0.0, %v4440
        %v4442 = vpop.f32.mrb[0].mxu0
        %4443 = vdwg.mxu0
        %v4444 = vadd.f32 %v3772, %v4374
        %v4445 = vadd.f32 %v3773, %v4377
        %v4446 = vadd.f32 %v3774, %v4382
        %v4447 = vadd.f32 %v3775, %v4385
        %v4448 = vadd.f32 %v3776, %v4390
        %v4449 = vadd.f32 %v3777, %v4393
        %v4450 = vadd.f32 %v3778, %v4398
        %v4451 = vadd.f32 %v3779, %v4401
        %v4452 = vadd.f32 %v3780, %v4406
        %v4453 = vadd.f32 %v3781, %v4409
        %v4454 = vadd.f32 %v3782, %v4414
        %v4455 = vadd.f32 %v3783, %v4417
        %v4456 = vadd.f32 %v3784, %v4422
        %v4457 = vadd.f32 %v3785, %v4425
        %v4458 = vadd.f32 %v3786, %v4430
        %v4459 = vadd.f32 %v3787, %v4433
        %v4460 = vadd.f32 %v3788, %v4438
        %v4461 = vadd.f32 %v3789, %v4441
        %s4462 = scalar_lea.vmem %s245, 16
        %v4463 = vld [vmem:[%s4462] sm:$0xf]
        %v4464 = vld [vmem:[%s4462 + $0x4] sm:$0x3]
        %v4465 = vld [vmem:[%s4462 + $0x8] sm:$0xf]
        %v4466 = vld [vmem:[%s4462 + $0xc] sm:$0x3]
        %v4467 = vld [vmem:[%s4462 + $0x10] sm:$0xf]
        %v4468 = vld [vmem:[%s4462 + $0x14] sm:$0x3]
        %v4469 = vld [vmem:[%s4462 + $0x18] sm:$0xf]
        %v4470 = vld [vmem:[%s4462 + $0x1c] sm:$0x3]
        %v4471 = vld [vmem:[%s4462 + $0x20] sm:$0xf]
        %v4472 = vld [vmem:[%s4462 + $0x24] sm:$0x3]
        %v4473 = vld [vmem:[%s4462 + $0x28] sm:$0xf]
        %v4474 = vld [vmem:[%s4462 + $0x2c] sm:$0x3]
        %v4475 = vld [vmem:[%s4462 + $0x30] sm:$0xf]
        %v4476 = vld [vmem:[%s4462 + $0x34] sm:$0x3]
        %v4477 = vld [vmem:[%s4462 + $0x38] sm:$0xf]
        %v4478 = vld [vmem:[%s4462 + $0x3c] sm:$0x3]
        %v4479 = vld [vmem:[%s4462 + $0x40] sm:$0xf]
        %v4480 = vld [vmem:[%s4462 + $0x44] sm:$0x3]
        %v4481 = vld [vmem:[%s4462 + $0x48] sm:$0xf]
        %v4482 = vld [vmem:[%s4462 + $0x4c] sm:$0x3]
        %v4483 = vld [vmem:[%s4462 + $0x50] sm:$0xf]
        %v4484 = vld [vmem:[%s4462 + $0x54] sm:$0x3]
        %v4485 = vld [vmem:[%s4462 + $0x58] sm:$0xf]
        %v4486 = vld [vmem:[%s4462 + $0x5c] sm:$0x3]
        %v4512 = vunpack.c.l.s4 1983009808
        %v4513 = vunpack.c.0.s8 %v4512
        %v4514 = vlaneseq
        %v4515 = vshrl.u32 %v4514, 7
        %v4516 = vsub.s32 %v4513, %v4515
        %v4517 = vrot.slane %v4463, %v4516
        %v4518 = vcombine.high %v4517, %v4517
        %v4520 = vunpack.c.l.s4 1983009808
        %v4521 = vunpack.c.0.s8 %v4520
        %v4522 = vlaneseq
        %v4523 = vshrl.u32 %v4522, 7
        %v4524 = vsub.s32 %v4521, %v4523
        %v4525 = vrot.slane %v4464, %v4524
        %v4527 = vunpack.c.l.s4 1983009808
        %v4528 = vunpack.c.0.s8 %v4527
        %v4529 = vlaneseq
        %v4530 = vshrl.u32 %v4529, 7
        %v4531 = vsub.s32 %v4528, %v4530
        %v4532 = vrot.slane %v4465, %v4531
        %v4533 = vcombine.high %v4532, %v4532
        %v4535 = vunpack.c.l.s4 1983009808
        %v4536 = vunpack.c.0.s8 %v4535
        %v4537 = vlaneseq
        %v4538 = vshrl.u32 %v4537, 7
        %v4539 = vsub.s32 %v4536, %v4538
        %v4540 = vrot.slane %v4466, %v4539
        %v4542 = vunpack.c.l.s4 1983009808
        %v4543 = vunpack.c.0.s8 %v4542
        %v4544 = vlaneseq
        %v4545 = vshrl.u32 %v4544, 7
        %v4546 = vsub.s32 %v4543, %v4545
        %v4547 = vrot.slane %v4467, %v4546
        %v4548 = vcombine.high %v4547, %v4547
        %v4550 = vunpack.c.l.s4 1983009808
        %v4551 = vunpack.c.0.s8 %v4550
        %v4552 = vlaneseq
        %v4553 = vshrl.u32 %v4552, 7
        %v4554 = vsub.s32 %v4551, %v4553
        %v4555 = vrot.slane %v4468, %v4554
        %v4557 = vunpack.c.l.s4 1983009808
        %v4558 = vunpack.c.0.s8 %v4557
        %v4559 = vlaneseq
        %v4560 = vshrl.u32 %v4559, 7
        %v4561 = vsub.s32 %v4558, %v4560
        %v4562 = vrot.slane %v4469, %v4561
        %v4563 = vcombine.high %v4562, %v4562
        %v4565 = vunpack.c.l.s4 1983009808
        %v4566 = vunpack.c.0.s8 %v4565
        %v4567 = vlaneseq
        %v4568 = vshrl.u32 %v4567, 7
        %v4569 = vsub.s32 %v4566, %v4568
        %v4570 = vrot.slane %v4470, %v4569
        %v4572 = vunpack.c.l.s4 1983009808
        %v4573 = vunpack.c.0.s8 %v4572
        %v4574 = vlaneseq
        %v4575 = vshrl.u32 %v4574, 7
        %v4576 = vsub.s32 %v4573, %v4575
        %v4577 = vrot.slane %v4471, %v4576
        %v4578 = vcombine.high %v4577, %v4577
        %v4580 = vunpack.c.l.s4 1983009808
        %v4581 = vunpack.c.0.s8 %v4580
        %v4582 = vlaneseq
        %v4583 = vshrl.u32 %v4582, 7
        %v4584 = vsub.s32 %v4581, %v4583
        %v4585 = vrot.slane %v4472, %v4584
        %v4587 = vunpack.c.l.s4 1983009808
        %v4588 = vunpack.c.0.s8 %v4587
        %v4589 = vlaneseq
        %v4590 = vshrl.u32 %v4589, 7
        %v4591 = vsub.s32 %v4588, %v4590
        %v4592 = vrot.slane %v4473, %v4591
        %v4593 = vcombine.high %v4592, %v4592
        %v4595 = vunpack.c.l.s4 1983009808
        %v4596 = vunpack.c.0.s8 %v4595
        %v4597 = vlaneseq
        %v4598 = vshrl.u32 %v4597, 7
        %v4599 = vsub.s32 %v4596, %v4598
        %v4600 = vrot.slane %v4474, %v4599
        %v4602 = vunpack.c.l.s4 1983009808
        %v4603 = vunpack.c.0.s8 %v4602
        %v4604 = vlaneseq
        %v4605 = vshrl.u32 %v4604, 7
        %v4606 = vsub.s32 %v4603, %v4605
        %v4607 = vrot.slane %v4475, %v4606
        %v4608 = vcombine.high %v4607, %v4607
        %v4610 = vunpack.c.l.s4 1983009808
        %v4611 = vunpack.c.0.s8 %v4610
        %v4612 = vlaneseq
        %v4613 = vshrl.u32 %v4612, 7
        %v4614 = vsub.s32 %v4611, %v4613
        %v4615 = vrot.slane %v4476, %v4614
        %v4617 = vunpack.c.l.s4 1983009808
        %v4618 = vunpack.c.0.s8 %v4617
        %v4619 = vlaneseq
        %v4620 = vshrl.u32 %v4619, 7
        %v4621 = vsub.s32 %v4618, %v4620
        %v4622 = vrot.slane %v4477, %v4621
        %v4623 = vcombine.high %v4622, %v4622
        %v4625 = vunpack.c.l.s4 1983009808
        %v4626 = vunpack.c.0.s8 %v4625
        %v4627 = vlaneseq
        %v4628 = vshrl.u32 %v4627, 7
        %v4629 = vsub.s32 %v4626, %v4628
        %v4630 = vrot.slane %v4478, %v4629
        %v4632 = vunpack.c.l.s4 1983009808
        %v4633 = vunpack.c.0.s8 %v4632
        %v4634 = vlaneseq
        %v4635 = vshrl.u32 %v4634, 7
        %v4636 = vsub.s32 %v4633, %v4635
        %v4637 = vrot.slane %v4479, %v4636
        %v4638 = vcombine.high %v4637, %v4637
        %v4640 = vunpack.c.l.s4 1983009808
        %v4641 = vunpack.c.0.s8 %v4640
        %v4642 = vlaneseq
        %v4643 = vshrl.u32 %v4642, 7
        %v4644 = vsub.s32 %v4641, %v4643
        %v4645 = vrot.slane %v4480, %v4644
        %v4647 = vunpack.c.l.s4 1983009808
        %v4648 = vunpack.c.0.s8 %v4647
        %v4649 = vlaneseq
        %v4650 = vshrl.u32 %v4649, 7
        %v4651 = vsub.s32 %v4648, %v4650
        %v4652 = vrot.slane %v4481, %v4651
        %v4653 = vcombine.high %v4652, %v4652
        %v4655 = vunpack.c.l.s4 1983009808
        %v4656 = vunpack.c.0.s8 %v4655
        %v4657 = vlaneseq
        %v4658 = vshrl.u32 %v4657, 7
        %v4659 = vsub.s32 %v4656, %v4658
        %v4660 = vrot.slane %v4482, %v4659
        %v4662 = vunpack.c.l.s4 1983009808
        %v4663 = vunpack.c.0.s8 %v4662
        %v4664 = vlaneseq
        %v4665 = vshrl.u32 %v4664, 7
        %v4666 = vsub.s32 %v4663, %v4665
        %v4667 = vrot.slane %v4483, %v4666
        %v4668 = vcombine.high %v4667, %v4667
        %v4670 = vunpack.c.l.s4 1983009808
        %v4671 = vunpack.c.0.s8 %v4670
        %v4672 = vlaneseq
        %v4673 = vshrl.u32 %v4672, 7
        %v4674 = vsub.s32 %v4671, %v4673
        %v4675 = vrot.slane %v4484, %v4674
        %v4677 = vunpack.c.l.s4 1983009808
        %v4678 = vunpack.c.0.s8 %v4677
        %v4679 = vlaneseq
        %v4680 = vshrl.u32 %v4679, 7
        %v4681 = vsub.s32 %v4678, %v4680
        %v4682 = vrot.slane %v4485, %v4681
        %v4683 = vcombine.high %v4682, %v4682
        %v4685 = vunpack.c.l.s4 1983009808
        %v4686 = vunpack.c.0.s8 %v4685
        %v4687 = vlaneseq
        %v4688 = vshrl.u32 %v4687, 7
        %v4689 = vsub.s32 %v4686, %v4688
        %v4690 = vrot.slane %v4486, %v4689
        %s4691 = scalar_lea.vmem %s249, 48
        %v4692 = vld [vmem:[%s4691] sm:$0xf]
        %v4693 = vld [vmem:[%s4691 + $0x4] sm:$0xf]
        %v4694 = vcombine.low %v4517, %v4518
        %v4695 = vcombine.low %v4525, %v4532
        %v4697 = vunpack.c.l.s4 1983009808
        %v4698 = vunpack.c.0.s8 %v4697
        %v4699 = vlaneseq
        %v4700 = vshrl.u32 %v4699, 7
        %v4701 = vsub.s32 %v4698, %v4700
        %v4702 = vrot.slane %v4694, %v4701
        %v4704 = vunpack.c.l.s4 1983009808
        %v4705 = vunpack.c.0.s8 %v4704
        %v4706 = vlaneseq
        %v4707 = vshrl.u32 %v4706, 7
        %v4708 = vsub.s32 %v4705, %v4707
        %v4709 = vrot.slane %v4695, %v4708
        %v4710 = vcombine.low %v4702, %v4709
        %v4711 = vcombine.low %v4533, %v4540
        %v4712 = vcombine.low %v4547, %v4548
        %v4714 = vunpack.c.l.s4 1983009808
        %v4715 = vunpack.c.0.s8 %v4714
        %v4716 = vlaneseq
        %v4717 = vshrl.u32 %v4716, 7
        %v4718 = vsub.s32 %v4715, %v4717
        %v4719 = vrot.slane %v4711, %v4718
        %v4721 = vunpack.c.l.s4 1983009808
        %v4722 = vunpack.c.0.s8 %v4721
        %v4723 = vlaneseq
        %v4724 = vshrl.u32 %v4723, 7
        %v4725 = vsub.s32 %v4722, %v4724
        %v4726 = vrot.slane %v4712, %v4725
        %v4727 = vcombine.low %v4719, %v4726
        %v4728 = vcombine.low %v4555, %v4562
        %v4729 = vcombine.low %v4563, %v4570
        %v4731 = vunpack.c.l.s4 1983009808
        %v4732 = vunpack.c.0.s8 %v4731
        %v4733 = vlaneseq
        %v4734 = vshrl.u32 %v4733, 7
        %v4735 = vsub.s32 %v4732, %v4734
        %v4736 = vrot.slane %v4728, %v4735
        %v4738 = vunpack.c.l.s4 1983009808
        %v4739 = vunpack.c.0.s8 %v4738
        %v4740 = vlaneseq
        %v4741 = vshrl.u32 %v4740, 7
        %v4742 = vsub.s32 %v4739, %v4741
        %v4743 = vrot.slane %v4729, %v4742
        %v4744 = vcombine.low %v4736, %v4743
        %v4745 = vcombine.low %v4577, %v4578
        %v4746 = vcombine.low %v4585, %v4592
        %v4748 = vunpack.c.l.s4 1983009808
        %v4749 = vunpack.c.0.s8 %v4748
        %v4750 = vlaneseq
        %v4751 = vshrl.u32 %v4750, 7
        %v4752 = vsub.s32 %v4749, %v4751
        %v4753 = vrot.slane %v4745, %v4752
        %v4755 = vunpack.c.l.s4 1983009808
        %v4756 = vunpack.c.0.s8 %v4755
        %v4757 = vlaneseq
        %v4758 = vshrl.u32 %v4757, 7
        %v4759 = vsub.s32 %v4756, %v4758
        %v4760 = vrot.slane %v4746, %v4759
        %v4761 = vcombine.low %v4753, %v4760
        %v4762 = vcombine.low %v4593, %v4600
        %v4763 = vcombine.low %v4607, %v4608
        %v4765 = vunpack.c.l.s4 1983009808
        %v4766 = vunpack.c.0.s8 %v4765
        %v4767 = vlaneseq
        %v4768 = vshrl.u32 %v4767, 7
        %v4769 = vsub.s32 %v4766, %v4768
        %v4770 = vrot.slane %v4762, %v4769
        %v4772 = vunpack.c.l.s4 1983009808
        %v4773 = vunpack.c.0.s8 %v4772
        %v4774 = vlaneseq
        %v4775 = vshrl.u32 %v4774, 7
        %v4776 = vsub.s32 %v4773, %v4775
        %v4777 = vrot.slane %v4763, %v4776
        %v4778 = vcombine.low %v4770, %v4777
        %v4779 = vcombine.low %v4615, %v4622
        %v4780 = vcombine.low %v4623, %v4630
        %v4782 = vunpack.c.l.s4 1983009808
        %v4783 = vunpack.c.0.s8 %v4782
        %v4784 = vlaneseq
        %v4785 = vshrl.u32 %v4784, 7
        %v4786 = vsub.s32 %v4783, %v4785
        %v4787 = vrot.slane %v4779, %v4786
        %v4789 = vunpack.c.l.s4 1983009808
        %v4790 = vunpack.c.0.s8 %v4789
        %v4791 = vlaneseq
        %v4792 = vshrl.u32 %v4791, 7
        %v4793 = vsub.s32 %v4790, %v4792
        %v4794 = vrot.slane %v4780, %v4793
        %v4795 = vcombine.low %v4787, %v4794
        %v4796 = vcombine.low %v4637, %v4638
        %v4797 = vcombine.low %v4645, %v4652
        %v4799 = vunpack.c.l.s4 1983009808
        %v4800 = vunpack.c.0.s8 %v4799
        %v4801 = vlaneseq
        %v4802 = vshrl.u32 %v4801, 7
        %v4803 = vsub.s32 %v4800, %v4802
        %v4804 = vrot.slane %v4796, %v4803
        %v4806 = vunpack.c.l.s4 1983009808
        %v4807 = vunpack.c.0.s8 %v4806
        %v4808 = vlaneseq
        %v4809 = vshrl.u32 %v4808, 7
        %v4810 = vsub.s32 %v4807, %v4809
        %v4811 = vrot.slane %v4797, %v4810
        %v4812 = vcombine.low %v4804, %v4811
        %v4813 = vcombine.low %v4653, %v4660
        %v4814 = vcombine.low %v4667, %v4668
        %v4816 = vunpack.c.l.s4 1983009808
        %v4817 = vunpack.c.0.s8 %v4816
        %v4818 = vlaneseq
        %v4819 = vshrl.u32 %v4818, 7
        %v4820 = vsub.s32 %v4817, %v4819
        %v4821 = vrot.slane %v4813, %v4820
        %v4823 = vunpack.c.l.s4 1983009808
        %v4824 = vunpack.c.0.s8 %v4823
        %v4825 = vlaneseq
        %v4826 = vshrl.u32 %v4825, 7
        %v4827 = vsub.s32 %v4824, %v4826
        %v4828 = vrot.slane %v4814, %v4827
        %v4829 = vcombine.low %v4821, %v4828
        %v4830 = vcombine.low %v4675, %v4682
        %v4831 = vcombine.low %v4683, %v4690
        %v4833 = vunpack.c.l.s4 1983009808
        %v4834 = vunpack.c.0.s8 %v4833
        %v4835 = vlaneseq
        %v4836 = vshrl.u32 %v4835, 7
        %v4837 = vsub.s32 %v4834, %v4836
        %v4838 = vrot.slane %v4830, %v4837
        %v4840 = vunpack.c.l.s4 1983009808
        %v4841 = vunpack.c.0.s8 %v4840
        %v4842 = vlaneseq
        %v4843 = vshrl.u32 %v4842, 7
        %v4844 = vsub.s32 %v4841, %v4843
        %v4845 = vrot.slane %v4831, %v4844
        %v4846 = vcombine.low %v4838, %v4845
        %v4849 = vunpack.c.l.b16 %v4692
        %v4850 = vunpack.c.l.b16 %v4693
        %v4851 = vpack.c.b16 %v4850, %v4849
        %v4854 = vsel %vm1186, %v4710, 0
        %v4857 = vsel %vm1186, %v4727, 0
        %v4860 = vsel %vm1186, %v4744, 0
        %v4863 = vsel %vm1186, %v4761, 0
        %v4866 = vsel %vm1186, %v4778, 0
        %v4869 = vsel %vm1186, %v4795, 0
        %v4872 = vsel %vm1186, %v4812, 0
        %v4875 = vsel %vm1186, %v4829, 0
        %v4878 = vsel %vm1186, %v4846, 0
        %4880 = vmatprep.subr.bf16.mxu0 0
        %4881 = vmatpush1.bf16.msra.mxu0 %v4851
        %4882 = vmatprep.subr.bf16.mxu0 0
        %4883 = vmatpush1.bf16.msra.mxu0 0
        %4884 = vmatprep.subr.bf16.mxu0 0
        %4885 = vmatpush1.bf16.msra.mxu0 0
        %4886 = vmatprep.subr.bf16.mxu0 0
        %4887 = vmatpush1.bf16.msra.mxu0 0
        %4888 = vmatprep.subr.bf16.mxu0 0
        %4889 = vmatpush1.bf16.msra.mxu0 0
        %4890 = vmatprep.subr.bf16.mxu0 0
        %4891 = vmatpush1.bf16.msra.mxu0 0
        %4892 = vmatprep.subr.bf16.mxu0 0
        %4893 = vmatpush1.bf16.msra.mxu0 0
        %4894 = vmatprep.subr.bf16.mxu0 0
        %4895 = vmatpush1.bf16.msra.mxu0 0
        %4896 = vmatprep.subr.bf16.mxu0 0
        %4897 = vmatpush1.bf16.msra.mxu0 0
        %4898 = vmatprep.subr.bf16.mxu0 0
        %4899 = vmatpush1.bf16.msra.mxu0 0
        %4900 = vmatprep.subr.bf16.mxu0 0
        %4901 = vmatpush1.bf16.msra.mxu0 0
        %4902 = vmatprep.subr.bf16.mxu0 0
        %4903 = vmatpush1.bf16.msra.mxu0 0
        %4904 = vmatprep.subr.bf16.mxu0 0
        %4905 = vmatpush1.bf16.msra.mxu0 0
        %4906 = vmatprep.subr.bf16.mxu0 0
        %4907 = vmatpush1.bf16.msra.mxu0 0
        %4908 = vmatprep.subr.bf16.mxu0 0
        %4909 = vmatpush1.bf16.msra.mxu0 0
        %4910 = vmatprep.subr.bf16.mxu0 0
        %4911 = vmatpush1.bf16.msra.mxu0 0
        %4912 = vmatprep.mubr.bf16.mxu0 0
        %4913 = vmatmul.mubr.bf16.gmra.mrb[0].mxu0 %v4854
        %v4914 = vpop.f32.mrb[0].mxu0
        %v4915 = vadd.f32 0.0, %v4914
        %v4916 = vpop.f32.mrb[0].mxu0
        %v4917 = vpop.f32.mrb[0].mxu0
        %v4918 = vadd.f32 0.0, %v4917
        %v4919 = vpop.f32.mrb[0].mxu0
        %4920 = vmatprep.mubr.bf16.mxu0 0
        %4921 = vmatmul.mubr.bf16.gmra.mrb[0].mxu0 %v4857
        %v4922 = vpop.f32.mrb[0].mxu0
        %v4923 = vadd.f32 0.0, %v4922
        %v4924 = vpop.f32.mrb[0].mxu0
        %v4925 = vpop.f32.mrb[0].mxu0
        %v4926 = vadd.f32 0.0, %v4925
        %v4927 = vpop.f32.mrb[0].mxu0
        %4928 = vmatprep.mubr.bf16.mxu0 0
        %4929 = vmatmul.mubr.bf16.gmra.mrb[0].mxu0 %v4860
        %v4930 = vpop.f32.mrb[0].mxu0
        %v4931 = vadd.f32 0.0, %v4930
        %v4932 = vpop.f32.mrb[0].mxu0
        %v4933 = vpop.f32.mrb[0].mxu0
        %v4934 = vadd.f32 0.0, %v4933
        %v4935 = vpop.f32.mrb[0].mxu0
        %4936 = vmatprep.mubr.bf16.mxu0 0
        %4937 = vmatmul.mubr.bf16.gmra.mrb[0].mxu0 %v4863
        %v4938 = vpop.f32.mrb[0].mxu0
        %v4939 = vadd.f32 0.0, %v4938
        %v4940 = vpop.f32.mrb[0].mxu0
        %v4941 = vpop.f32.mrb[0].mxu0
        %v4942 = vadd.f32 0.0, %v4941
        %v4943 = vpop.f32.mrb[0].mxu0
        %4944 = vmatprep.mubr.bf16.mxu0 0
        %4945 = vmatmul.mubr.bf16.gmra.mrb[0].mxu0 %v4866
        %v4946 = vpop.f32.mrb[0].mxu0
        %v4947 = vadd.f32 0.0, %v4946
        %v4948 = vpop.f32.mrb[0].mxu0
        %v4949 = vpop.f32.mrb[0].mxu0
        %v4950 = vadd.f32 0.0, %v4949
        %v4951 = vpop.f32.mrb[0].mxu0
        %4952 = vmatprep.mubr.bf16.mxu0 0
        %4953 = vmatmul.mubr.bf16.gmra.mrb[0].mxu0 %v4869
        %v4954 = vpop.f32.mrb[0].mxu0
        %v4955 = vadd.f32 0.0, %v4954
        %v4956 = vpop.f32.mrb[0].mxu0
        %v4957 = vpop.f32.mrb[0].mxu0
        %v4958 = vadd.f32 0.0, %v4957
        %v4959 = vpop.f32.mrb[0].mxu0
        %4960 = vmatprep.mubr.bf16.mxu0 0
        %4961 = vmatmul.mubr.bf16.gmra.mrb[0].mxu0 %v4872
        %v4962 = vpop.f32.mrb[0].mxu0
        %v4963 = vadd.f32 0.0, %v4962
        %v4964 = vpop.f32.mrb[0].mxu0
        %v4965 = vpop.f32.mrb[0].mxu0
        %v4966 = vadd.f32 0.0, %v4965
        %v4967 = vpop.f32.mrb[0].mxu0
        %4968 = vmatprep.mubr.bf16.mxu0 0
        %4969 = vmatmul.mubr.bf16.gmra.mrb[0].mxu0 %v4875
        %v4970 = vpop.f32.mrb[0].mxu0
        %v4971 = vadd.f32 0.0, %v4970
        %v4972 = vpop.f32.mrb[0].mxu0
        %v4973 = vpop.f32.mrb[0].mxu0
        %v4974 = vadd.f32 0.0, %v4973
        %v4975 = vpop.f32.mrb[0].mxu0
        %4976 = vmatprep.mubr.bf16.mxu0 0
        %4977 = vmatmul.mubr.bf16.gmra.mrb[0].mxu0 %v4878
        %v4978 = vpop.f32.mrb[0].mxu0
        %v4979 = vadd.f32 0.0, %v4978
        %v4980 = vpop.f32.mrb[0].mxu0
        %v4981 = vpop.f32.mrb[0].mxu0
        %v4982 = vadd.f32 0.0, %v4981
        %v4983 = vpop.f32.mrb[0].mxu0
        %4984 = vdwg.mxu0
        %v4985 = vadd.f32 %v4444, %v4915
        %v4986 = vadd.f32 %v4445, %v4918
        %v4987 = vadd.f32 %v4446, %v4923
        %v4988 = vadd.f32 %v4447, %v4926
        %v4989 = vadd.f32 %v4448, %v4931
        %v4990 = vadd.f32 %v4449, %v4934
        %v4991 = vadd.f32 %v4450, %v4939
        %v4992 = vadd.f32 %v4451, %v4942
        %v4993 = vadd.f32 %v4452, %v4947
        %v4994 = vadd.f32 %v4453, %v4950
        %v4995 = vadd.f32 %v4454, %v4955
        %v4996 = vadd.f32 %v4455, %v4958
        %v4997 = vadd.f32 %v4456, %v4963
        %v4998 = vadd.f32 %v4457, %v4966
        %v4999 = vadd.f32 %v4458, %v4971
        %v5000 = vadd.f32 %v4459, %v4974
        %v5001 = vadd.f32 %v4460, %v4979
        %v5002 = vadd.f32 %v4461, %v4982
        %v5003 = vld [vmem:[%s4462] sm:$0xf]
        %v5004 = vld [vmem:[%s4462 + $0x4] sm:$0x7]
        %v5005 = vld [vmem:[%s4462 + $0x8] sm:$0xf]
        %v5006 = vld [vmem:[%s4462 + $0xc] sm:$0x7]
        %v5007 = vld [vmem:[%s4462 + $0x10] sm:$0xf]
        %v5008 = vld [vmem:[%s4462 + $0x14] sm:$0x7]
        %v5009 = vld [vmem:[%s4462 + $0x18] sm:$0xf]
        %v5010 = vld [vmem:[%s4462 + $0x1c] sm:$0x7]
        %v5011 = vld [vmem:[%s4462 + $0x20] sm:$0xf]
        %v5012 = vld [vmem:[%s4462 + $0x24] sm:$0x7]
        %v5013 = vld [vmem:[%s4462 + $0x28] sm:$0xf]
        %v5014 = vld [vmem:[%s4462 + $0x2c] sm:$0x7]
        %v5015 = vld [vmem:[%s4462 + $0x30] sm:$0xf]
        %v5016 = vld [vmem:[%s4462 + $0x34] sm:$0x7]
        %v5017 = vld [vmem:[%s4462 + $0x38] sm:$0xf]
        %v5018 = vld [vmem:[%s4462 + $0x3c] sm:$0x7]
        %v5019 = vld [vmem:[%s4462 + $0x40] sm:$0xf]
        %v5020 = vld [vmem:[%s4462 + $0x44] sm:$0x7]
        %v5021 = vld [vmem:[%s4462 + $0x48] sm:$0xf]
        %v5022 = vld [vmem:[%s4462 + $0x4c] sm:$0x7]
        %v5023 = vld [vmem:[%s4462 + $0x50] sm:$0xf]
        %v5024 = vld [vmem:[%s4462 + $0x54] sm:$0x7]
        %v5025 = vld [vmem:[%s4462 + $0x58] sm:$0xf]
        %v5026 = vld [vmem:[%s4462 + $0x5c] sm:$0x7]
        %v5052 = vunpack.c.l.s4 1983009808
        %v5053 = vunpack.c.0.s8 %v5052
        %v5054 = vlaneseq
        %v5055 = vshrl.u32 %v5054, 7
        %v5056 = vsub.s32 %v5053, %v5055
        %v5057 = vrot.slane %v5003, %v5056
        %v5058 = vcombine.high %v5057, %v5057
        %v5060 = vunpack.c.l.s4 1983009808
        %v5061 = vunpack.c.0.s8 %v5060
        %v5062 = vlaneseq
        %v5063 = vshrl.u32 %v5062, 7
        %v5064 = vsub.s32 %v5061, %v5063
        %v5065 = vrot.slane %v5004, %v5064
        %v5066 = vcombine.high %v5065, %v5065
        %v5068 = vunpack.c.l.s4 1983009808
        %v5069 = vunpack.c.0.s8 %v5068
        %v5070 = vlaneseq
        %v5071 = vshrl.u32 %v5070, 7
        %v5072 = vsub.s32 %v5069, %v5071
        %v5073 = vrot.slane %v5005, %v5072
        %v5074 = vcombine.high %v5073, %v5073
        %v5076 = vunpack.c.l.s4 1983009808
        %v5077 = vunpack.c.0.s8 %v5076
        %v5078 = vlaneseq
        %v5079 = vshrl.u32 %v5078, 7
        %v5080 = vsub.s32 %v5077, %v5079
        %v5081 = vrot.slane %v5006, %v5080
        %v5082 = vcombine.high %v5081, %v5081
        %v5084 = vunpack.c.l.s4 1983009808
        %v5085 = vunpack.c.0.s8 %v5084
        %v5086 = vlaneseq
        %v5087 = vshrl.u32 %v5086, 7
        %v5088 = vsub.s32 %v5085, %v5087
        %v5089 = vrot.slane %v5007, %v5088
        %v5090 = vcombine.high %v5089, %v5089
        %v5092 = vunpack.c.l.s4 1983009808
        %v5093 = vunpack.c.0.s8 %v5092
        %v5094 = vlaneseq
        %v5095 = vshrl.u32 %v5094, 7
        %v5096 = vsub.s32 %v5093, %v5095
        %v5097 = vrot.slane %v5008, %v5096
        %v5098 = vcombine.high %v5097, %v5097
        %v5100 = vunpack.c.l.s4 1983009808
        %v5101 = vunpack.c.0.s8 %v5100
        %v5102 = vlaneseq
        %v5103 = vshrl.u32 %v5102, 7
        %v5104 = vsub.s32 %v5101, %v5103
        %v5105 = vrot.slane %v5009, %v5104
        %v5106 = vcombine.high %v5105, %v5105
        %v5108 = vunpack.c.l.s4 1983009808
        %v5109 = vunpack.c.0.s8 %v5108
        %v5110 = vlaneseq
        %v5111 = vshrl.u32 %v5110, 7
        %v5112 = vsub.s32 %v5109, %v5111
        %v5113 = vrot.slane %v5010, %v5112
        %v5114 = vcombine.high %v5113, %v5113
        %v5116 = vunpack.c.l.s4 1983009808
        %v5117 = vunpack.c.0.s8 %v5116
        %v5118 = vlaneseq
        %v5119 = vshrl.u32 %v5118, 7
        %v5120 = vsub.s32 %v5117, %v5119
        %v5121 = vrot.slane %v5011, %v5120
        %v5122 = vcombine.high %v5121, %v5121
        %v5124 = vunpack.c.l.s4 1983009808
        %v5125 = vunpack.c.0.s8 %v5124
        %v5126 = vlaneseq
        %v5127 = vshrl.u32 %v5126, 7
        %v5128 = vsub.s32 %v5125, %v5127
        %v5129 = vrot.slane %v5012, %v5128
        %v5130 = vcombine.high %v5129, %v5129
        %v5132 = vunpack.c.l.s4 1983009808
        %v5133 = vunpack.c.0.s8 %v5132
        %v5134 = vlaneseq
        %v5135 = vshrl.u32 %v5134, 7
        %v5136 = vsub.s32 %v5133, %v5135
        %v5137 = vrot.slane %v5013, %v5136
        %v5138 = vcombine.high %v5137, %v5137
        %v5140 = vunpack.c.l.s4 1983009808
        %v5141 = vunpack.c.0.s8 %v5140
        %v5142 = vlaneseq
        %v5143 = vshrl.u32 %v5142, 7
        %v5144 = vsub.s32 %v5141, %v5143
        %v5145 = vrot.slane %v5014, %v5144
        %v5146 = vcombine.high %v5145, %v5145
        %v5148 = vunpack.c.l.s4 1983009808
        %v5149 = vunpack.c.0.s8 %v5148
        %v5150 = vlaneseq
        %v5151 = vshrl.u32 %v5150, 7
        %v5152 = vsub.s32 %v5149, %v5151
        %v5153 = vrot.slane %v5015, %v5152
        %v5154 = vcombine.high %v5153, %v5153
        %v5156 = vunpack.c.l.s4 1983009808
        %v5157 = vunpack.c.0.s8 %v5156
        %v5158 = vlaneseq
        %v5159 = vshrl.u32 %v5158, 7
        %v5160 = vsub.s32 %v5157, %v5159
        %v5161 = vrot.slane %v5016, %v5160
        %v5162 = vcombine.high %v5161, %v5161
        %v5164 = vunpack.c.l.s4 1983009808
        %v5165 = vunpack.c.0.s8 %v5164
        %v5166 = vlaneseq
        %v5167 = vshrl.u32 %v5166, 7
        %v5168 = vsub.s32 %v5165, %v5167
        %v5169 = vrot.slane %v5017, %v5168
        %v5170 = vcombine.high %v5169, %v5169
        %v5172 = vunpack.c.l.s4 1983009808
        %v5173 = vunpack.c.0.s8 %v5172
        %v5174 = vlaneseq
        %v5175 = vshrl.u32 %v5174, 7
        %v5176 = vsub.s32 %v5173, %v5175
        %v5177 = vrot.slane %v5018, %v5176
        %v5178 = vcombine.high %v5177, %v5177
        %v5180 = vunpack.c.l.s4 1983009808
        %v5181 = vunpack.c.0.s8 %v5180
        %v5182 = vlaneseq
        %v5183 = vshrl.u32 %v5182, 7
        %v5184 = vsub.s32 %v5181, %v5183
        %v5185 = vrot.slane %v5019, %v5184
        %v5186 = vcombine.high %v5185, %v5185
        %v5188 = vunpack.c.l.s4 1983009808
        %v5189 = vunpack.c.0.s8 %v5188
        %v5190 = vlaneseq
        %v5191 = vshrl.u32 %v5190, 7
        %v5192 = vsub.s32 %v5189, %v5191
        %v5193 = vrot.slane %v5020, %v5192
        %v5194 = vcombine.high %v5193, %v5193
        %v5196 = vunpack.c.l.s4 1983009808
        %v5197 = vunpack.c.0.s8 %v5196
        %v5198 = vlaneseq
        %v5199 = vshrl.u32 %v5198, 7
        %v5200 = vsub.s32 %v5197, %v5199
        %v5201 = vrot.slane %v5021, %v5200
        %v5202 = vcombine.high %v5201, %v5201
        %v5204 = vunpack.c.l.s4 1983009808
        %v5205 = vunpack.c.0.s8 %v5204
        %v5206 = vlaneseq
        %v5207 = vshrl.u32 %v5206, 7
        %v5208 = vsub.s32 %v5205, %v5207
        %v5209 = vrot.slane %v5022, %v5208
        %v5210 = vcombine.high %v5209, %v5209
        %v5212 = vunpack.c.l.s4 1983009808
        %v5213 = vunpack.c.0.s8 %v5212
        %v5214 = vlaneseq
        %v5215 = vshrl.u32 %v5214, 7
        %v5216 = vsub.s32 %v5213, %v5215
        %v5217 = vrot.slane %v5023, %v5216
        %v5218 = vcombine.high %v5217, %v5217
        %v5220 = vunpack.c.l.s4 1983009808
        %v5221 = vunpack.c.0.s8 %v5220
        %v5222 = vlaneseq
        %v5223 = vshrl.u32 %v5222, 7
        %v5224 = vsub.s32 %v5221, %v5223
        %v5225 = vrot.slane %v5024, %v5224
        %v5226 = vcombine.high %v5225, %v5225
        %v5228 = vunpack.c.l.s4 1983009808
        %v5229 = vunpack.c.0.s8 %v5228
        %v5230 = vlaneseq
        %v5231 = vshrl.u32 %v5230, 7
        %v5232 = vsub.s32 %v5229, %v5231
        %v5233 = vrot.slane %v5025, %v5232
        %v5234 = vcombine.high %v5233, %v5233
        %v5236 = vunpack.c.l.s4 1983009808
        %v5237 = vunpack.c.0.s8 %v5236
        %v5238 = vlaneseq
        %v5239 = vshrl.u32 %v5238, 7
        %v5240 = vsub.s32 %v5237, %v5239
        %v5241 = vrot.slane %v5026, %v5240
        %v5242 = vcombine.high %v5241, %v5241
        %v5244 = vshrl.u32 %v5057, 16
        %v5246 = vrot.slane %v5244, 6
        %v5247 = vshll.u32 %v5057, 16
        %v5249 = vrot.slane %v5247, 7
        %v5250 = vor.u32 %v5246, %v5249
        %v5251 = vrot.slane %v5250, 2
        %v5253 = vshll.u32 %v5058, 16
        %v5255 = vrot.slane %v5253, 7
        %v5256 = vsel %vm615, %v5251, %v5255
        %v5257 = vshrl.u32 %v5058, 16
        %v5259 = vrot.slane %v5257, 6
        %v5260 = vor.u32 %v5259, %v5255
        %v5261 = vrot.slane %v5260, 2
        %v5263 = vshll.u32 %v5065, 16
        %v5265 = vrot.slane %v5263, 7
        %v5266 = vsel %vm615, %v5261, %v5265
        %v5267 = vshrl.u32 %v5065, 16
        %v5269 = vrot.slane %v5267, 6
        %v5270 = vor.u32 %v5269, %v5265
        %v5271 = vrot.slane %v5270, 2
        %v5273 = vshll.u32 %v5066, 16
        %v5275 = vrot.slane %v5273, 7
        %v5276 = vsel %vm615, %v5271, %v5275
        %v5278 = vshrl.u32 %v5073, 16
        %v5280 = vrot.slane %v5278, 6
        %v5281 = vshll.u32 %v5073, 16
        %v5283 = vrot.slane %v5281, 7
        %v5284 = vor.u32 %v5280, %v5283
        %v5285 = vrot.slane %v5284, 2
        %v5287 = vshll.u32 %v5074, 16
        %v5289 = vrot.slane %v5287, 7
        %v5290 = vsel %vm615, %v5285, %v5289
        %v5291 = vshrl.u32 %v5074, 16
        %v5293 = vrot.slane %v5291, 6
        %v5294 = vor.u32 %v5293, %v5289
        %v5295 = vrot.slane %v5294, 2
        %v5297 = vshll.u32 %v5081, 16
        %v5299 = vrot.slane %v5297, 7
        %v5300 = vsel %vm615, %v5295, %v5299
        %v5301 = vshrl.u32 %v5081, 16
        %v5303 = vrot.slane %v5301, 6
        %v5304 = vor.u32 %v5303, %v5299
        %v5305 = vrot.slane %v5304, 2
        %v5307 = vshll.u32 %v5082, 16
        %v5309 = vrot.slane %v5307, 7
        %v5310 = vsel %vm615, %v5305, %v5309
        %v5312 = vshrl.u32 %v5089, 16
        %v5314 = vrot.slane %v5312, 6
        %v5315 = vshll.u32 %v5089, 16
        %v5317 = vrot.slane %v5315, 7
        %v5318 = vor.u32 %v5314, %v5317
        %v5319 = vrot.slane %v5318, 2
        %v5321 = vshll.u32 %v5090, 16
        %v5323 = vrot.slane %v5321, 7
        %v5324 = vsel %vm615, %v5319, %v5323
        %v5325 = vshrl.u32 %v5090, 16
        %v5327 = vrot.slane %v5325, 6
        %v5328 = vor.u32 %v5327, %v5323
        %v5329 = vrot.slane %v5328, 2
        %v5331 = vshll.u32 %v5097, 16
        %v5333 = vrot.slane %v5331, 7
        %v5334 = vsel %vm615, %v5329, %v5333
        %v5335 = vshrl.u32 %v5097, 16
        %v5337 = vrot.slane %v5335, 6
        %v5338 = vor.u32 %v5337, %v5333
        %v5339 = vrot.slane %v5338, 2
        %v5341 = vshll.u32 %v5098, 16
        %v5343 = vrot.slane %v5341, 7
        %v5344 = vsel %vm615, %v5339, %v5343
        %v5346 = vshrl.u32 %v5105, 16
        %v5348 = vrot.slane %v5346, 6
        %v5349 = vshll.u32 %v5105, 16
        %v5351 = vrot.slane %v5349, 7
        %v5352 = vor.u32 %v5348, %v5351
        %v5353 = vrot.slane %v5352, 2
        %v5355 = vshll.u32 %v5106, 16
        %v5357 = vrot.slane %v5355, 7
        %v5358 = vsel %vm615, %v5353, %v5357
        %v5359 = vshrl.u32 %v5106, 16
        %v5361 = vrot.slane %v5359, 6
        %v5362 = vor.u32 %v5361, %v5357
        %v5363 = vrot.slane %v5362, 2
        %v5365 = vshll.u32 %v5113, 16
        %v5367 = vrot.slane %v5365, 7
        %v5368 = vsel %vm615, %v5363, %v5367
        %v5369 = vshrl.u32 %v5113, 16
        %v5371 = vrot.slane %v5369, 6
        %v5372 = vor.u32 %v5371, %v5367
        %v5373 = vrot.slane %v5372, 2
        %v5375 = vshll.u32 %v5114, 16
        %v5377 = vrot.slane %v5375, 7
        %v5378 = vsel %vm615, %v5373, %v5377
        %v5380 = vshrl.u32 %v5121, 16
        %v5382 = vrot.slane %v5380, 6
        %v5383 = vshll.u32 %v5121, 16
        %v5385 = vrot.slane %v5383, 7
        %v5386 = vor.u32 %v5382, %v5385
        %v5387 = vrot.slane %v5386, 2
        %v5389 = vshll.u32 %v5122, 16
        %v5391 = vrot.slane %v5389, 7
        %v5392 = vsel %vm615, %v5387, %v5391
        %v5393 = vshrl.u32 %v5122, 16
        %v5395 = vrot.slane %v5393, 6
        %v5396 = vor.u32 %v5395, %v5391
        %v5397 = vrot.slane %v5396, 2
        %v5399 = vshll.u32 %v5129, 16
        %v5401 = vrot.slane %v5399, 7
        %v5402 = vsel %vm615, %v5397, %v5401
        %v5403 = vshrl.u32 %v5129, 16
        %v5405 = vrot.slane %v5403, 6
        %v5406 = vor.u32 %v5405, %v5401
        %v5407 = vrot.slane %v5406, 2
        %v5409 = vshll.u32 %v5130, 16
        %v5411 = vrot.slane %v5409, 7
        %v5412 = vsel %vm615, %v5407, %v5411
        %v5414 = vshrl.u32 %v5137, 16
        %v5416 = vrot.slane %v5414, 6
        %v5417 = vshll.u32 %v5137, 16
        %v5419 = vrot.slane %v5417, 7
        %v5420 = vor.u32 %v5416, %v5419
        %v5421 = vrot.slane %v5420, 2
        %v5423 = vshll.u32 %v5138, 16
        %v5425 = vrot.slane %v5423, 7
        %v5426 = vsel %vm615, %v5421, %v5425
        %v5427 = vshrl.u32 %v5138, 16
        %v5429 = vrot.slane %v5427, 6
        %v5430 = vor.u32 %v5429, %v5425
        %v5431 = vrot.slane %v5430, 2
        %v5433 = vshll.u32 %v5145, 16
        %v5435 = vrot.slane %v5433, 7
        %v5436 = vsel %vm615, %v5431, %v5435
        %v5437 = vshrl.u32 %v5145, 16
        %v5439 = vrot.slane %v5437, 6
        %v5440 = vor.u32 %v5439, %v5435
        %v5441 = vrot.slane %v5440, 2
        %v5443 = vshll.u32 %v5146, 16
        %v5445 = vrot.slane %v5443, 7
        %v5446 = vsel %vm615, %v5441, %v5445
        %v5448 = vshrl.u32 %v5153, 16
        %v5450 = vrot.slane %v5448, 6
        %v5451 = vshll.u32 %v5153, 16
        %v5453 = vrot.slane %v5451, 7
        %v5454 = vor.u32 %v5450, %v5453
        %v5455 = vrot.slane %v5454, 2
        %v5457 = vshll.u32 %v5154, 16
        %v5459 = vrot.slane %v5457, 7
        %v5460 = vsel %vm615, %v5455, %v5459
        %v5461 = vshrl.u32 %v5154, 16
        %v5463 = vrot.slane %v5461, 6
        %v5464 = vor.u32 %v5463, %v5459
        %v5465 = vrot.slane %v5464, 2
        %v5467 = vshll.u32 %v5161, 16
        %v5469 = vrot.slane %v5467, 7
        %v5470 = vsel %vm615, %v5465, %v5469
        %v5471 = vshrl.u32 %v5161, 16
        %v5473 = vrot.slane %v5471, 6
        %v5474 = vor.u32 %v5473, %v5469
        %v5475 = vrot.slane %v5474, 2
        %v5477 = vshll.u32 %v5162, 16
        %v5479 = vrot.slane %v5477, 7
        %v5480 = vsel %vm615, %v5475, %v5479
        %v5482 = vshrl.u32 %v5169, 16
        %v5484 = vrot.slane %v5482, 6
        %v5485 = vshll.u32 %v5169, 16
        %v5487 = vrot.slane %v5485, 7
        %v5488 = vor.u32 %v5484, %v5487
        %v5489 = vrot.slane %v5488, 2
        %v5491 = vshll.u32 %v5170, 16
        %v5493 = vrot.slane %v5491, 7
        %v5494 = vsel %vm615, %v5489, %v5493
        %v5495 = vshrl.u32 %v5170, 16
        %v5497 = vrot.slane %v5495, 6
        %v5498 = vor.u32 %v5497, %v5493
        %v5499 = vrot.slane %v5498, 2
        %v5501 = vshll.u32 %v5177, 16
        %v5503 = vrot.slane %v5501, 7
        %v5504 = vsel %vm615, %v5499, %v5503
        %v5505 = vshrl.u32 %v5177, 16
        %v5507 = vrot.slane %v5505, 6
        %v5508 = vor.u32 %v5507, %v5503
        %v5509 = vrot.slane %v5508, 2
        %v5511 = vshll.u32 %v5178, 16
        %v5513 = vrot.slane %v5511, 7
        %v5514 = vsel %vm615, %v5509, %v5513
        %v5516 = vshrl.u32 %v5185, 16
        %v5518 = vrot.slane %v5516, 6
        %v5519 = vshll.u32 %v5185, 16
        %v5521 = vrot.slane %v5519, 7
        %v5522 = vor.u32 %v5518, %v5521
        %v5523 = vrot.slane %v5522, 2
        %v5525 = vshll.u32 %v5186, 16
        %v5527 = vrot.slane %v5525, 7
        %v5528 = vsel %vm615, %v5523, %v5527
        %v5529 = vshrl.u32 %v5186, 16
        %v5531 = vrot.slane %v5529, 6
        %v5532 = vor.u32 %v5531, %v5527
        %v5533 = vrot.slane %v5532, 2
        %v5535 = vshll.u32 %v5193, 16
        %v5537 = vrot.slane %v5535, 7
        %v5538 = vsel %vm615, %v5533, %v5537
        %v5539 = vshrl.u32 %v5193, 16
        %v5541 = vrot.slane %v5539, 6
        %v5542 = vor.u32 %v5541, %v5537
        %v5543 = vrot.slane %v5542, 2
        %v5545 = vshll.u32 %v5194, 16
        %v5547 = vrot.slane %v5545, 7
        %v5548 = vsel %vm615, %v5543, %v5547
        %v5550 = vshrl.u32 %v5201, 16
        %v5552 = vrot.slane %v5550, 6
        %v5553 = vshll.u32 %v5201, 16
        %v5555 = vrot.slane %v5553, 7
        %v5556 = vor.u32 %v5552, %v5555
        %v5557 = vrot.slane %v5556, 2
        %v5559 = vshll.u32 %v5202, 16
        %v5561 = vrot.slane %v5559, 7
        %v5562 = vsel %vm615, %v5557, %v5561
        %v5563 = vshrl.u32 %v5202, 16
        %v5565 = vrot.slane %v5563, 6
        %v5566 = vor.u32 %v5565, %v5561
        %v5567 = vrot.slane %v5566, 2
        %v5569 = vshll.u32 %v5209, 16
        %v5571 = vrot.slane %v5569, 7
        %v5572 = vsel %vm615, %v5567, %v5571
        %v5573 = vshrl.u32 %v5209, 16
        %v5575 = vrot.slane %v5573, 6
        %v5576 = vor.u32 %v5575, %v5571
        %v5577 = vrot.slane %v5576, 2
        %v5579 = vshll.u32 %v5210, 16
        %v5581 = vrot.slane %v5579, 7
        %v5582 = vsel %vm615, %v5577, %v5581
        %v5584 = vshrl.u32 %v5217, 16
        %v5586 = vrot.slane %v5584, 6
        %v5587 = vshll.u32 %v5217, 16
        %v5589 = vrot.slane %v5587, 7
        %v5590 = vor.u32 %v5586, %v5589
        %v5591 = vrot.slane %v5590, 2
        %v5593 = vshll.u32 %v5218, 16
        %v5595 = vrot.slane %v5593, 7
        %v5596 = vsel %vm615, %v5591, %v5595
        %v5597 = vshrl.u32 %v5218, 16
        %v5599 = vrot.slane %v5597, 6
        %v5600 = vor.u32 %v5599, %v5595
        %v5601 = vrot.slane %v5600, 2
        %v5603 = vshll.u32 %v5225, 16
        %v5605 = vrot.slane %v5603, 7
        %v5606 = vsel %vm615, %v5601, %v5605
        %v5607 = vshrl.u32 %v5225, 16
        %v5609 = vrot.slane %v5607, 6
        %v5610 = vor.u32 %v5609, %v5605
        %v5611 = vrot.slane %v5610, 2
        %v5613 = vshll.u32 %v5226, 16
        %v5615 = vrot.slane %v5613, 7
        %v5616 = vsel %vm615, %v5611, %v5615
        %v5618 = vshrl.u32 %v5233, 16
        %v5620 = vrot.slane %v5618, 6
        %v5621 = vshll.u32 %v5233, 16
        %v5623 = vrot.slane %v5621, 7
        %v5624 = vor.u32 %v5620, %v5623
        %v5625 = vrot.slane %v5624, 2
        %v5627 = vshll.u32 %v5234, 16
        %v5629 = vrot.slane %v5627, 7
        %v5630 = vsel %vm615, %v5625, %v5629
        %v5631 = vshrl.u32 %v5234, 16
        %v5633 = vrot.slane %v5631, 6
        %v5634 = vor.u32 %v5633, %v5629
        %v5635 = vrot.slane %v5634, 2
        %v5637 = vshll.u32 %v5241, 16
        %v5639 = vrot.slane %v5637, 7
        %v5640 = vsel %vm615, %v5635, %v5639
        %v5641 = vshrl.u32 %v5241, 16
        %v5643 = vrot.slane %v5641, 6
        %v5644 = vor.u32 %v5643, %v5639
        %v5645 = vrot.slane %v5644, 2
        %v5647 = vshll.u32 %v5242, 16
        %v5649 = vrot.slane %v5647, 7
        %v5650 = vsel %vm615, %v5645, %v5649
        %s5651 = scalar_lea.vmem %s249, 56
        %v5652 = vld [vmem:[%s5651] sm:$0xf]
        %v5653 = vld [vmem:[%s5651 + $0x4] sm:$0xf]
        %v5654 = vcombine.low %v5256, %v5266
        %v5655 = vcombine.low %v5276, %v5290
        %v5657 = vunpack.c.l.s4 1983009808
        %v5658 = vunpack.c.0.s8 %v5657
        %v5659 = vlaneseq
        %v5660 = vshrl.u32 %v5659, 7
        %v5661 = vsub.s32 %v5658, %v5660
        %v5662 = vrot.slane %v5654, %v5661
        %v5664 = vunpack.c.l.s4 1983009808
        %v5665 = vunpack.c.0.s8 %v5664
        %v5666 = vlaneseq
        %v5667 = vshrl.u32 %v5666, 7
        %v5668 = vsub.s32 %v5665, %v5667
        %v5669 = vrot.slane %v5655, %v5668
        %v5670 = vcombine.low %v5662, %v5669
        %v5671 = vcombine.low %v5300, %v5310
        %v5672 = vcombine.low %v5324, %v5334
        %v5674 = vunpack.c.l.s4 1983009808
        %v5675 = vunpack.c.0.s8 %v5674
        %v5676 = vlaneseq
        %v5677 = vshrl.u32 %v5676, 7
        %v5678 = vsub.s32 %v5675, %v5677
        %v5679 = vrot.slane %v5671, %v5678
        %v5681 = vunpack.c.l.s4 1983009808
        %v5682 = vunpack.c.0.s8 %v5681
        %v5683 = vlaneseq
        %v5684 = vshrl.u32 %v5683, 7
        %v5685 = vsub.s32 %v5682, %v5684
        %v5686 = vrot.slane %v5672, %v5685
        %v5687 = vcombine.low %v5679, %v5686
        %v5688 = vcombine.low %v5344, %v5358
        %v5689 = vcombine.low %v5368, %v5378
        %v5691 = vunpack.c.l.s4 1983009808
        %v5692 = vunpack.c.0.s8 %v5691
        %v5693 = vlaneseq
        %v5694 = vshrl.u32 %v5693, 7
        %v5695 = vsub.s32 %v5692, %v5694
        %v5696 = vrot.slane %v5688, %v5695
        %v5698 = vunpack.c.l.s4 1983009808
        %v5699 = vunpack.c.0.s8 %v5698
        %v5700 = vlaneseq
        %v5701 = vshrl.u32 %v5700, 7
        %v5702 = vsub.s32 %v5699, %v5701
        %v5703 = vrot.slane %v5689, %v5702
        %v5704 = vcombine.low %v5696, %v5703
        %v5705 = vcombine.low %v5392, %v5402
        %v5706 = vcombine.low %v5412, %v5426
        %v5708 = vunpack.c.l.s4 1983009808
        %v5709 = vunpack.c.0.s8 %v5708
        %v5710 = vlaneseq
        %v5711 = vshrl.u32 %v5710, 7
        %v5712 = vsub.s32 %v5709, %v5711
        %v5713 = vrot.slane %v5705, %v5712
        %v5715 = vunpack.c.l.s4 1983009808
        %v5716 = vunpack.c.0.s8 %v5715
        %v5717 = vlaneseq
        %v5718 = vshrl.u32 %v5717, 7
        %v5719 = vsub.s32 %v5716, %v5718
        %v5720 = vrot.slane %v5706, %v5719
        %v5721 = vcombine.low %v5713, %v5720
        %v5722 = vcombine.low %v5436, %v5446
        %v5723 = vcombine.low %v5460, %v5470
        %v5725 = vunpack.c.l.s4 1983009808
        %v5726 = vunpack.c.0.s8 %v5725
        %v5727 = vlaneseq
        %v5728 = vshrl.u32 %v5727, 7
        %v5729 = vsub.s32 %v5726, %v5728
        %v5730 = vrot.slane %v5722, %v5729
        %v5732 = vunpack.c.l.s4 1983009808
        %v5733 = vunpack.c.0.s8 %v5732
        %v5734 = vlaneseq
        %v5735 = vshrl.u32 %v5734, 7
        %v5736 = vsub.s32 %v5733, %v5735
        %v5737 = vrot.slane %v5723, %v5736
        %v5738 = vcombine.low %v5730, %v5737
        %v5739 = vcombine.low %v5480, %v5494
        %v5740 = vcombine.low %v5504, %v5514
        %v5742 = vunpack.c.l.s4 1983009808
        %v5743 = vunpack.c.0.s8 %v5742
        %v5744 = vlaneseq
        %v5745 = vshrl.u32 %v5744, 7
        %v5746 = vsub.s32 %v5743, %v5745
        %v5747 = vrot.slane %v5739, %v5746
        %v5749 = vunpack.c.l.s4 1983009808
        %v5750 = vunpack.c.0.s8 %v5749
        %v5751 = vlaneseq
        %v5752 = vshrl.u32 %v5751, 7
        %v5753 = vsub.s32 %v5750, %v5752
        %v5754 = vrot.slane %v5740, %v5753
        %v5755 = vcombine.low %v5747, %v5754
        %v5756 = vcombine.low %v5528, %v5538
        %v5757 = vcombine.low %v5548, %v5562
        %v5759 = vunpack.c.l.s4 1983009808
        %v5760 = vunpack.c.0.s8 %v5759
        %v5761 = vlaneseq
        %v5762 = vshrl.u32 %v5761, 7
        %v5763 = vsub.s32 %v5760, %v5762
        %v5764 = vrot.slane %v5756, %v5763
        %v5766 = vunpack.c.l.s4 1983009808
        %v5767 = vunpack.c.0.s8 %v5766
        %v5768 = vlaneseq
        %v5769 = vshrl.u32 %v5768, 7
        %v5770 = vsub.s32 %v5767, %v5769
        %v5771 = vrot.slane %v5757, %v5770
        %v5772 = vcombine.low %v5764, %v5771
        %v5773 = vcombine.low %v5572, %v5582
        %v5774 = vcombine.low %v5596, %v5606
        %v5776 = vunpack.c.l.s4 1983009808
        %v5777 = vunpack.c.0.s8 %v5776
        %v5778 = vlaneseq
        %v5779 = vshrl.u32 %v5778, 7
        %v5780 = vsub.s32 %v5777, %v5779
        %v5781 = vrot.slane %v5773, %v5780
        %v5783 = vunpack.c.l.s4 1983009808
        %v5784 = vunpack.c.0.s8 %v5783
        %v5785 = vlaneseq
        %v5786 = vshrl.u32 %v5785, 7
        %v5787 = vsub.s32 %v5784, %v5786
        %v5788 = vrot.slane %v5774, %v5787
        %v5789 = vcombine.low %v5781, %v5788
        %v5790 = vcombine.low %v5616, %v5630
        %v5791 = vcombine.low %v5640, %v5650
        %v5793 = vunpack.c.l.s4 1983009808
        %v5794 = vunpack.c.0.s8 %v5793
        %v5795 = vlaneseq
        %v5796 = vshrl.u32 %v5795, 7
        %v5797 = vsub.s32 %v5794, %v5796
        %v5798 = vrot.slane %v5790, %v5797
        %v5800 = vunpack.c.l.s4 1983009808
        %v5801 = vunpack.c.0.s8 %v5800
        %v5802 = vlaneseq
        %v5803 = vshrl.u32 %v5802, 7
        %v5804 = vsub.s32 %v5801, %v5803
        %v5805 = vrot.slane %v5791, %v5804
        %v5806 = vcombine.low %v5798, %v5805
        %v5809 = vunpack.c.l.b16 %v5652
        %v5810 = vunpack.c.l.b16 %v5653
        %v5811 = vpack.c.b16 %v5810, %v5809
        %v5814 = vsel %vm1186, %v5670, 0
        %v5817 = vsel %vm1186, %v5687, 0
        %v5820 = vsel %vm1186, %v5704, 0
        %v5823 = vsel %vm1186, %v5721, 0
        %v5826 = vsel %vm1186, %v5738, 0
        %v5829 = vsel %vm1186, %v5755, 0
        %v5832 = vsel %vm1186, %v5772, 0
        %v5835 = vsel %vm1186, %v5789, 0
        %v5838 = vsel %vm1186, %v5806, 0
        %5840 = vmatprep.subr.bf16.mxu0 0
        %5841 = vmatpush1.bf16.msra.mxu0 %v5811
        %5842 = vmatprep.subr.bf16.mxu0 0
        %5843 = vmatpush1.bf16.msra.mxu0 0
        %5844 = vmatprep.subr.bf16.mxu0 0
        %5845 = vmatpush1.bf16.msra.mxu0 0
        %5846 = vmatprep.subr.bf16.mxu0 0
        %5847 = vmatpush1.bf16.msra.mxu0 0
        %5848 = vmatprep.subr.bf16.mxu0 0
        %5849 = vmatpush1.bf16.msra.mxu0 0
        %5850 = vmatprep.subr.bf16.mxu0 0
        %5851 = vmatpush1.bf16.msra.mxu0 0
        %5852 = vmatprep.subr.bf16.mxu0 0
        %5853 = vmatpush1.bf16.msra.mxu0 0
        %5854 = vmatprep.subr.bf16.mxu0 0
        %5855 = vmatpush1.bf16.msra.mxu0 0
        %5856 = vmatprep.subr.bf16.mxu0 0
        %5857 = vmatpush1.bf16.msra.mxu0 0
        %5858 = vmatprep.subr.bf16.mxu0 0
        %5859 = vmatpush1.bf16.msra.mxu0 0
        %5860 = vmatprep.subr.bf16.mxu0 0
        %5861 = vmatpush1.bf16.msra.mxu0 0
        %5862 = vmatprep.subr.bf16.mxu0 0
        %5863 = vmatpush1.bf16.msra.mxu0 0
        %5864 = vmatprep.subr.bf16.mxu0 0
        %5865 = vmatpush1.bf16.msra.mxu0 0
        %5866 = vmatprep.subr.bf16.mxu0 0
        %5867 = vmatpush1.bf16.msra.mxu0 0
        %5868 = vmatprep.subr.bf16.mxu0 0
        %5869 = vmatpush1.bf16.msra.mxu0 0
        %5870 = vmatprep.subr.bf16.mxu0 0
        %5871 = vmatpush1.bf16.msra.mxu0 0
        %5872 = vmatprep.mubr.bf16.mxu0 0
        %5873 = vmatmul.mubr.bf16.gmra.mrb[0].mxu0 %v5814
        %v5874 = vpop.f32.mrb[0].mxu0
        %v5875 = vadd.f32 0.0, %v5874
        %v5876 = vpop.f32.mrb[0].mxu0
        %v5877 = vpop.f32.mrb[0].mxu0
        %v5878 = vadd.f32 0.0, %v5877
        %v5879 = vpop.f32.mrb[0].mxu0
        %5880 = vmatprep.mubr.bf16.mxu0 0
        %5881 = vmatmul.mubr.bf16.gmra.mrb[0].mxu0 %v5817
        %v5882 = vpop.f32.mrb[0].mxu0
        %v5883 = vadd.f32 0.0, %v5882
        %v5884 = vpop.f32.mrb[0].mxu0
        %v5885 = vpop.f32.mrb[0].mxu0
        %v5886 = vadd.f32 0.0, %v5885
        %v5887 = vpop.f32.mrb[0].mxu0
        %5888 = vmatprep.mubr.bf16.mxu0 0
        %5889 = vmatmul.mubr.bf16.gmra.mrb[0].mxu0 %v5820
        %v5890 = vpop.f32.mrb[0].mxu0
        %v5891 = vadd.f32 0.0, %v5890
        %v5892 = vpop.f32.mrb[0].mxu0
        %v5893 = vpop.f32.mrb[0].mxu0
        %v5894 = vadd.f32 0.0, %v5893
        %v5895 = vpop.f32.mrb[0].mxu0
        %5896 = vmatprep.mubr.bf16.mxu0 0
        %5897 = vmatmul.mubr.bf16.gmra.mrb[0].mxu0 %v5823
        %v5898 = vpop.f32.mrb[0].mxu0
        %v5899 = vadd.f32 0.0, %v5898
        %v5900 = vpop.f32.mrb[0].mxu0
        %v5901 = vpop.f32.mrb[0].mxu0
        %v5902 = vadd.f32 0.0, %v5901
        %v5903 = vpop.f32.mrb[0].mxu0
        %5904 = vmatprep.mubr.bf16.mxu0 0
        %5905 = vmatmul.mubr.bf16.gmra.mrb[0].mxu0 %v5826
        %v5906 = vpop.f32.mrb[0].mxu0
        %v5907 = vadd.f32 0.0, %v5906
        %v5908 = vpop.f32.mrb[0].mxu0
        %v5909 = vpop.f32.mrb[0].mxu0
        %v5910 = vadd.f32 0.0, %v5909
        %v5911 = vpop.f32.mrb[0].mxu0
        %5912 = vmatprep.mubr.bf16.mxu0 0
        %5913 = vmatmul.mubr.bf16.gmra.mrb[0].mxu0 %v5829
        %v5914 = vpop.f32.mrb[0].mxu0
        %v5915 = vadd.f32 0.0, %v5914
        %v5916 = vpop.f32.mrb[0].mxu0
        %v5917 = vpop.f32.mrb[0].mxu0
        %v5918 = vadd.f32 0.0, %v5917
        %v5919 = vpop.f32.mrb[0].mxu0
        %5920 = vmatprep.mubr.bf16.mxu0 0
        %5921 = vmatmul.mubr.bf16.gmra.mrb[0].mxu0 %v5832
        %v5922 = vpop.f32.mrb[0].mxu0
        %v5923 = vadd.f32 0.0, %v5922
        %v5924 = vpop.f32.mrb[0].mxu0
        %v5925 = vpop.f32.mrb[0].mxu0
        %v5926 = vadd.f32 0.0, %v5925
        %v5927 = vpop.f32.mrb[0].mxu0
        %5928 = vmatprep.mubr.bf16.mxu0 0
        %5929 = vmatmul.mubr.bf16.gmra.mrb[0].mxu0 %v5835
        %v5930 = vpop.f32.mrb[0].mxu0
        %v5931 = vadd.f32 0.0, %v5930
        %v5932 = vpop.f32.mrb[0].mxu0
        %v5933 = vpop.f32.mrb[0].mxu0
        %v5934 = vadd.f32 0.0, %v5933
        %v5935 = vpop.f32.mrb[0].mxu0
        %5936 = vmatprep.mubr.bf16.mxu0 0
        %5937 = vmatmul.mubr.bf16.gmra.mrb[0].mxu0 %v5838
        %v5938 = vpop.f32.mrb[0].mxu0
        %v5939 = vadd.f32 0.0, %v5938
        %v5940 = vpop.f32.mrb[0].mxu0
        %v5941 = vpop.f32.mrb[0].mxu0
        %v5942 = vadd.f32 0.0, %v5941
        %v5943 = vpop.f32.mrb[0].mxu0
        %5944 = vdwg.mxu0
        %v5945 = vadd.f32 %v4985, %v5875
        %v5946 = vadd.f32 %v4986, %v5878
        %v5947 = vadd.f32 %v4987, %v5883
        %v5948 = vadd.f32 %v4988, %v5886
        %v5949 = vadd.f32 %v4989, %v5891
        %v5950 = vadd.f32 %v4990, %v5894
        %v5951 = vadd.f32 %v4991, %v5899
        %v5952 = vadd.f32 %v4992, %v5902
        %v5953 = vadd.f32 %v4993, %v5907
        %v5954 = vadd.f32 %v4994, %v5910
        %v5955 = vadd.f32 %v4995, %v5915
        %v5956 = vadd.f32 %v4996, %v5918
        %v5957 = vadd.f32 %v4997, %v5923
        %v5958 = vadd.f32 %v4998, %v5926
        %v5959 = vadd.f32 %v4999, %v5931
        %v5960 = vadd.f32 %v5000, %v5934
        %v5961 = vadd.f32 %v5001, %v5939
        %v5962 = vadd.f32 %v5002, %v5942
        %v5963 = vld [vmem:[%s4462] sm:$0xe]
        %v5964 = vld [vmem:[%s4462 + $0x4] sm:$0x7]
        %v5965 = vld [vmem:[%s4462 + $0x8] sm:$0xe]
        %v5966 = vld [vmem:[%s4462 + $0xc] sm:$0x7]
        %v5967 = vld [vmem:[%s4462 + $0x10] sm:$0xe]
        %v5968 = vld [vmem:[%s4462 + $0x14] sm:$0x7]
        %v5969 = vld [vmem:[%s4462 + $0x18] sm:$0xe]
        %v5970 = vld [vmem:[%s4462 + $0x1c] sm:$0x7]
        %v5971 = vld [vmem:[%s4462 + $0x20] sm:$0xe]
        %v5972 = vld [vmem:[%s4462 + $0x24] sm:$0x7]
        %v5973 = vld [vmem:[%s4462 + $0x28] sm:$0xe]
        %v5974 = vld [vmem:[%s4462 + $0x2c] sm:$0x7]
        %v5975 = vld [vmem:[%s4462 + $0x30] sm:$0xe]
        %v5976 = vld [vmem:[%s4462 + $0x34] sm:$0x7]
        %v5977 = vld [vmem:[%s4462 + $0x38] sm:$0xe]
        %v5978 = vld [vmem:[%s4462 + $0x3c] sm:$0x7]
        %v5979 = vld [vmem:[%s4462 + $0x40] sm:$0xe]
        %v5980 = vld [vmem:[%s4462 + $0x44] sm:$0x7]
        %v5981 = vld [vmem:[%s4462 + $0x48] sm:$0xe]
        %v5982 = vld [vmem:[%s4462 + $0x4c] sm:$0x7]
        %v5983 = vld [vmem:[%s4462 + $0x50] sm:$0xe]
        %v5984 = vld [vmem:[%s4462 + $0x54] sm:$0x7]
        %v5985 = vld [vmem:[%s4462 + $0x58] sm:$0xe]
        %v5986 = vld [vmem:[%s4462 + $0x5c] sm:$0x7]
        %v6012 = vunpack.c.l.s4 1983009808
        %v6013 = vunpack.c.0.s8 %v6012
        %v6014 = vlaneseq
        %v6015 = vshrl.u32 %v6014, 7
        %v6016 = vsub.s32 %v6013, %v6015
        %v6017 = vrot.slane %v5963, %v6016
        %v6018 = vcombine.high %v6017, %v6017
        %v6020 = vunpack.c.l.s4 1983009808
        %v6021 = vunpack.c.0.s8 %v6020
        %v6022 = vlaneseq
        %v6023 = vshrl.u32 %v6022, 7
        %v6024 = vsub.s32 %v6021, %v6023
        %v6025 = vrot.slane %v5964, %v6024
        %v6026 = vcombine.high %v6025, %v6025
        %v6028 = vunpack.c.l.s4 1983009808
        %v6029 = vunpack.c.0.s8 %v6028
        %v6030 = vlaneseq
        %v6031 = vshrl.u32 %v6030, 7
        %v6032 = vsub.s32 %v6029, %v6031
        %v6033 = vrot.slane %v5965, %v6032
        %v6034 = vcombine.high %v6033, %v6033
        %v6036 = vunpack.c.l.s4 1983009808
        %v6037 = vunpack.c.0.s8 %v6036
        %v6038 = vlaneseq
        %v6039 = vshrl.u32 %v6038, 7
        %v6040 = vsub.s32 %v6037, %v6039
        %v6041 = vrot.slane %v5966, %v6040
        %v6042 = vcombine.high %v6041, %v6041
        %v6044 = vunpack.c.l.s4 1983009808
        %v6045 = vunpack.c.0.s8 %v6044
        %v6046 = vlaneseq
        %v6047 = vshrl.u32 %v6046, 7
        %v6048 = vsub.s32 %v6045, %v6047
        %v6049 = vrot.slane %v5967, %v6048
        %v6050 = vcombine.high %v6049, %v6049
        %v6052 = vunpack.c.l.s4 1983009808
        %v6053 = vunpack.c.0.s8 %v6052
        %v6054 = vlaneseq
        %v6055 = vshrl.u32 %v6054, 7
        %v6056 = vsub.s32 %v6053, %v6055
        %v6057 = vrot.slane %v5968, %v6056
        %v6058 = vcombine.high %v6057, %v6057
        %v6060 = vunpack.c.l.s4 1983009808
        %v6061 = vunpack.c.0.s8 %v6060
        %v6062 = vlaneseq
        %v6063 = vshrl.u32 %v6062, 7
        %v6064 = vsub.s32 %v6061, %v6063
        %v6065 = vrot.slane %v5969, %v6064
        %v6066 = vcombine.high %v6065, %v6065
        %v6068 = vunpack.c.l.s4 1983009808
        %v6069 = vunpack.c.0.s8 %v6068
        %v6070 = vlaneseq
        %v6071 = vshrl.u32 %v6070, 7
        %v6072 = vsub.s32 %v6069, %v6071
        %v6073 = vrot.slane %v5970, %v6072
        %v6074 = vcombine.high %v6073, %v6073
        %v6076 = vunpack.c.l.s4 1983009808
        %v6077 = vunpack.c.0.s8 %v6076
        %v6078 = vlaneseq
        %v6079 = vshrl.u32 %v6078, 7
        %v6080 = vsub.s32 %v6077, %v6079
        %v6081 = vrot.slane %v5971, %v6080
        %v6082 = vcombine.high %v6081, %v6081
        %v6084 = vunpack.c.l.s4 1983009808
        %v6085 = vunpack.c.0.s8 %v6084
        %v6086 = vlaneseq
        %v6087 = vshrl.u32 %v6086, 7
        %v6088 = vsub.s32 %v6085, %v6087
        %v6089 = vrot.slane %v5972, %v6088
        %v6090 = vcombine.high %v6089, %v6089
        %v6092 = vunpack.c.l.s4 1983009808
        %v6093 = vunpack.c.0.s8 %v6092
        %v6094 = vlaneseq
        %v6095 = vshrl.u32 %v6094, 7
        %v6096 = vsub.s32 %v6093, %v6095
        %v6097 = vrot.slane %v5973, %v6096
        %v6098 = vcombine.high %v6097, %v6097
        %v6100 = vunpack.c.l.s4 1983009808
        %v6101 = vunpack.c.0.s8 %v6100
        %v6102 = vlaneseq
        %v6103 = vshrl.u32 %v6102, 7
        %v6104 = vsub.s32 %v6101, %v6103
        %v6105 = vrot.slane %v5974, %v6104
        %v6106 = vcombine.high %v6105, %v6105
        %v6108 = vunpack.c.l.s4 1983009808
        %v6109 = vunpack.c.0.s8 %v6108
        %v6110 = vlaneseq
        %v6111 = vshrl.u32 %v6110, 7
        %v6112 = vsub.s32 %v6109, %v6111
        %v6113 = vrot.slane %v5975, %v6112
        %v6114 = vcombine.high %v6113, %v6113
        %v6116 = vunpack.c.l.s4 1983009808
        %v6117 = vunpack.c.0.s8 %v6116
        %v6118 = vlaneseq
        %v6119 = vshrl.u32 %v6118, 7
        %v6120 = vsub.s32 %v6117, %v6119
        %v6121 = vrot.slane %v5976, %v6120
        %v6122 = vcombine.high %v6121, %v6121
        %v6124 = vunpack.c.l.s4 1983009808
        %v6125 = vunpack.c.0.s8 %v6124
        %v6126 = vlaneseq
        %v6127 = vshrl.u32 %v6126, 7
        %v6128 = vsub.s32 %v6125, %v6127
        %v6129 = vrot.slane %v5977, %v6128
        %v6130 = vcombine.high %v6129, %v6129
        %v6132 = vunpack.c.l.s4 1983009808
        %v6133 = vunpack.c.0.s8 %v6132
        %v6134 = vlaneseq
        %v6135 = vshrl.u32 %v6134, 7
        %v6136 = vsub.s32 %v6133, %v6135
        %v6137 = vrot.slane %v5978, %v6136
        %v6138 = vcombine.high %v6137, %v6137
        %v6140 = vunpack.c.l.s4 1983009808
        %v6141 = vunpack.c.0.s8 %v6140
        %v6142 = vlaneseq
        %v6143 = vshrl.u32 %v6142, 7
        %v6144 = vsub.s32 %v6141, %v6143
        %v6145 = vrot.slane %v5979, %v6144
        %v6146 = vcombine.high %v6145, %v6145
        %v6148 = vunpack.c.l.s4 1983009808
        %v6149 = vunpack.c.0.s8 %v6148
        %v6150 = vlaneseq
        %v6151 = vshrl.u32 %v6150, 7
        %v6152 = vsub.s32 %v6149, %v6151
        %v6153 = vrot.slane %v5980, %v6152
        %v6154 = vcombine.high %v6153, %v6153
        %v6156 = vunpack.c.l.s4 1983009808
        %v6157 = vunpack.c.0.s8 %v6156
        %v6158 = vlaneseq
        %v6159 = vshrl.u32 %v6158, 7
        %v6160 = vsub.s32 %v6157, %v6159
        %v6161 = vrot.slane %v5981, %v6160
        %v6162 = vcombine.high %v6161, %v6161
        %v6164 = vunpack.c.l.s4 1983009808
        %v6165 = vunpack.c.0.s8 %v6164
        %v6166 = vlaneseq
        %v6167 = vshrl.u32 %v6166, 7
        %v6168 = vsub.s32 %v6165, %v6167
        %v6169 = vrot.slane %v5982, %v6168
        %v6170 = vcombine.high %v6169, %v6169
        %v6172 = vunpack.c.l.s4 1983009808
        %v6173 = vunpack.c.0.s8 %v6172
        %v6174 = vlaneseq
        %v6175 = vshrl.u32 %v6174, 7
        %v6176 = vsub.s32 %v6173, %v6175
        %v6177 = vrot.slane %v5983, %v6176
        %v6178 = vcombine.high %v6177, %v6177
        %v6180 = vunpack.c.l.s4 1983009808
        %v6181 = vunpack.c.0.s8 %v6180
        %v6182 = vlaneseq
        %v6183 = vshrl.u32 %v6182, 7
        %v6184 = vsub.s32 %v6181, %v6183
        %v6185 = vrot.slane %v5984, %v6184
        %v6186 = vcombine.high %v6185, %v6185
        %v6188 = vunpack.c.l.s4 1983009808
        %v6189 = vunpack.c.0.s8 %v6188
        %v6190 = vlaneseq
        %v6191 = vshrl.u32 %v6190, 7
        %v6192 = vsub.s32 %v6189, %v6191
        %v6193 = vrot.slane %v5985, %v6192
        %v6194 = vcombine.high %v6193, %v6193
        %v6196 = vunpack.c.l.s4 1983009808
        %v6197 = vunpack.c.0.s8 %v6196
        %v6198 = vlaneseq
        %v6199 = vshrl.u32 %v6198, 7
        %v6200 = vsub.s32 %v6197, %v6199
        %v6201 = vrot.slane %v5986, %v6200
        %v6202 = vcombine.high %v6201, %v6201
        %v6203 = vrot.slane %v6017, 7
        %v6204 = vrot.slane %v6203, 2
        %v6205 = vrot.slane %v6018, 7
        %v6206 = vsel %vm1856, %v6204, %v6205
        %v6207 = vrot.slane %v6205, 2
        %v6208 = vrot.slane %v6025, 7
        %v6209 = vsel %vm1856, %v6207, %v6208
        %v6210 = vrot.slane %v6208, 2
        %v6211 = vrot.slane %v6026, 7
        %v6212 = vsel %vm1856, %v6210, %v6211
        %v6213 = vrot.slane %v6033, 7
        %v6214 = vrot.slane %v6213, 2
        %v6215 = vrot.slane %v6034, 7
        %v6216 = vsel %vm1856, %v6214, %v6215
        %v6217 = vrot.slane %v6215, 2
        %v6218 = vrot.slane %v6041, 7
        %v6219 = vsel %vm1856, %v6217, %v6218
        %v6220 = vrot.slane %v6218, 2
        %v6221 = vrot.slane %v6042, 7
        %v6222 = vsel %vm1856, %v6220, %v6221
        %v6223 = vrot.slane %v6049, 7
        %v6224 = vrot.slane %v6223, 2
        %v6225 = vrot.slane %v6050, 7
        %v6226 = vsel %vm1856, %v6224, %v6225
        %v6227 = vrot.slane %v6225, 2
        %v6228 = vrot.slane %v6057, 7
        %v6229 = vsel %vm1856, %v6227, %v6228
        %v6230 = vrot.slane %v6228, 2
        %v6231 = vrot.slane %v6058, 7
        %v6232 = vsel %vm1856, %v6230, %v6231
        %v6233 = vrot.slane %v6065, 7
        %v6234 = vrot.slane %v6233, 2
        %v6235 = vrot.slane %v6066, 7
        %v6236 = vsel %vm1856, %v6234, %v6235
        %v6237 = vrot.slane %v6235, 2
        %v6238 = vrot.slane %v6073, 7
        %v6239 = vsel %vm1856, %v6237, %v6238
        %v6240 = vrot.slane %v6238, 2
        %v6241 = vrot.slane %v6074, 7
        %v6242 = vsel %vm1856, %v6240, %v6241
        %v6243 = vrot.slane %v6081, 7
        %v6244 = vrot.slane %v6243, 2
        %v6245 = vrot.slane %v6082, 7
        %v6246 = vsel %vm1856, %v6244, %v6245
        %v6247 = vrot.slane %v6245, 2
        %v6248 = vrot.slane %v6089, 7
        %v6249 = vsel %vm1856, %v6247, %v6248
        %v6250 = vrot.slane %v6248, 2
        %v6251 = vrot.slane %v6090, 7
        %v6252 = vsel %vm1856, %v6250, %v6251
        %v6253 = vrot.slane %v6097, 7
        %v6254 = vrot.slane %v6253, 2
        %v6255 = vrot.slane %v6098, 7
        %v6256 = vsel %vm1856, %v6254, %v6255
        %v6257 = vrot.slane %v6255, 2
        %v6258 = vrot.slane %v6105, 7
        %v6259 = vsel %vm1856, %v6257, %v6258
        %v6260 = vrot.slane %v6258, 2
        %v6261 = vrot.slane %v6106, 7
        %v6262 = vsel %vm1856, %v6260, %v6261
        %v6263 = vrot.slane %v6113, 7
        %v6264 = vrot.slane %v6263, 2
        %v6265 = vrot.slane %v6114, 7
        %v6266 = vsel %vm1856, %v6264, %v6265
        %v6267 = vrot.slane %v6265, 2
        %v6268 = vrot.slane %v6121, 7
        %v6269 = vsel %vm1856, %v6267, %v6268
        %v6270 = vrot.slane %v6268, 2
        %v6271 = vrot.slane %v6122, 7
        %v6272 = vsel %vm1856, %v6270, %v6271
        %v6273 = vrot.slane %v6129, 7
        %v6274 = vrot.slane %v6273, 2
        %v6275 = vrot.slane %v6130, 7
        %v6276 = vsel %vm1856, %v6274, %v6275
        %v6277 = vrot.slane %v6275, 2
        %v6278 = vrot.slane %v6137, 7
        %v6279 = vsel %vm1856, %v6277, %v6278
        %v6280 = vrot.slane %v6278, 2
        %v6281 = vrot.slane %v6138, 7
        %v6282 = vsel %vm1856, %v6280, %v6281
        %v6283 = vrot.slane %v6145, 7
        %v6284 = vrot.slane %v6283, 2
        %v6285 = vrot.slane %v6146, 7
        %v6286 = vsel %vm1856, %v6284, %v6285
        %v6287 = vrot.slane %v6285, 2
        %v6288 = vrot.slane %v6153, 7
        %v6289 = vsel %vm1856, %v6287, %v6288
        %v6290 = vrot.slane %v6288, 2
        %v6291 = vrot.slane %v6154, 7
        %v6292 = vsel %vm1856, %v6290, %v6291
        %v6293 = vrot.slane %v6161, 7
        %v6294 = vrot.slane %v6293, 2
        %v6295 = vrot.slane %v6162, 7
        %v6296 = vsel %vm1856, %v6294, %v6295
        %v6297 = vrot.slane %v6295, 2
        %v6298 = vrot.slane %v6169, 7
        %v6299 = vsel %vm1856, %v6297, %v6298
        %v6300 = vrot.slane %v6298, 2
        %v6301 = vrot.slane %v6170, 7
        %v6302 = vsel %vm1856, %v6300, %v6301
        %v6303 = vrot.slane %v6177, 7
        %v6304 = vrot.slane %v6303, 2
        %v6305 = vrot.slane %v6178, 7
        %v6306 = vsel %vm1856, %v6304, %v6305
        %v6307 = vrot.slane %v6305, 2
        %v6308 = vrot.slane %v6185, 7
        %v6309 = vsel %vm1856, %v6307, %v6308
        %v6310 = vrot.slane %v6308, 2
        %v6311 = vrot.slane %v6186, 7
        %v6312 = vsel %vm1856, %v6310, %v6311
        %v6313 = vrot.slane %v6193, 7
        %v6314 = vrot.slane %v6313, 2
        %v6315 = vrot.slane %v6194, 7
        %v6316 = vsel %vm1856, %v6314, %v6315
        %v6317 = vrot.slane %v6315, 2
        %v6318 = vrot.slane %v6201, 7
        %v6319 = vsel %vm1856, %v6317, %v6318
        %v6320 = vrot.slane %v6318, 2
        %v6321 = vrot.slane %v6202, 7
        %v6322 = vsel %vm1856, %v6320, %v6321
        %s6323 = scalar_lea.vmem %s249, 64
        %v6324 = vld [vmem:[%s6323] sm:$0xf]
        %v6325 = vld [vmem:[%s6323 + $0x4] sm:$0xf]
        %v6326 = vcombine.low %v6206, %v6209
        %v6327 = vcombine.low %v6212, %v6216
        %v6329 = vunpack.c.l.s4 1983009808
        %v6330 = vunpack.c.0.s8 %v6329
        %v6331 = vlaneseq
        %v6332 = vshrl.u32 %v6331, 7
        %v6333 = vsub.s32 %v6330, %v6332
        %v6334 = vrot.slane %v6326, %v6333
        %v6336 = vunpack.c.l.s4 1983009808
        %v6337 = vunpack.c.0.s8 %v6336
        %v6338 = vlaneseq
        %v6339 = vshrl.u32 %v6338, 7
        %v6340 = vsub.s32 %v6337, %v6339
        %v6341 = vrot.slane %v6327, %v6340
        %v6342 = vcombine.low %v6334, %v6341
        %v6343 = vcombine.low %v6219, %v6222
        %v6344 = vcombine.low %v6226, %v6229
        %v6346 = vunpack.c.l.s4 1983009808
        %v6347 = vunpack.c.0.s8 %v6346
        %v6348 = vlaneseq
        %v6349 = vshrl.u32 %v6348, 7
        %v6350 = vsub.s32 %v6347, %v6349
        %v6351 = vrot.slane %v6343, %v6350
        %v6353 = vunpack.c.l.s4 1983009808
        %v6354 = vunpack.c.0.s8 %v6353
        %v6355 = vlaneseq
        %v6356 = vshrl.u32 %v6355, 7
        %v6357 = vsub.s32 %v6354, %v6356
        %v6358 = vrot.slane %v6344, %v6357
        %v6359 = vcombine.low %v6351, %v6358
        %v6360 = vcombine.low %v6232, %v6236
        %v6361 = vcombine.low %v6239, %v6242
        %v6363 = vunpack.c.l.s4 1983009808
        %v6364 = vunpack.c.0.s8 %v6363
        %v6365 = vlaneseq
        %v6366 = vshrl.u32 %v6365, 7
        %v6367 = vsub.s32 %v6364, %v6366
        %v6368 = vrot.slane %v6360, %v6367
        %v6370 = vunpack.c.l.s4 1983009808
        %v6371 = vunpack.c.0.s8 %v6370
        %v6372 = vlaneseq
        %v6373 = vshrl.u32 %v6372, 7
        %v6374 = vsub.s32 %v6371, %v6373
        %v6375 = vrot.slane %v6361, %v6374
        %v6376 = vcombine.low %v6368, %v6375
        %v6377 = vcombine.low %v6246, %v6249
        %v6378 = vcombine.low %v6252, %v6256
        %v6380 = vunpack.c.l.s4 1983009808
        %v6381 = vunpack.c.0.s8 %v6380
        %v6382 = vlaneseq
        %v6383 = vshrl.u32 %v6382, 7
        %v6384 = vsub.s32 %v6381, %v6383
        %v6385 = vrot.slane %v6377, %v6384
        %v6387 = vunpack.c.l.s4 1983009808
        %v6388 = vunpack.c.0.s8 %v6387
        %v6389 = vlaneseq
        %v6390 = vshrl.u32 %v6389, 7
        %v6391 = vsub.s32 %v6388, %v6390
        %v6392 = vrot.slane %v6378, %v6391
        %v6393 = vcombine.low %v6385, %v6392
        %v6394 = vcombine.low %v6259, %v6262
        %v6395 = vcombine.low %v6266, %v6269
        %v6397 = vunpack.c.l.s4 1983009808
        %v6398 = vunpack.c.0.s8 %v6397
        %v6399 = vlaneseq
        %v6400 = vshrl.u32 %v6399, 7
        %v6401 = vsub.s32 %v6398, %v6400
        %v6402 = vrot.slane %v6394, %v6401
        %v6404 = vunpack.c.l.s4 1983009808
        %v6405 = vunpack.c.0.s8 %v6404
        %v6406 = vlaneseq
        %v6407 = vshrl.u32 %v6406, 7
        %v6408 = vsub.s32 %v6405, %v6407
        %v6409 = vrot.slane %v6395, %v6408
        %v6410 = vcombine.low %v6402, %v6409
        %v6411 = vcombine.low %v6272, %v6276
        %v6412 = vcombine.low %v6279, %v6282
        %v6414 = vunpack.c.l.s4 1983009808
        %v6415 = vunpack.c.0.s8 %v6414
        %v6416 = vlaneseq
        %v6417 = vshrl.u32 %v6416, 7
        %v6418 = vsub.s32 %v6415, %v6417
        %v6419 = vrot.slane %v6411, %v6418
        %v6421 = vunpack.c.l.s4 1983009808
        %v6422 = vunpack.c.0.s8 %v6421
        %v6423 = vlaneseq
        %v6424 = vshrl.u32 %v6423, 7
        %v6425 = vsub.s32 %v6422, %v6424
        %v6426 = vrot.slane %v6412, %v6425
        %v6427 = vcombine.low %v6419, %v6426
        %v6428 = vcombine.low %v6286, %v6289
        %v6429 = vcombine.low %v6292, %v6296
        %v6431 = vunpack.c.l.s4 1983009808
        %v6432 = vunpack.c.0.s8 %v6431
        %v6433 = vlaneseq
        %v6434 = vshrl.u32 %v6433, 7
        %v6435 = vsub.s32 %v6432, %v6434
        %v6436 = vrot.slane %v6428, %v6435
        %v6438 = vunpack.c.l.s4 1983009808
        %v6439 = vunpack.c.0.s8 %v6438
        %v6440 = vlaneseq
        %v6441 = vshrl.u32 %v6440, 7
        %v6442 = vsub.s32 %v6439, %v6441
        %v6443 = vrot.slane %v6429, %v6442
        %v6444 = vcombine.low %v6436, %v6443
        %v6445 = vcombine.low %v6299, %v6302
        %v6446 = vcombine.low %v6306, %v6309
        %v6448 = vunpack.c.l.s4 1983009808
        %v6449 = vunpack.c.0.s8 %v6448
        %v6450 = vlaneseq
        %v6451 = vshrl.u32 %v6450, 7
        %v6452 = vsub.s32 %v6449, %v6451
        %v6453 = vrot.slane %v6445, %v6452
        %v6455 = vunpack.c.l.s4 1983009808
        %v6456 = vunpack.c.0.s8 %v6455
        %v6457 = vlaneseq
        %v6458 = vshrl.u32 %v6457, 7
        %v6459 = vsub.s32 %v6456, %v6458
        %v6460 = vrot.slane %v6446, %v6459
        %v6461 = vcombine.low %v6453, %v6460
        %v6462 = vcombine.low %v6312, %v6316
        %v6463 = vcombine.low %v6319, %v6322
        %v6465 = vunpack.c.l.s4 1983009808
        %v6466 = vunpack.c.0.s8 %v6465
        %v6467 = vlaneseq
        %v6468 = vshrl.u32 %v6467, 7
        %v6469 = vsub.s32 %v6466, %v6468
        %v6470 = vrot.slane %v6462, %v6469
        %v6472 = vunpack.c.l.s4 1983009808
        %v6473 = vunpack.c.0.s8 %v6472
        %v6474 = vlaneseq
        %v6475 = vshrl.u32 %v6474, 7
        %v6476 = vsub.s32 %v6473, %v6475
        %v6477 = vrot.slane %v6463, %v6476
        %v6478 = vcombine.low %v6470, %v6477
        %v6481 = vunpack.c.l.b16 %v6324
        %v6482 = vunpack.c.l.b16 %v6325
        %v6483 = vpack.c.b16 %v6482, %v6481
        %v6486 = vsel %vm1186, %v6342, 0
        %v6489 = vsel %vm1186, %v6359, 0
        %v6492 = vsel %vm1186, %v6376, 0
        %v6495 = vsel %vm1186, %v6393, 0
        %v6498 = vsel %vm1186, %v6410, 0
        %v6501 = vsel %vm1186, %v6427, 0
        %v6504 = vsel %vm1186, %v6444, 0
        %v6507 = vsel %vm1186, %v6461, 0
        %v6510 = vsel %vm1186, %v6478, 0
        %6512 = vmatprep.subr.bf16.mxu0 0
        %6513 = vmatpush1.bf16.msra.mxu0 %v6483
        %6514 = vmatprep.subr.bf16.mxu0 0
        %6515 = vmatpush1.bf16.msra.mxu0 0
        %6516 = vmatprep.subr.bf16.mxu0 0
        %6517 = vmatpush1.bf16.msra.mxu0 0
        %6518 = vmatprep.subr.bf16.mxu0 0
        %6519 = vmatpush1.bf16.msra.mxu0 0
        %6520 = vmatprep.subr.bf16.mxu0 0
        %6521 = vmatpush1.bf16.msra.mxu0 0
        %6522 = vmatprep.subr.bf16.mxu0 0
        %6523 = vmatpush1.bf16.msra.mxu0 0
        %6524 = vmatprep.subr.bf16.mxu0 0
        %6525 = vmatpush1.bf16.msra.mxu0 0
        %6526 = vmatprep.subr.bf16.mxu0 0
        %6527 = vmatpush1.bf16.msra.mxu0 0
        %6528 = vmatprep.subr.bf16.mxu0 0
        %6529 = vmatpush1.bf16.msra.mxu0 0
        %6530 = vmatprep.subr.bf16.mxu0 0
        %6531 = vmatpush1.bf16.msra.mxu0 0
        %6532 = vmatprep.subr.bf16.mxu0 0
        %6533 = vmatpush1.bf16.msra.mxu0 0
        %6534 = vmatprep.subr.bf16.mxu0 0
        %6535 = vmatpush1.bf16.msra.mxu0 0
        %6536 = vmatprep.subr.bf16.mxu0 0
        %6537 = vmatpush1.bf16.msra.mxu0 0
        %6538 = vmatprep.subr.bf16.mxu0 0
        %6539 = vmatpush1.bf16.msra.mxu0 0
        %6540 = vmatprep.subr.bf16.mxu0 0
        %6541 = vmatpush1.bf16.msra.mxu0 0
        %6542 = vmatprep.subr.bf16.mxu0 0
        %6543 = vmatpush1.bf16.msra.mxu0 0
        %6544 = vmatprep.mubr.bf16.mxu0 0
        %6545 = vmatmul.mubr.bf16.gmra.mrb[0].mxu0 %v6486
        %v6546 = vpop.f32.mrb[0].mxu0
        %v6547 = vadd.f32 0.0, %v6546
        %v6548 = vpop.f32.mrb[0].mxu0
        %v6549 = vpop.f32.mrb[0].mxu0
        %v6550 = vadd.f32 0.0, %v6549
        %v6551 = vpop.f32.mrb[0].mxu0
        %6552 = vmatprep.mubr.bf16.mxu0 0
        %6553 = vmatmul.mubr.bf16.gmra.mrb[0].mxu0 %v6489
        %v6554 = vpop.f32.mrb[0].mxu0
        %v6555 = vadd.f32 0.0, %v6554
        %v6556 = vpop.f32.mrb[0].mxu0
        %v6557 = vpop.f32.mrb[0].mxu0
        %v6558 = vadd.f32 0.0, %v6557
        %v6559 = vpop.f32.mrb[0].mxu0
        %6560 = vmatprep.mubr.bf16.mxu0 0
        %6561 = vmatmul.mubr.bf16.gmra.mrb[0].mxu0 %v6492
        %v6562 = vpop.f32.mrb[0].mxu0
        %v6563 = vadd.f32 0.0, %v6562
        %v6564 = vpop.f32.mrb[0].mxu0
        %v6565 = vpop.f32.mrb[0].mxu0
        %v6566 = vadd.f32 0.0, %v6565
        %v6567 = vpop.f32.mrb[0].mxu0
        %6568 = vmatprep.mubr.bf16.mxu0 0
        %6569 = vmatmul.mubr.bf16.gmra.mrb[0].mxu0 %v6495
        %v6570 = vpop.f32.mrb[0].mxu0
        %v6571 = vadd.f32 0.0, %v6570
        %v6572 = vpop.f32.mrb[0].mxu0
        %v6573 = vpop.f32.mrb[0].mxu0
        %v6574 = vadd.f32 0.0, %v6573
        %v6575 = vpop.f32.mrb[0].mxu0
        %6576 = vmatprep.mubr.bf16.mxu0 0
        %6577 = vmatmul.mubr.bf16.gmra.mrb[0].mxu0 %v6498
        %v6578 = vpop.f32.mrb[0].mxu0
        %v6579 = vadd.f32 0.0, %v6578
        %v6580 = vpop.f32.mrb[0].mxu0
        %v6581 = vpop.f32.mrb[0].mxu0
        %v6582 = vadd.f32 0.0, %v6581
        %v6583 = vpop.f32.mrb[0].mxu0
        %6584 = vmatprep.mubr.bf16.mxu0 0
        %6585 = vmatmul.mubr.bf16.gmra.mrb[0].mxu0 %v6501
        %v6586 = vpop.f32.mrb[0].mxu0
        %v6587 = vadd.f32 0.0, %v6586
        %v6588 = vpop.f32.mrb[0].mxu0
        %v6589 = vpop.f32.mrb[0].mxu0
        %v6590 = vadd.f32 0.0, %v6589
        %v6591 = vpop.f32.mrb[0].mxu0
        %6592 = vmatprep.mubr.bf16.mxu0 0
        %6593 = vmatmul.mubr.bf16.gmra.mrb[0].mxu0 %v6504
        %v6594 = vpop.f32.mrb[0].mxu0
        %v6595 = vadd.f32 0.0, %v6594
        %v6596 = vpop.f32.mrb[0].mxu0
        %v6597 = vpop.f32.mrb[0].mxu0
        %v6598 = vadd.f32 0.0, %v6597
        %v6599 = vpop.f32.mrb[0].mxu0
        %6600 = vmatprep.mubr.bf16.mxu0 0
        %6601 = vmatmul.mubr.bf16.gmra.mrb[0].mxu0 %v6507
        %v6602 = vpop.f32.mrb[0].mxu0
        %v6603 = vadd.f32 0.0, %v6602
        %v6604 = vpop.f32.mrb[0].mxu0
        %v6605 = vpop.f32.mrb[0].mxu0
        %v6606 = vadd.f32 0.0, %v6605
        %v6607 = vpop.f32.mrb[0].mxu0
        %6608 = vmatprep.mubr.bf16.mxu0 0
        %6609 = vmatmul.mubr.bf16.gmra.mrb[0].mxu0 %v6510
        %v6610 = vpop.f32.mrb[0].mxu0
        %v6611 = vadd.f32 0.0, %v6610
        %v6612 = vpop.f32.mrb[0].mxu0
        %v6613 = vpop.f32.mrb[0].mxu0
        %v6614 = vadd.f32 0.0, %v6613
        %v6615 = vpop.f32.mrb[0].mxu0
        %6616 = vdwg.mxu0
        %v6617 = vadd.f32 %v5945, %v6547
        %v6618 = vadd.f32 %v5946, %v6550
        %v6619 = vadd.f32 %v5947, %v6555
        %v6620 = vadd.f32 %v5948, %v6558
        %v6621 = vadd.f32 %v5949, %v6563
        %v6622 = vadd.f32 %v5950, %v6566
        %v6623 = vadd.f32 %v5951, %v6571
        %v6624 = vadd.f32 %v5952, %v6574
        %v6625 = vadd.f32 %v5953, %v6579
        %v6626 = vadd.f32 %v5954, %v6582
        %v6627 = vadd.f32 %v5955, %v6587
        %v6628 = vadd.f32 %v5956, %v6590
        %v6629 = vadd.f32 %v5957, %v6595
        %v6630 = vadd.f32 %v5958, %v6598
        %v6631 = vadd.f32 %v5959, %v6603
        %v6632 = vadd.f32 %v5960, %v6606
        %v6633 = vadd.f32 %v5961, %v6611
        %v6634 = vadd.f32 %v5962, %v6614
        %v6635 = vpack.c.bf16 %v6618, %v6617
        %v6636 = vpack.c.bf16 %v6620, %v6619
        %v6637 = vpack.c.bf16 %v6622, %v6621
        %v6638 = vpack.c.bf16 %v6624, %v6623
        %v6639 = vpack.c.bf16 %v6626, %v6625
        %v6640 = vpack.c.bf16 %v6628, %v6627
        %v6641 = vpack.c.bf16 %v6630, %v6629
        %v6642 = vpack.c.bf16 %v6632, %v6631
        %v6643 = vpack.c.bf16 %v6634, %v6633
        %v6653 = vunpack.c.l.b16 %v6635
        %v6654 = vunpack.c.h.b16 %v6635
        %v6655 = vunpack.c.l.b16 %v6636
        %v6656 = vunpack.c.h.b16 %v6636
        %v6657 = vunpack.c.l.b16 %v6637
        %v6658 = vunpack.c.h.b16 %v6637
        %v6659 = vunpack.c.l.b16 %v6638
        %v6660 = vunpack.c.h.b16 %v6638
        %v6661 = vunpack.c.l.b16 %v6639
        %v6662 = vunpack.c.h.b16 %v6639
        %v6663 = vunpack.c.l.b16 %v6640
        %v6664 = vunpack.c.h.b16 %v6640
        %v6665 = vunpack.c.l.b16 %v6641
        %v6666 = vunpack.c.h.b16 %v6641
        %v6667 = vunpack.c.l.b16 %v6642
        %v6668 = vunpack.c.h.b16 %v6642
        %v6669 = vunpack.c.l.b16 %v6643
        %v6670 = vunpack.c.h.b16 %v6643
        %v6671 = vpack.c.b16 %v6653, %v6653
        %v6672 = vpack.c.b16 %v6654, %v6654
        %v6673 = vpack.c.b16 %v6655, %v6655
        %v6674 = vpack.c.b16 %v6656, %v6656
        %v6675 = vpack.c.b16 %v6657, %v6657
        %v6676 = vpack.c.b16 %v6658, %v6658
        %v6677 = vpack.c.b16 %v6659, %v6659
        %v6678 = vpack.c.b16 %v6660, %v6660
        %v6679 = vpack.c.b16 %v6661, %v6661
        %v6680 = vpack.c.b16 %v6662, %v6662
        %v6681 = vpack.c.b16 %v6663, %v6663
        %v6682 = vpack.c.b16 %v6664, %v6664
        %v6683 = vpack.c.b16 %v6665, %v6665
        %v6684 = vpack.c.b16 %v6666, %v6666
        %v6685 = vpack.c.b16 %v6667, %v6667
        %v6686 = vpack.c.b16 %v6668, %v6668
        %v6687 = vpack.c.b16 %v6669, %v6669
        %v6688 = vpack.c.b16 %v6670, %v6670
        %vm6707 = vcmask 257024
        %6708 = vst.msk [vmem:[%s257] sm:$0xf] %vm6707, %v6671
        %6709 = vst.msk [vmem:[%s257 + $0x4] sm:$0xf] %vm6707, %v6672
        %6710 = vst.msk [vmem:[%s257 + $0x8] sm:$0xf] %vm6707, %v6673
        %6711 = vst.msk [vmem:[%s257 + $0xc] sm:$0xf] %vm6707, %v6674
        %6712 = vst.msk [vmem:[%s257 + $0x10] sm:$0xf] %vm6707, %v6675
        %6713 = vst.msk [vmem:[%s257 + $0x14] sm:$0xf] %vm6707, %v6676
        %6714 = vst.msk [vmem:[%s257 + $0x18] sm:$0xf] %vm6707, %v6677
        %6715 = vst.msk [vmem:[%s257 + $0x1c] sm:$0xf] %vm6707, %v6678
        %6716 = vst.msk [vmem:[%s257 + $0x20] sm:$0xf] %vm6707, %v6679
        %6717 = vst.msk [vmem:[%s257 + $0x24] sm:$0xf] %vm6707, %v6680
        %6718 = vst.msk [vmem:[%s257 + $0x28] sm:$0xf] %vm6707, %v6681
        %6719 = vst.msk [vmem:[%s257 + $0x2c] sm:$0xf] %vm6707, %v6682
        %6720 = vst.msk [vmem:[%s257 + $0x30] sm:$0xf] %vm6707, %v6683
        %6721 = vst.msk [vmem:[%s257 + $0x34] sm:$0xf] %vm6707, %v6684
        %6722 = vst.msk [vmem:[%s257 + $0x38] sm:$0xf] %vm6707, %v6685
        %6723 = vst.msk [vmem:[%s257 + $0x3c] sm:$0xf] %vm6707, %v6686
        %6724 = vst.msk [vmem:[%s257 + $0x40] sm:$0xf] %vm6707, %v6687
        %6725 = vst.msk [vmem:[%s257 + $0x44] sm:$0xf] %vm6707, %v6688
        %vm6726 = vcmask 261120
        %v6727 = vsel %vm6726, %v6617, 0.0
        %v6728 = vsel %vm6726, %v6618, 0.0
        %v6729 = vadd.f32 %v6727, %v6728
        %v6730 = vsel %vm6726, %v6619, 0.0
        %v6731 = vadd.f32 %v6729, %v6730
        %v6732 = vsel %vm6726, %v6620, 0.0
        %v6733 = vadd.f32 %v6731, %v6732
        %v6734 = vsel %vm6726, %v6621, 0.0
        %v6735 = vadd.f32 %v6733, %v6734
        %v6736 = vsel %vm6726, %v6622, 0.0
        %v6737 = vadd.f32 %v6735, %v6736
        %v6738 = vsel %vm6726, %v6623, 0.0
        %v6739 = vadd.f32 %v6737, %v6738
        %v6740 = vsel %vm6726, %v6624, 0.0
        %v6741 = vadd.f32 %v6739, %v6740
        %v6742 = vsel %vm6726, %v6625, 0.0
        %v6743 = vadd.f32 %v6741, %v6742
        %v6744 = vsel %vm6726, %v6626, 0.0
        %v6745 = vadd.f32 %v6743, %v6744
        %v6746 = vsel %vm6726, %v6627, 0.0
        %v6747 = vadd.f32 %v6745, %v6746
        %v6748 = vsel %vm6726, %v6628, 0.0
        %v6749 = vadd.f32 %v6747, %v6748
        %v6750 = vsel %vm6726, %v6629, 0.0
        %v6751 = vadd.f32 %v6749, %v6750
        %v6752 = vsel %vm6726, %v6630, 0.0
        %v6753 = vadd.f32 %v6751, %v6752
        %v6754 = vsel %vm6726, %v6631, 0.0
        %v6755 = vadd.f32 %v6753, %v6754
        %v6756 = vsel %vm6726, %v6632, 0.0
        %v6757 = vadd.f32 %v6755, %v6756
        %v6758 = vsel %vm6726, %v6633, 0.0
        %v6759 = vadd.f32 %v6757, %v6758
        %v6760 = vsel %vm6726, %v6634, 0.0
        %v6761 = vadd.f32 %v6759, %v6760
        %v6762 = vrot.slane %v6761, 4
        %v6763 = vadd.f32 %v6761, %v6762
        %v6764 = vrot.slane %v6763, 2
        %v6765 = vadd.f32 %v6763, %v6764
        %v6766 = vrot.slane %v6765, 1
        %v6767 = vadd.f32 %v6765, %v6766
        %vm6768 = vcmask 253952
        %6769 = vst.msk [vmem:[%s234] sm:$0x1] %vm6768, %v6767
        %v6770 = vmul.f32 %v6617, %v6617
        %v6771 = vmul.f32 %v6618, %v6618
        %v6772 = vmul.f32 %v6619, %v6619
        %v6773 = vmul.f32 %v6620, %v6620
        %v6774 = vmul.f32 %v6621, %v6621
        %v6775 = vmul.f32 %v6622, %v6622
        %v6776 = vmul.f32 %v6623, %v6623
        %v6777 = vmul.f32 %v6624, %v6624
        %v6778 = vmul.f32 %v6625, %v6625
        %v6779 = vmul.f32 %v6626, %v6626
        %v6780 = vmul.f32 %v6627, %v6627
        %v6781 = vmul.f32 %v6628, %v6628
        %v6782 = vmul.f32 %v6629, %v6629
        %v6783 = vmul.f32 %v6630, %v6630
        %v6784 = vmul.f32 %v6631, %v6631
        %v6785 = vmul.f32 %v6632, %v6632
        %v6786 = vmul.f32 %v6633, %v6633
        %v6787 = vmul.f32 %v6634, %v6634
        %v6788 = vsel %vm6726, %v6770, 0.0
        %v6789 = vsel %vm6726, %v6771, 0.0
        %v6790 = vadd.f32 %v6788, %v6789
        %v6791 = vsel %vm6726, %v6772, 0.0
        %v6792 = vadd.f32 %v6790, %v6791
        %v6793 = vsel %vm6726, %v6773, 0.0
        %v6794 = vadd.f32 %v6792, %v6793
        %v6795 = vsel %vm6726, %v6774, 0.0
        %v6796 = vadd.f32 %v6794, %v6795
        %v6797 = vsel %vm6726, %v6775, 0.0
        %v6798 = vadd.f32 %v6796, %v6797
        %v6799 = vsel %vm6726, %v6776, 0.0
        %v6800 = vadd.f32 %v6798, %v6799
        %v6801 = vsel %vm6726, %v6777, 0.0
        %v6802 = vadd.f32 %v6800, %v6801
        %v6803 = vsel %vm6726, %v6778, 0.0
        %v6804 = vadd.f32 %v6802, %v6803
        %v6805 = vsel %vm6726, %v6779, 0.0
        %v6806 = vadd.f32 %v6804, %v6805
        %v6807 = vsel %vm6726, %v6780, 0.0
        %v6808 = vadd.f32 %v6806, %v6807
        %v6809 = vsel %vm6726, %v6781, 0.0
        %v6810 = vadd.f32 %v6808, %v6809
        %v6811 = vsel %vm6726, %v6782, 0.0
        %v6812 = vadd.f32 %v6810, %v6811
        %v6813 = vsel %vm6726, %v6783, 0.0
        %v6814 = vadd.f32 %v6812, %v6813
        %v6815 = vsel %vm6726, %v6784, 0.0
        %v6816 = vadd.f32 %v6814, %v6815
        %v6817 = vsel %vm6726, %v6785, 0.0
        %v6818 = vadd.f32 %v6816, %v6817
        %v6819 = vsel %vm6726, %v6786, 0.0
        %v6820 = vadd.f32 %v6818, %v6819
        %v6821 = vsel %vm6726, %v6787, 0.0
        %v6822 = vadd.f32 %v6820, %v6821
        %v6823 = vrot.slane %v6822, 4
        %v6824 = vadd.f32 %v6822, %v6823
        %v6825 = vrot.slane %v6824, 2
        %v6826 = vadd.f32 %v6824, %v6825
        %v6827 = vrot.slane %v6826, 1
        %v6828 = vadd.f32 %v6826, %v6827
        %6829 = vst.msk [vmem:[%s240] sm:$0x1] %vm6768, %v6828
        %p6830 = scmp.lt.s32.totalorder %s27, 1
        %s6831 = scalar_select %p6830, %s27, 1
        %p6832 = scmp.lt.s32.totalorder %s26, 0
        %s6833 = scalar_select %p6832, %s26, 0
        %s6834 = smul.addr %s6831, 18
        %s6835 = sadd.s32 %s6833, %s6834
        %s6836 = smul.addr %s6835, 4
        %s6837 = scalar_lea.vmem %s2, %s6836
        %s6838 = sand.u32 %s124, 1
        %s6839 = scalar_lea.sflag [#allocation3], %s6838
        %s6840 = sand.u32 %s124, 1
        %s6841 = scalar_lea.vmem [#allocation2], %s6840
        %s6842 = sand.u32 %s152, 1
        %s6843 = scalar_lea.sflag [#allocation5], %s6842
        %s6844 = sand.u32 %s152, 1
        %s6845 = scalar_lea.vmem [#allocation4], %s6844
        // Predicated region
        $region29: #{tpu_custom_call.1} parent=27 // pred_check
          %p6846 = pneg %p106
        $region30: #{tpu_custom_call.1} parent=27 // pred_check_branch
          %6848 = sbr.rel (%p6846) target = $region32
        $region31: #{tpu_custom_call.1} parent=27 // pred_region
          _
        $region32: #{tpu_custom_call.1} parent=27 // pred_fallthru
          _
        // Predicated region
        $region33: #{tpu_custom_call.1} parent=27 // pred_check
          %p6849 = pneg %p134
        $region34: #{tpu_custom_call.1} parent=27 // pred_check_branch
          %6851 = sbr.rel (%p6849) target = $region36
        $region35: #{tpu_custom_call.1} parent=27 // pred_region
          %s6853 = ssub.s32 16, 16
          %6854 = vsyncadd %s6839, %s6853
          %s6855 = sadd.s32 %s26, %s27
          %s6856 = smul.addr %s6855, 16
          %s6857 = scalar_lea.hbm %s3, %s6856
          %s6859 = sshll.u32 %s6841, 4
          %s6860 = int_to_ptr.vmem [resolvable:$true] %s6859
          %6862 = dma.vmem_to_hbm [thread:$0]  %s6860, 16, %s6857, %s6839
        $region36: #{tpu_custom_call.1} parent=27 // pred_fallthru
          _
        // Predicated region
        $region37: #{tpu_custom_call.1} parent=27 // pred_check
          %p6863 = pneg %p162
        $region38: #{tpu_custom_call.1} parent=27 // pred_check_branch
          %6865 = sbr.rel (%p6863) target = $region40
        $region39: #{tpu_custom_call.1} parent=27 // pred_region
          %s6867 = ssub.s32 16, 16
          %6868 = vsyncadd %s6843, %s6867
          %s6869 = sadd.s32 %s26, %s27
          %s6870 = smul.addr %s6869, 16
          %s6871 = scalar_lea.hbm %s4, %s6870
          %s6873 = sshll.u32 %s6845, 4
          %s6874 = int_to_ptr.vmem [resolvable:$true] %s6873
          %6876 = dma.vmem_to_hbm [thread:$0]  %s6874, 16, %s6871, %s6843
        $region40: #{tpu_custom_call.1} parent=27 // pred_fallthru
          _
      $region28: #{tpu_custom_call.1} parent=5 // pred_fallthru
        _
      %p6877 = scmp.le.s32.totalorder 2, %s17
      // Predicated region
      $region41: #{tpu_custom_call.1} parent=5 // pred_check
        %p6878 = pneg %p6877
      $region42: #{tpu_custom_call.1} parent=5 // pred_check_branch
        %6880 = sbr.rel (%p6878) target = $region44
      $region43: #{tpu_custom_call.1} parent=5 // pred_region
        %s6881 = ssub.s32 %s17, 2
        // Predicated region
        $region45: #{tpu_custom_call.1} parent=43 // pred_check
          %p6882 = pneg %p112
        $region46: #{tpu_custom_call.1} parent=43 // pred_check_branch
          %6884 = sbr.rel (%p6882) target = $region48
        $region47: #{tpu_custom_call.1} parent=43 // pred_region
          %p6885 = scmp.lt.s32.totalorder %s29, 1
          %s6886 = scalar_select %p6885, %s29, 1
          %p6887 = scmp.lt.s32.totalorder %s28, 0
          %s6888 = scalar_select %p6887, %s28, 0
          %s6889 = smul.addr %s6886, 18
          %s6890 = sadd.s32 %s6888, %s6889
          %s6891 = smul.addr %s6890, 4
          %s6892 = scalar_lea.vmem %s2, %s6891
        $region48: #{tpu_custom_call.1} parent=43 // pred_fallthru
          _
        // Predicated region
        $region49: #{tpu_custom_call.1} parent=43 // pred_check
          %p6893 = pneg %p140
        $region50: #{tpu_custom_call.1} parent=43 // pred_check_branch
          %6895 = sbr.rel (%p6893) target = $region52
        $region51: #{tpu_custom_call.1} parent=43 // pred_region
          %s6896 = sand.u32 %s125, 1
          %s6897 = scalar_lea.sflag [#allocation3], %s6896
          %s6898 = sand.u32 %s125, 1
          %s6899 = scalar_lea.vmem [#allocation2], %s6898
          %6900 = dma.done %s6897, 16
        $region52: #{tpu_custom_call.1} parent=43 // pred_fallthru
          _
        // Predicated region
        $region53: #{tpu_custom_call.1} parent=43 // pred_check
          %p6901 = pneg %p168
        $region54: #{tpu_custom_call.1} parent=43 // pred_check_branch
          %6903 = sbr.rel (%p6901) target = $region56
        $region55: #{tpu_custom_call.1} parent=43 // pred_region
          %s6904 = sand.u32 %s153, 1
          %s6905 = scalar_lea.sflag [#allocation5], %s6904
          %s6906 = sand.u32 %s153, 1
          %s6907 = scalar_lea.vmem [#allocation4], %s6906
          %6908 = dma.done %s6905, 16
        $region56: #{tpu_custom_call.1} parent=43 // pred_fallthru
          _
      $region44: #{tpu_custom_call.1} parent=5 // pred_fallthru
        _
    $region6: #{tpu_custom_call.1} parent=1 // loop_footer
      %s21 = sadd.s32 1, %s17
    $region7: #{tpu_custom_call.1} parent=1 // loop_footer_branch
      %16 = sbr.rel target = $region3
    $region8: #{tpu_custom_call.1} parent=1 // loop_exit
      _
    %6909 = vsyncpa [#allocation3], 1
    %s6910 = scalar_lea.sflag [#allocation3], 1
    %6911 = vsyncpa %s6910, 1
    %6912 = vsyncpa [#allocation5], 1
    %s6913 = scalar_lea.sflag [#allocation5], 1
    %6914 = vsyncpa %s6913, 1

</llo_original>
